<compile_context>
chip_gen: v5e
topology: v5e:2x2
jax: 0.10.0
libtpu: 0.0.40
codegen_flags: <defaults>
</compile_context>

<pallas_src>
import functools
import math

import jax
import jax.numpy as jnp
from jax.experimental import pallas as pl
from jax.experimental.pallas import tpu as pltpu

SCALAR_SLAB_W = 128  # lane-dense packed output width (single unmasked vst)

PARAM_ORDER = (
    # style_net + style_net_out: Linear-relu-Linear-relu-Linear-tanh
    "sw0", "sb0", "sw1", "sb1", "sw2", "sb2",
    # actor: layer-0 split into obs-part / style-part, then 2 hidden Linear layers (head packed)
    "aw0o", "aw0s", "ab0", "aw1", "ab1", "aw2", "ab2",
    # critic: layer-0 split into obs-part / latent-part, then 2 hidden Linear layers (head packed)
    "cw0o", "cw0z", "cb0", "cw1", "cb1", "cw2", "cb2",
    # disc + enc packed layer 0 (output dims concatenated -> 128 lanes)
    "dew0", "deb0",
    # disc tail
    "dw1", "db1", "dw2", "db2",
    # enc tail
    "ew1", "eb1",
    # heads, zero-padded to SCALAR_SLAB_W output columns (disjoint column blocks) + packed bias
    "hwa", "hwc", "hwd", "hwe", "hb",
)


# ----------------------------------------------------------------------------
# Fused forward kernel
# ----------------------------------------------------------------------------
def _lin(x, w_ref, b_ref, act=None):
    # bf16 operands into the MXU, f32 accumulate, f32 bias/activation (v5e-safe).
    y = jnp.dot(x.astype(jnp.bfloat16), w_ref[...],
                preferred_element_type=jnp.float32) + b_ref[...]
    if act == "relu":
        return jnp.maximum(y, 0.0)
    if act == "tanh":
        return jnp.tanh(y)
    return y


def _lin_split(xa, wa_ref, xb, wb_ref, b_ref, act=None):
    # concat(xa, xb) @ W  ==  xa @ W[:da] + xb @ W[da:]   (no concat materialized)
    y = (jnp.dot(xa.astype(jnp.bfloat16), wa_ref[...], preferred_element_type=jnp.float32)
         + jnp.dot(xb.astype(jnp.bfloat16), wb_ref[...], preferred_element_type=jnp.float32)
         + b_ref[...])
    if act == "relu":
        return jnp.maximum(y, 0.0)
    if act == "tanh":
        return jnp.tanh(y)
    return y


def _ase_fused_kernel(
    # batch-blocked inputs
    aobs_ref, cobs_ref, amp_ref, z_ref,
    # style net
    sw0, sb0, sw1, sb1, sw2, sb2,
    # actor
    aw0o, aw0s, ab0, aw1, ab1, aw2, ab2,
    # critic
    cw0o, cw0z, cb0, cw1, cb1, cw2, cb2,
    # disc+enc packed layer 0
    dew0, deb0,
    # disc tail
    dw1, db1, dw2, db2,
    # enc tail
    ew1, eb1,
    # packed heads (each (hid, SLAB_W), disjoint nonzero column blocks) + packed bias
    hwa, hwc, hwd, hwe, hb,
    # single lane-dense packed output slab
    scal_ref,
    *, disc_h0, latent, num_actions, disc_reward_scale, enc_reward_scale,
):
    z = z_ref[...]

    # --- style_net -> style_net_out (relu, relu, tanh); stays in vregs/VMEM ---
    h = _lin(z, sw0, sb0, "relu")
    h = _lin(h, sw1, sb1, "relu")
    style = _lin(h, sw2, sb2, "tanh")

    # --- actor: concat(obs, style_embd) @ W0 done as split matmuls ---
    a = _lin_split(aobs_ref[...], aw0o, style, aw0s, ab0, "relu")
    a = _lin(a, aw1, ab1, "relu")
    a = _lin(a, aw2, ab2, "relu")                        # (TB, actor_hid_last)

    # --- critic: concat(critic_obs, z) @ W0 done as split matmuls ---
    c = _lin_split(cobs_ref[...], cw0o, z, cw0z, cb0, "relu")
    c = _lin(c, cw1, cb1, "relu")
    c = _lin(c, cw2, cb2, "relu")                        # (TB, critic_hid_last)

    # --- disc + enc share amp_obs: one lane-dense packed layer-0 matmul, then split ---
    de = _lin(amp_ref[...], dew0, deb0, "relu")          # (TB, disc_h0 + enc_h0)
    d = de[:, :disc_h0]
    e = de[:, disc_h0:]
    d = _lin(d, dw1, db1, "relu")
    d = _lin(d, dw2, db2, "relu")                        # (TB, disc_hid_last)
    e = _lin(e, ew1, eb1, "relu")                        # (TB, enc_hid_last)

    # --- packed heads: enc_pred [0:L], mean [L:L+NA], value @vcol, disc_logit @dcol ---
    # The MXU pads N to 128 lanes anyway, so the zero-padded head weights add no MXU cost,
    # and the full output slab materializes directly in lane-dense layout.
    slab = (jnp.dot(a.astype(jnp.bfloat16), hwa[...], preferred_element_type=jnp.float32)
            + jnp.dot(c.astype(jnp.bfloat16), hwc[...], preferred_element_type=jnp.float32)
            + jnp.dot(d.astype(jnp.bfloat16), hwd[...], preferred_element_type=jnp.float32)
            + jnp.dot(e.astype(jnp.bfloat16), hwe[...], preferred_element_type=jnp.float32)
            + hb[...])                                   # (TB, SLAB_W)

    vcol = latent + num_actions
    dcol = vcol + 1
    drcol = dcol + 1
    ercol = dcol + 2

    tb, slab_w = scal_ref.shape
    lane = jax.lax.broadcasted_iota(jnp.int32, (tb, slab_w), 1)

    # enc_pred lives at lane offset 0 -> cheap aligned slice; disc_logit is extracted with a
    # masked lane-reduce (avoids a non-aligned width-1 lane slice).
    enc_pred = slab[:, :latent]                          # (TB, LATENT)
    disc_logit = jnp.sum(jnp.where(lane == dcol, slab, 0.0), axis=-1, keepdims=True)

    # --- calc_amp_rewards ---
    prob = 1.0 / (1.0 + jnp.exp(-disc_logit))
    disc_r = -jnp.log(jnp.maximum(1.0 - prob, 0.0001)) * disc_reward_scale
    err = -jnp.sum(enc_pred * z, axis=-1, keepdims=True)
    enc_r = jnp.maximum(-err, 0.0) * enc_reward_scale

    # merge rewards into the two reserved (zero) columns, then ONE unmasked lane-dense store
    slab = jnp.where(lane == drcol, disc_r, slab)
    slab = jnp.where(lane == ercol, enc_r, slab)
    scal_ref[...] = slab.astype(scal_ref.dtype)


# ----------------------------------------------------------------------------
# Wrapper: one fused pallas_call over a batch-blocked grid with resident weights
# ----------------------------------------------------------------------------
def ase_forward(params, actor_obs, critic_obs, amp_obs, ase_latents, *,
                disc_hidden0, num_actions, disc_reward_scale=2.0, enc_reward_scale=1.0,
                block_b=256):
    batch = actor_obs.shape[0]
    latent = ase_latents.shape[1]
    vcol = latent + num_actions
    dcol, drcol, ercol = vcol + 1, vcol + 2, vcol + 3
    assert ercol < SCALAR_SLAB_W, "latent + num_actions + 4 must fit in the 128-lane slab"

    tb = min(batch, block_b)
    if batch % tb != 0 or tb % 8 != 0:
        tb = batch  # rows are independent; fall back to a single full-batch block
    grid = (batch // tb,)

    def batch_spec(feat):
        return pl.BlockSpec((tb, feat), lambda i: (i, 0))

    def resident_spec(arr):
        # Full-array block with constant index map: DMA'd once, resident across grid steps.
        return pl.BlockSpec(arr.shape, lambda i: (0, 0))

    flat_params = [params[k] for k in PARAM_ORDER]
    in_specs = [
        batch_spec(actor_obs.shape[1]),
        batch_spec(critic_obs.shape[1]),
        batch_spec(amp_obs.shape[1]),
        batch_spec(ase_latents.shape[1]),
    ] + [resident_spec(p) for p in flat_params]

    out_shape = jax.ShapeDtypeStruct((batch, SCALAR_SLAB_W), jnp.float32)
    out_specs = batch_spec(SCALAR_SLAB_W)

    kernel = functools.partial(
        _ase_fused_kernel,
        disc_h0=disc_hidden0,
        latent=latent,
        num_actions=num_actions,
        disc_reward_scale=disc_reward_scale,
        enc_reward_scale=enc_reward_scale,
    )

    slab = pl.pallas_call(
        kernel,
        grid=grid,
        in_specs=in_specs,
        out_specs=out_specs,
        out_shape=out_shape,
        compiler_params=pltpu.CompilerParams(
            dimension_semantics=("parallel",),      # shards the batch axis across TCs on v7x
            vmem_limit_bytes=32 * 1024 * 1024,      # explicit budget, portable to v7x 64 MiB
        ),
    )(actor_obs, critic_obs, amp_obs, ase_latents, *flat_params)

    enc_pred = slab[:, :latent]
    mean = slab[:, latent:vcol]
    value = slab[:, vcol:dcol]
    disc_logits = slab[:, dcol:drcol]
    disc_r = slab[:, drcol]
    enc_r = slab[:, ercol]
    return mean, value, disc_logits, enc_pred, disc_r, enc_r


# ----------------------------------------------------------------------------
# Parameter construction (mirrors the module's __init__ shapes / inits)
# ----------------------------------------------------------------------------
def _init_linear(key, fan_in, fan_out, scale=None):
    # PyTorch default Linear weight ~ U(-1/sqrt(fan_in), 1/sqrt(fan_in)); special heads
    # (style_net_out / disc_logits / enc_logits) use explicit uniform scales; biases zeroed.
    if scale is None:
        scale = 1.0 / math.sqrt(fan_in)
    w = jax.random.uniform(key, (fan_in, fan_out), jnp.float32, -scale, scale)
    b = jnp.zeros((1, fan_out), jnp.float32)
    return w, b


def _build_chain(key, dims, last_scale=None):
    ws, bs = [], []
    keys = jax.random.split(key, len(dims) - 1)
    for i in range(len(dims) - 1):
        scale = last_scale if (last_scale is not None and i == len(dims) - 2) else None
        w, b = _init_linear(keys[i], dims[i], dims[i + 1], scale)
        ws.append(w)
        bs.append(b)
    return ws, bs


def _pad_head(w, col0, width=SCALAR_SLAB_W):
    out = jnp.zeros((w.shape[0], width), w.dtype)
    return out.at[:, col0:col0 + w.shape[1]].set(w)


def build_ase_params(key, *, num_actor_obs, num_critic_obs, num_actions, amp_obs_dim,
                     latent, style_hid, actor_hid, critic_hid, disc_hid, enc_hid,
                     disc_logit_init_scale=1.0, enc_logit_init_scale=0.1,
                     style_init_scale=1.0, weight_dtype=jnp.bfloat16):
    k_style, k_actor, k_critic, k_disc, k_enc = jax.random.split(key, 5)

    style_ws, style_bs = _build_chain(k_style, [latent] + style_hid + [latent],
                                      last_scale=style_init_scale)
    actor_ws, actor_bs = _build_chain(k_actor, [num_actor_obs + latent] + actor_hid)
    critic_ws, critic_bs = _build_chain(k_critic, [num_critic_obs + latent] + critic_hid)
    disc_ws, disc_bs = _build_chain(k_disc, [amp_obs_dim] + disc_hid + [1],
                                    last_scale=disc_logit_init_scale)
    enc_ws, enc_bs = _build_chain(k_enc, [amp_obs_dim] + enc_hid + [latent],
                                  last_scale=enc_logit_init_scale)

    wd = lambda w: w.astype(weight_dtype)  # bf16 weights for the MXU; biases stay f32
    p = {}
    p["sw0"], p["sb0"] = wd(style_ws[0]), style_bs[0]
    p["sw1"], p["sb1"] = wd(style_ws[1]), style_bs[1]
    p["sw2"], p["sb2"] = wd(style_ws[2]), style_bs[2]

    # actor layer-0 split: concat(obs, style_embd) @ W0 == obs @ W0[:n_obs] + style @ W0[n_obs:]
    p["aw0o"] = wd(actor_ws[0][:num_actor_obs])
    p["aw0s"] = wd(actor_ws[0][num_actor_obs:])
    p["ab0"] = actor_bs[0]
    p["aw1"], p["ab1"] = wd(actor_ws[1]), actor_bs[1]
    p["aw2"], p["ab2"] = wd(actor_ws[2]), actor_bs[2]

    # critic layer-0 split: concat(critic_obs, z) @ W0
    p["cw0o"] = wd(critic_ws[0][:num_critic_obs])
    p["cw0z"] = wd(critic_ws[0][num_critic_obs:])
    p["cb0"] = critic_bs[0]
    p["cw1"], p["cb1"] = wd(critic_ws[1]), critic_bs[1]
    p["cw2"], p["cb2"] = wd(critic_ws[2]), critic_bs[2]

    # disc + enc layer-0 packed along the output dim (64 + 64 = 128 lanes)
    p["dew0"] = wd(jnp.concatenate([disc_ws[0], enc_ws[0]], axis=1))
    p["deb0"] = jnp.concatenate([disc_bs[0], enc_bs[0]], axis=1)
    p["dw1"], p["db1"] = wd(disc_ws[1]), disc_bs[1]
    p["dw2"], p["db2"] = wd(disc_ws[2]), disc_bs[2]
    p["ew1"], p["eb1"] = wd(enc_ws[1]), enc_bs[1]

    # heads padded into disjoint column blocks of the 128-lane output slab:
    #   enc_pred [0:L], mean [L:L+NA], value @(L+NA), disc_logit @(L+NA+1); +2 reward columns
    vcol = latent + num_actions
    dcol = vcol + 1
    assert dcol + 2 < SCALAR_SLAB_W
    p["hwa"] = wd(_pad_head(actor_ws[-1], latent))
    p["hwc"] = wd(_pad_head(critic_ws[-1], vcol))
    p["hwd"] = wd(_pad_head(disc_ws[-1], dcol))
    p["hwe"] = wd(_pad_head(enc_ws[-1], 0))
    hb = jnp.zeros((1, SCALAR_SLAB_W), jnp.float32)
    hb = hb.at[:, 0:latent].set(enc_bs[-1])
    hb = hb.at[:, latent:vcol].set(actor_bs[-1])
    hb = hb.at[:, vcol:vcol + 1].set(critic_bs[-1])
    hb = hb.at[:, dcol:dcol + 1].set(disc_bs[-1])
    p["hb"] = hb
    return p


# ----------------------------------------------------------------------------
# Plain-JAX reference (same bf16 weights / same math) for a correctness check
# ----------------------------------------------------------------------------
def ase_forward_ref(p, actor_obs, critic_obs, amp_obs, z, *,
                    disc_hidden0, num_actions,
                    disc_reward_scale=2.0, enc_reward_scale=1.0):
    latent = z.shape[1]
    vcol = latent + num_actions
    dcol = vcol + 1

    def lin(x, w, b, act=None):
        y = jnp.dot(x.astype(jnp.bfloat16), w, preferred_element_type=jnp.float32) + b
        if act == "relu":
            y = jnp.maximum(y, 0.0)
        elif act == "tanh":
            y = jnp.tanh(y)
        return y

    h = lin(z, p["sw0"], p["sb0"], "relu")
    h = lin(h, p["sw1"], p["sb1"], "relu")
    style = lin(h, p["sw2"], p["sb2"], "tanh")

    a = jnp.maximum(
        jnp.dot(actor_obs.astype(jnp.bfloat16), p["aw0o"], preferred_element_type=jnp.float32)
        + jnp.dot(style.astype(jnp.bfloat16), p["aw0s"], preferred_element_type=jnp.float32)
        + p["ab0"], 0.0)
    a = lin(a, p["aw1"], p["ab1"], "relu")
    a = lin(a, p["aw2"], p["ab2"], "relu")

    c = jnp.maximum(
        jnp.dot(critic_obs.astype(jnp.bfloat16), p["cw0o"], preferred_element_type=jnp.float32)
        + jnp.dot(z.astype(jnp.bfloat16), p["cw0z"], preferred_element_type=jnp.float32)
        + p["cb0"], 0.0)
    c = lin(c, p["cw1"], p["cb1"], "relu")
    c = lin(c, p["cw2"], p["cb2"], "relu")

    de = lin(amp_obs, p["dew0"], p["deb0"], "relu")
    d, e = de[:, :disc_hidden0], de[:, disc_hidden0:]
    d = lin(d, p["dw1"], p["db1"], "relu")
    d = lin(d, p["dw2"], p["db2"], "relu")
    e = lin(e, p["ew1"], p["eb1"], "relu")

    slab = (jnp.dot(a.astype(jnp.bfloat16), p["hwa"], preferred_element_type=jnp.float32)
            + jnp.dot(c.astype(jnp.bfloat16), p["hwc"], preferred_element_type=jnp.float32)
            + jnp.dot(d.astype(jnp.bfloat16), p["hwd"], preferred_element_type=jnp.float32)
            + jnp.dot(e.astype(jnp.bfloat16), p["hwe"], preferred_element_type=jnp.float32)
            + p["hb"])
    enc_pred = slab[:, :latent]
    mean = slab[:, latent:vcol]
    value = slab[:, vcol:vcol + 1]
    disc_logit = slab[:, dcol:dcol + 1]

    prob = 1.0 / (1.0 + jnp.exp(-disc_logit))
    disc_r = -jnp.log(jnp.maximum(1.0 - prob, 0.0001)) * disc_reward_scale
    err = -jnp.sum(enc_pred * z, axis=-1, keepdims=True)
    enc_r = jnp.maximum(-err, 0.0) * enc_reward_scale
    return mean, value, disc_logit, enc_pred, disc_r[:, 0], enc_r[:, 0]


if __name__ == "__main__":
    # Small shapes consistent with the module (hidden dims are constructor args).
    B = 16
    NUM_ACTOR_OBS = 24
    NUM_CRITIC_OBS = 28
    NUM_ACTIONS = 12
    AMP_OBS = 30
    LATENT = 16            # ase_latent_shape
    STYLE_HID = [32, 32]
    ACTOR_HID = [64, 64, 32, NUM_ACTIONS]
    CRITIC_HID = [64, 64, 32, 1]
    DISC_HID = [64, 64, 32]
    ENC_HID = [64, 32]     # DISC_HID[0] + ENC_HID[0] = 128 -> lane-dense packed layer 0

    root = jax.random.PRNGKey(0)
    k_params, k_obs_a, k_obs_c, k_amp, k_z = jax.random.split(root, 5)

    params = build_ase_params(
        k_params,
        num_actor_obs=NUM_ACTOR_OBS, num_critic_obs=NUM_CRITIC_OBS,
        num_actions=NUM_ACTIONS, amp_obs_dim=AMP_OBS, latent=LATENT,
        style_hid=STYLE_HID, actor_hid=ACTOR_HID, critic_hid=CRITIC_HID,
        disc_hid=DISC_HID, enc_hid=ENC_HID)

    std = jnp.ones((NUM_ACTIONS,), jnp.float32)  # self.std (init_noise_std = 1.0)

    # Deterministic example inputs.
    actor_obs = jax.random.normal(k_obs_a, (B, NUM_ACTOR_OBS), jnp.float32)
    critic_obs = jax.random.normal(k_obs_c, (B, NUM_CRITIC_OBS), jnp.float32)
    amp_obs = jax.random.normal(k_amp, (B, AMP_OBS), jnp.float32)
    # sample_latents(): normal then L2-normalize along last dim (plain-JAX glue).
    z = jax.random.normal(k_z, (B, LATENT), jnp.float32)
    ase_latents = z / jnp.linalg.norm(z, axis=-1, keepdims=True)

    # One jitted fused launch per step; weights stay device-resident across calls.
    fwd = jax.jit(functools.partial(ase_forward, disc_hidden0=DISC_HID[0],
                                    num_actions=NUM_ACTIONS, block_b=8))

    (action_mean, value, disc_logits, enc_pred,
     disc_r, enc_r) = fwd(params, actor_obs, critic_obs, amp_obs, ase_latents)
    action_std = jnp.broadcast_to(std, action_mean.shape)  # Normal(mean, mean*0 + std) stddev
    # TODO(synk): Normal sampling / log_prob / entropy (torch.distributions) and the stateful
    # latent reset / update_latents RNG bookkeeping are host-side logic, not reproduced in-kernel.

    jax.block_until_ready((action_mean, action_std, value,
                           disc_logits, enc_pred, disc_r, enc_r))

    # Correctness check against a plain-JAX reference using the same bf16 weights.
    ref = ase_forward_ref(params, actor_obs, critic_obs, amp_obs, ase_latents,
                          disc_hidden0=DISC_HID[0], num_actions=NUM_ACTIONS)
    for got, want in zip((action_mean, value, disc_logits, enc_pred, disc_r, enc_r), ref):
        assert got.shape == want.shape
        assert bool(jnp.allclose(got, want, rtol=5e-2, atol=5e-2))

    assert action_mean.shape == (B, NUM_ACTIONS)
    assert action_std.shape == (B, NUM_ACTIONS)
    assert value.shape == (B, 1)
    assert disc_logits.shape == (B, 1)
    assert enc_pred.shape == (B, LATENT)
    assert disc_r.shape == (B,) and enc_r.shape == (B,)
    print("KERNEL_OK")
</pallas_src>

<mosaic_0001>
module attributes {stable_mosaic.version = 11 : i64} {
  func.func @_ase_fused_kernel(%arg0: i32, %arg1: memref<8x24xf32, #tpu.memory_space<vmem>>, %arg2: memref<8x28xf32, #tpu.memory_space<vmem>>, %arg3: memref<8x30xf32, #tpu.memory_space<vmem>>, %arg4: memref<8x16xf32, #tpu.memory_space<vmem>>, %arg5: memref<16x32xbf16, #tpu.memory_space<vmem>>, %arg6: memref<1x32xf32, #tpu.memory_space<vmem>>, %arg7: memref<32x32xbf16, #tpu.memory_space<vmem>>, %arg8: memref<1x32xf32, #tpu.memory_space<vmem>>, %arg9: memref<32x16xbf16, #tpu.memory_space<vmem>>, %arg10: memref<1x16xf32, #tpu.memory_space<vmem>>, %arg11: memref<24x64xbf16, #tpu.memory_space<vmem>>, %arg12: memref<16x64xbf16, #tpu.memory_space<vmem>>, %arg13: memref<1x64xf32, #tpu.memory_space<vmem>>, %arg14: memref<64x64xbf16, #tpu.memory_space<vmem>>, %arg15: memref<1x64xf32, #tpu.memory_space<vmem>>, %arg16: memref<64x32xbf16, #tpu.memory_space<vmem>>, %arg17: memref<1x32xf32, #tpu.memory_space<vmem>>, %arg18: memref<28x64xbf16, #tpu.memory_space<vmem>>, %arg19: memref<16x64xbf16, #tpu.memory_space<vmem>>, %arg20: memref<1x64xf32, #tpu.memory_space<vmem>>, %arg21: memref<64x64xbf16, #tpu.memory_space<vmem>>, %arg22: memref<1x64xf32, #tpu.memory_space<vmem>>, %arg23: memref<64x32xbf16, #tpu.memory_space<vmem>>, %arg24: memref<1x32xf32, #tpu.memory_space<vmem>>, %arg25: memref<30x128xbf16, #tpu.memory_space<vmem>>, %arg26: memref<1x128xf32, #tpu.memory_space<vmem>>, %arg27: memref<64x64xbf16, #tpu.memory_space<vmem>>, %arg28: memref<1x64xf32, #tpu.memory_space<vmem>>, %arg29: memref<64x32xbf16, #tpu.memory_space<vmem>>, %arg30: memref<1x32xf32, #tpu.memory_space<vmem>>, %arg31: memref<64x32xbf16, #tpu.memory_space<vmem>>, %arg32: memref<1x32xf32, #tpu.memory_space<vmem>>, %arg33: memref<32x128xbf16, #tpu.memory_space<vmem>>, %arg34: memref<32x128xbf16, #tpu.memory_space<vmem>>, %arg35: memref<32x128xbf16, #tpu.memory_space<vmem>>, %arg36: memref<32x128xbf16, #tpu.memory_space<vmem>>, %arg37: memref<1x128xf32, #tpu.memory_space<vmem>>, %arg38: memref<8x128xf32, #tpu.memory_space<vmem>>) attributes {dimension_semantics = [#tpu.dimension_semantics<parallel>], iteration_bounds = array<i64: 2>, scalar_prefetch = 0 : i64, scratch_operands = 0 : i64, tpu.core_type = #tpu.core_type<tc>, window_params = [{transform_indices = @transform_0, window_bounds = array<i64: 8, 24>}, {transform_indices = @transform_1, window_bounds = array<i64: 8, 28>}, {transform_indices = @transform_2, window_bounds = array<i64: 8, 30>}, {transform_indices = @transform_3, window_bounds = array<i64: 8, 16>}, {pipeline_mode = #tpu.pipeline_mode<synchronous>, transform_indices = @transform_4, window_bounds = array<i64: 16, 32>}, {pipeline_mode = #tpu.pipeline_mode<synchronous>, transform_indices = @transform_5, window_bounds = array<i64: 1, 32>}, {pipeline_mode = #tpu.pipeline_mode<synchronous>, transform_indices = @transform_6, window_bounds = array<i64: 32, 32>}, {pipeline_mode = #tpu.pipeline_mode<synchronous>, transform_indices = @transform_7, window_bounds = array<i64: 1, 32>}, {pipeline_mode = #tpu.pipeline_mode<synchronous>, transform_indices = @transform_8, window_bounds = array<i64: 32, 16>}, {pipeline_mode = #tpu.pipeline_mode<synchronous>, transform_indices = @transform_9, window_bounds = array<i64: 1, 16>}, {pipeline_mode = #tpu.pipeline_mode<synchronous>, transform_indices = @transform_10, window_bounds = array<i64: 24, 64>}, {pipeline_mode = #tpu.pipeline_mode<synchronous>, transform_indices = @transform_11, window_bounds = array<i64: 16, 64>}, {pipeline_mode = #tpu.pipeline_mode<synchronous>, transform_indices = @transform_12, window_bounds = array<i64: 1, 64>}, {pipeline_mode = #tpu.pipeline_mode<synchronous>, transform_indices = @transform_13, window_bounds = array<i64: 64, 64>}, {pipeline_mode = #tpu.pipeline_mode<synchronous>, transform_indices = @transform_14, window_bounds = array<i64: 1, 64>}, {pipeline_mode = #tpu.pipeline_mode<synchronous>, transform_indices = @transform_15, window_bounds = array<i64: 64, 32>}, {pipeline_mode = #tpu.pipeline_mode<synchronous>, transform_indices = @transform_16, window_bounds = array<i64: 1, 32>}, {pipeline_mode = #tpu.pipeline_mode<synchronous>, transform_indices = @transform_17, window_bounds = array<i64: 28, 64>}, {pipeline_mode = #tpu.pipeline_mode<synchronous>, transform_indices = @transform_18, window_bounds = array<i64: 16, 64>}, {pipeline_mode = #tpu.pipeline_mode<synchronous>, transform_indices = @transform_19, window_bounds = array<i64: 1, 64>}, {pipeline_mode = #tpu.pipeline_mode<synchronous>, transform_indices = @transform_20, window_bounds = array<i64: 64, 64>}, {pipeline_mode = #tpu.pipeline_mode<synchronous>, transform_indices = @transform_21, window_bounds = array<i64: 1, 64>}, {pipeline_mode = #tpu.pipeline_mode<synchronous>, transform_indices = @transform_22, window_bounds = array<i64: 64, 32>}, {pipeline_mode = #tpu.pipeline_mode<synchronous>, transform_indices = @transform_23, window_bounds = array<i64: 1, 32>}, {pipeline_mode = #tpu.pipeline_mode<synchronous>, transform_indices = @transform_24, window_bounds = array<i64: 30, 128>}, {pipeline_mode = #tpu.pipeline_mode<synchronous>, transform_indices = @transform_25, window_bounds = array<i64: 1, 128>}, {pipeline_mode = #tpu.pipeline_mode<synchronous>, transform_indices = @transform_26, window_bounds = array<i64: 64, 64>}, {pipeline_mode = #tpu.pipeline_mode<synchronous>, transform_indices = @transform_27, window_bounds = array<i64: 1, 64>}, {pipeline_mode = #tpu.pipeline_mode<synchronous>, transform_indices = @transform_28, window_bounds = array<i64: 64, 32>}, {pipeline_mode = #tpu.pipeline_mode<synchronous>, transform_indices = @transform_29, window_bounds = array<i64: 1, 32>}, {pipeline_mode = #tpu.pipeline_mode<synchronous>, transform_indices = @transform_30, window_bounds = array<i64: 64, 32>}, {pipeline_mode = #tpu.pipeline_mode<synchronous>, transform_indices = @transform_31, window_bounds = array<i64: 1, 32>}, {pipeline_mode = #tpu.pipeline_mode<synchronous>, transform_indices = @transform_32, window_bounds = array<i64: 32, 128>}, {pipeline_mode = #tpu.pipeline_mode<synchronous>, transform_indices = @transform_33, window_bounds = array<i64: 32, 128>}, {pipeline_mode = #tpu.pipeline_mode<synchronous>, transform_indices = @transform_34, window_bounds = array<i64: 32, 128>}, {pipeline_mode = #tpu.pipeline_mode<synchronous>, transform_indices = @transform_35, window_bounds = array<i64: 32, 128>}, {pipeline_mode = #tpu.pipeline_mode<synchronous>, transform_indices = @transform_36, window_bounds = array<i64: 1, 128>}, {transform_indices = @transform_37, window_bounds = array<i64: 8, 128>}]} {
    %c0 = arith.constant 0 : index
    %c0_0 = arith.constant 0 : index
    %0 = vector.load %arg4[%c0, %c0_0] : memref<8x16xf32, #tpu.memory_space<vmem>>, vector<8x16xf32>
    %1 = arith.truncf %0 : vector<8x16xf32> to vector<8x16xbf16>
    %c0_1 = arith.constant 0 : index
    %c0_2 = arith.constant 0 : index
    %2 = vector.load %arg5[%c0_1, %c0_2] : memref<16x32xbf16, #tpu.memory_space<vmem>>, vector<16x32xbf16>
    %cst = arith.constant dense<0.000000e+00> : vector<8x32xf32>
    %3 = tpu.matmul %1, %2, %cst {dimension_numbers = #tpu.dot_dimension_numbers<[1], [0], [0], [1], [0, 0, 1, 1], [], []>} : vector<8x16xbf16>, vector<16x32xbf16>, vector<8x32xf32> -> vector<8x32xf32>
    %c0_3 = arith.constant 0 : index
    %c0_4 = arith.constant 0 : index
    %4 = vector.load %arg6[%c0_3, %c0_4] : memref<1x32xf32, #tpu.memory_space<vmem>>, vector<1x32xf32>
    %5 = vector.broadcast %4 : vector<1x32xf32> to vector<8x32xf32>
    %6 = arith.addf %3, %5 : vector<8x32xf32>
    %cst_5 = arith.constant 0.000000e+00 : f32
    %7 = vector.broadcast %cst_5 : f32 to vector<8x32xf32>
    %8 = arith.maximumf %6, %7 : vector<8x32xf32>
    %9 = arith.truncf %8 : vector<8x32xf32> to vector<8x32xbf16>
    %c0_6 = arith.constant 0 : index
    %c0_7 = arith.constant 0 : index
    %10 = vector.load %arg7[%c0_6, %c0_7] : memref<32x32xbf16, #tpu.memory_space<vmem>>, vector<32x32xbf16>
    %cst_8 = arith.constant dense<0.000000e+00> : vector<8x32xf32>
    %11 = tpu.matmul %9, %10, %cst_8 {dimension_numbers = #tpu.dot_dimension_numbers<[1], [0], [0], [1], [0, 0, 1, 1], [], []>} : vector<8x32xbf16>, vector<32x32xbf16>, vector<8x32xf32> -> vector<8x32xf32>
    %c0_9 = arith.constant 0 : index
    %c0_10 = arith.constant 0 : index
    %12 = vector.load %arg8[%c0_9, %c0_10] : memref<1x32xf32, #tpu.memory_space<vmem>>, vector<1x32xf32>
    %13 = vector.broadcast %12 : vector<1x32xf32> to vector<8x32xf32>
    %14 = arith.addf %11, %13 : vector<8x32xf32>
    %cst_11 = arith.constant 0.000000e+00 : f32
    %15 = vector.broadcast %cst_11 : f32 to vector<8x32xf32>
    %16 = arith.maximumf %14, %15 : vector<8x32xf32>
    %17 = arith.truncf %16 : vector<8x32xf32> to vector<8x32xbf16>
    %c0_12 = arith.constant 0 : index
    %c0_13 = arith.constant 0 : index
    %18 = vector.load %arg9[%c0_12, %c0_13] : memref<32x16xbf16, #tpu.memory_space<vmem>>, vector<32x16xbf16>
    %cst_14 = arith.constant dense<0.000000e+00> : vector<8x16xf32>
    %19 = tpu.matmul %17, %18, %cst_14 {dimension_numbers = #tpu.dot_dimension_numbers<[1], [0], [0], [1], [0, 0, 1, 1], [], []>} : vector<8x32xbf16>, vector<32x16xbf16>, vector<8x16xf32> -> vector<8x16xf32>
    %c0_15 = arith.constant 0 : index
    %c0_16 = arith.constant 0 : index
    %20 = vector.load %arg10[%c0_15, %c0_16] : memref<1x16xf32, #tpu.memory_space<vmem>>, vector<1x16xf32>
    %21 = vector.broadcast %20 : vector<1x16xf32> to vector<8x16xf32>
    %22 = arith.addf %19, %21 : vector<8x16xf32>
    %23 = math.tanh %22 : vector<8x16xf32>
    %c0_17 = arith.constant 0 : index
    %c0_18 = arith.constant 0 : index
    %24 = vector.load %arg1[%c0_17, %c0_18] : memref<8x24xf32, #tpu.memory_space<vmem>>, vector<8x24xf32>
    %25 = arith.truncf %24 : vector<8x24xf32> to vector<8x24xbf16>
    %c0_19 = arith.constant 0 : index
    %c0_20 = arith.constant 0 : index
    %26 = vector.load %arg11[%c0_19, %c0_20] : memref<24x64xbf16, #tpu.memory_space<vmem>>, vector<24x64xbf16>
    %cst_21 = arith.constant dense<0.000000e+00> : vector<8x64xf32>
    %27 = tpu.matmul %25, %26, %cst_21 {dimension_numbers = #tpu.dot_dimension_numbers<[1], [0], [0], [1], [0, 0, 1, 1], [], []>} : vector<8x24xbf16>, vector<24x64xbf16>, vector<8x64xf32> -> vector<8x64xf32>
    %28 = arith.truncf %23 : vector<8x16xf32> to vector<8x16xbf16>
    %c0_22 = arith.constant 0 : index
    %c0_23 = arith.constant 0 : index
    %29 = vector.load %arg12[%c0_22, %c0_23] : memref<16x64xbf16, #tpu.memory_space<vmem>>, vector<16x64xbf16>
    %cst_24 = arith.constant dense<0.000000e+00> : vector<8x64xf32>
    %30 = tpu.matmul %28, %29, %cst_24 {dimension_numbers = #tpu.dot_dimension_numbers<[1], [0], [0], [1], [0, 0, 1, 1], [], []>} : vector<8x16xbf16>, vector<16x64xbf16>, vector<8x64xf32> -> vector<8x64xf32>
    %31 = arith.addf %27, %30 : vector<8x64xf32>
    %c0_25 = arith.constant 0 : index
    %c0_26 = arith.constant 0 : index
    %32 = vector.load %arg13[%c0_25, %c0_26] : memref<1x64xf32, #tpu.memory_space<vmem>>, vector<1x64xf32>
    %33 = vector.broadcast %32 : vector<1x64xf32> to vector<8x64xf32>
    %34 = arith.addf %31, %33 : vector<8x64xf32>
    %cst_27 = arith.constant 0.000000e+00 : f32
    %35 = vector.broadcast %cst_27 : f32 to vector<8x64xf32>
    %36 = arith.maximumf %34, %35 : vector<8x64xf32>
    %37 = arith.truncf %36 : vector<8x64xf32> to vector<8x64xbf16>
    %c0_28 = arith.constant 0 : index
    %c0_29 = arith.constant 0 : index
    %38 = vector.load %arg14[%c0_28, %c0_29] : memref<64x64xbf16, #tpu.memory_space<vmem>>, vector<64x64xbf16>
    %cst_30 = arith.constant dense<0.000000e+00> : vector<8x64xf32>
    %39 = tpu.matmul %37, %38, %cst_30 {dimension_numbers = #tpu.dot_dimension_numbers<[1], [0], [0], [1], [0, 0, 1, 1], [], []>} : vector<8x64xbf16>, vector<64x64xbf16>, vector<8x64xf32> -> vector<8x64xf32>
    %c0_31 = arith.constant 0 : index
    %c0_32 = arith.constant 0 : index
    %40 = vector.load %arg15[%c0_31, %c0_32] : memref<1x64xf32, #tpu.memory_space<vmem>>, vector<1x64xf32>
    %41 = vector.broadcast %40 : vector<1x64xf32> to vector<8x64xf32>
    %42 = arith.addf %39, %41 : vector<8x64xf32>
    %cst_33 = arith.constant 0.000000e+00 : f32
    %43 = vector.broadcast %cst_33 : f32 to vector<8x64xf32>
    %44 = arith.maximumf %42, %43 : vector<8x64xf32>
    %45 = arith.truncf %44 : vector<8x64xf32> to vector<8x64xbf16>
    %c0_34 = arith.constant 0 : index
    %c0_35 = arith.constant 0 : index
    %46 = vector.load %arg16[%c0_34, %c0_35] : memref<64x32xbf16, #tpu.memory_space<vmem>>, vector<64x32xbf16>
    %cst_36 = arith.constant dense<0.000000e+00> : vector<8x32xf32>
    %47 = tpu.matmul %45, %46, %cst_36 {dimension_numbers = #tpu.dot_dimension_numbers<[1], [0], [0], [1], [0, 0, 1, 1], [], []>} : vector<8x64xbf16>, vector<64x32xbf16>, vector<8x32xf32> -> vector<8x32xf32>
    %c0_37 = arith.constant 0 : index
    %c0_38 = arith.constant 0 : index
    %48 = vector.load %arg17[%c0_37, %c0_38] : memref<1x32xf32, #tpu.memory_space<vmem>>, vector<1x32xf32>
    %49 = vector.broadcast %48 : vector<1x32xf32> to vector<8x32xf32>
    %50 = arith.addf %47, %49 : vector<8x32xf32>
    %cst_39 = arith.constant 0.000000e+00 : f32
    %51 = vector.broadcast %cst_39 : f32 to vector<8x32xf32>
    %52 = arith.maximumf %50, %51 : vector<8x32xf32>
    %c0_40 = arith.constant 0 : index
    %c0_41 = arith.constant 0 : index
    %53 = vector.load %arg2[%c0_40, %c0_41] : memref<8x28xf32, #tpu.memory_space<vmem>>, vector<8x28xf32>
    %54 = arith.truncf %53 : vector<8x28xf32> to vector<8x28xbf16>
    %c0_42 = arith.constant 0 : index
    %c0_43 = arith.constant 0 : index
    %55 = vector.load %arg18[%c0_42, %c0_43] : memref<28x64xbf16, #tpu.memory_space<vmem>>, vector<28x64xbf16>
    %cst_44 = arith.constant dense<0.000000e+00> : vector<8x64xf32>
    %56 = tpu.matmul %54, %55, %cst_44 {dimension_numbers = #tpu.dot_dimension_numbers<[1], [0], [0], [1], [0, 0, 1, 1], [], []>} : vector<8x28xbf16>, vector<28x64xbf16>, vector<8x64xf32> -> vector<8x64xf32>
    %57 = arith.truncf %0 : vector<8x16xf32> to vector<8x16xbf16>
    %c0_45 = arith.constant 0 : index
    %c0_46 = arith.constant 0 : index
    %58 = vector.load %arg19[%c0_45, %c0_46] : memref<16x64xbf16, #tpu.memory_space<vmem>>, vector<16x64xbf16>
    %cst_47 = arith.constant dense<0.000000e+00> : vector<8x64xf32>
    %59 = tpu.matmul %57, %58, %cst_47 {dimension_numbers = #tpu.dot_dimension_numbers<[1], [0], [0], [1], [0, 0, 1, 1], [], []>} : vector<8x16xbf16>, vector<16x64xbf16>, vector<8x64xf32> -> vector<8x64xf32>
    %60 = arith.addf %56, %59 : vector<8x64xf32>
    %c0_48 = arith.constant 0 : index
    %c0_49 = arith.constant 0 : index
    %61 = vector.load %arg20[%c0_48, %c0_49] : memref<1x64xf32, #tpu.memory_space<vmem>>, vector<1x64xf32>
    %62 = vector.broadcast %61 : vector<1x64xf32> to vector<8x64xf32>
    %63 = arith.addf %60, %62 : vector<8x64xf32>
    %cst_50 = arith.constant 0.000000e+00 : f32
    %64 = vector.broadcast %cst_50 : f32 to vector<8x64xf32>
    %65 = arith.maximumf %63, %64 : vector<8x64xf32>
    %66 = arith.truncf %65 : vector<8x64xf32> to vector<8x64xbf16>
    %c0_51 = arith.constant 0 : index
    %c0_52 = arith.constant 0 : index
    %67 = vector.load %arg21[%c0_51, %c0_52] : memref<64x64xbf16, #tpu.memory_space<vmem>>, vector<64x64xbf16>
    %cst_53 = arith.constant dense<0.000000e+00> : vector<8x64xf32>
    %68 = tpu.matmul %66, %67, %cst_53 {dimension_numbers = #tpu.dot_dimension_numbers<[1], [0], [0], [1], [0, 0, 1, 1], [], []>} : vector<8x64xbf16>, vector<64x64xbf16>, vector<8x64xf32> -> vector<8x64xf32>
    %c0_54 = arith.constant 0 : index
    %c0_55 = arith.constant 0 : index
    %69 = vector.load %arg22[%c0_54, %c0_55] : memref<1x64xf32, #tpu.memory_space<vmem>>, vector<1x64xf32>
    %70 = vector.broadcast %69 : vector<1x64xf32> to vector<8x64xf32>
    %71 = arith.addf %68, %70 : vector<8x64xf32>
    %cst_56 = arith.constant 0.000000e+00 : f32
    %72 = vector.broadcast %cst_56 : f32 to vector<8x64xf32>
    %73 = arith.maximumf %71, %72 : vector<8x64xf32>
    %74 = arith.truncf %73 : vector<8x64xf32> to vector<8x64xbf16>
    %c0_57 = arith.constant 0 : index
    %c0_58 = arith.constant 0 : index
    %75 = vector.load %arg23[%c0_57, %c0_58] : memref<64x32xbf16, #tpu.memory_space<vmem>>, vector<64x32xbf16>
    %cst_59 = arith.constant dense<0.000000e+00> : vector<8x32xf32>
    %76 = tpu.matmul %74, %75, %cst_59 {dimension_numbers = #tpu.dot_dimension_numbers<[1], [0], [0], [1], [0, 0, 1, 1], [], []>} : vector<8x64xbf16>, vector<64x32xbf16>, vector<8x32xf32> -> vector<8x32xf32>
    %c0_60 = arith.constant 0 : index
    %c0_61 = arith.constant 0 : index
    %77 = vector.load %arg24[%c0_60, %c0_61] : memref<1x32xf32, #tpu.memory_space<vmem>>, vector<1x32xf32>
    %78 = vector.broadcast %77 : vector<1x32xf32> to vector<8x32xf32>
    %79 = arith.addf %76, %78 : vector<8x32xf32>
    %cst_62 = arith.constant 0.000000e+00 : f32
    %80 = vector.broadcast %cst_62 : f32 to vector<8x32xf32>
    %81 = arith.maximumf %79, %80 : vector<8x32xf32>
    %c0_63 = arith.constant 0 : index
    %c0_64 = arith.constant 0 : index
    %82 = vector.load %arg3[%c0_63, %c0_64] : memref<8x30xf32, #tpu.memory_space<vmem>>, vector<8x30xf32>
    %83 = arith.truncf %82 : vector<8x30xf32> to vector<8x30xbf16>
    %c0_65 = arith.constant 0 : index
    %c0_66 = arith.constant 0 : index
    %84 = vector.load %arg25[%c0_65, %c0_66] : memref<30x128xbf16, #tpu.memory_space<vmem>>, vector<30x128xbf16>
    %cst_67 = arith.constant dense<0.000000e+00> : vector<8x128xf32>
    %85 = tpu.matmul %83, %84, %cst_67 {dimension_numbers = #tpu.dot_dimension_numbers<[1], [0], [0], [1], [0, 0, 1, 1], [], []>} : vector<8x30xbf16>, vector<30x128xbf16>, vector<8x128xf32> -> vector<8x128xf32>
    %c0_68 = arith.constant 0 : index
    %c0_69 = arith.constant 0 : index
    %86 = vector.load %arg26[%c0_68, %c0_69] : memref<1x128xf32, #tpu.memory_space<vmem>>, vector<1x128xf32>
    %87 = vector.broadcast %86 : vector<1x128xf32> to vector<8x128xf32>
    %88 = arith.addf %85, %87 : vector<8x128xf32>
    %cst_70 = arith.constant 0.000000e+00 : f32
    %89 = vector.broadcast %cst_70 : f32 to vector<8x128xf32>
    %90 = arith.maximumf %88, %89 : vector<8x128xf32>
    %91 = vector.extract_strided_slice %90 {offsets = [0, 0], sizes = [8, 64], strides = [1, 1]} : vector<8x128xf32> to vector<8x64xf32>
    %92 = vector.extract_strided_slice %90 {offsets = [0, 64], sizes = [8, 64], strides = [1, 1]} : vector<8x128xf32> to vector<8x64xf32>
    %93 = arith.truncf %91 : vector<8x64xf32> to vector<8x64xbf16>
    %c0_71 = arith.constant 0 : index
    %c0_72 = arith.constant 0 : index
    %94 = vector.load %arg27[%c0_71, %c0_72] : memref<64x64xbf16, #tpu.memory_space<vmem>>, vector<64x64xbf16>
    %cst_73 = arith.constant dense<0.000000e+00> : vector<8x64xf32>
    %95 = tpu.matmul %93, %94, %cst_73 {dimension_numbers = #tpu.dot_dimension_numbers<[1], [0], [0], [1], [0, 0, 1, 1], [], []>} : vector<8x64xbf16>, vector<64x64xbf16>, vector<8x64xf32> -> vector<8x64xf32>
    %c0_74 = arith.constant 0 : index
    %c0_75 = arith.constant 0 : index
    %96 = vector.load %arg28[%c0_74, %c0_75] : memref<1x64xf32, #tpu.memory_space<vmem>>, vector<1x64xf32>
    %97 = vector.broadcast %96 : vector<1x64xf32> to vector<8x64xf32>
    %98 = arith.addf %95, %97 : vector<8x64xf32>
    %cst_76 = arith.constant 0.000000e+00 : f32
    %99 = vector.broadcast %cst_76 : f32 to vector<8x64xf32>
    %100 = arith.maximumf %98, %99 : vector<8x64xf32>
    %101 = arith.truncf %100 : vector<8x64xf32> to vector<8x64xbf16>
    %c0_77 = arith.constant 0 : index
    %c0_78 = arith.constant 0 : index
    %102 = vector.load %arg29[%c0_77, %c0_78] : memref<64x32xbf16, #tpu.memory_space<vmem>>, vector<64x32xbf16>
    %cst_79 = arith.constant dense<0.000000e+00> : vector<8x32xf32>
    %103 = tpu.matmul %101, %102, %cst_79 {dimension_numbers = #tpu.dot_dimension_numbers<[1], [0], [0], [1], [0, 0, 1, 1], [], []>} : vector<8x64xbf16>, vector<64x32xbf16>, vector<8x32xf32> -> vector<8x32xf32>
    %c0_80 = arith.constant 0 : index
    %c0_81 = arith.constant 0 : index
    %104 = vector.load %arg30[%c0_80, %c0_81] : memref<1x32xf32, #tpu.memory_space<vmem>>, vector<1x32xf32>
    %105 = vector.broadcast %104 : vector<1x32xf32> to vector<8x32xf32>
    %106 = arith.addf %103, %105 : vector<8x32xf32>
    %cst_82 = arith.constant 0.000000e+00 : f32
    %107 = vector.broadcast %cst_82 : f32 to vector<8x32xf32>
    %108 = arith.maximumf %106, %107 : vector<8x32xf32>
    %109 = arith.truncf %92 : vector<8x64xf32> to vector<8x64xbf16>
    %c0_83 = arith.constant 0 : index
    %c0_84 = arith.constant 0 : index
    %110 = vector.load %arg31[%c0_83, %c0_84] : memref<64x32xbf16, #tpu.memory_space<vmem>>, vector<64x32xbf16>
    %cst_85 = arith.constant dense<0.000000e+00> : vector<8x32xf32>
    %111 = tpu.matmul %109, %110, %cst_85 {dimension_numbers = #tpu.dot_dimension_numbers<[1], [0], [0], [1], [0, 0, 1, 1], [], []>} : vector<8x64xbf16>, vector<64x32xbf16>, vector<8x32xf32> -> vector<8x32xf32>
    %c0_86 = arith.constant 0 : index
    %c0_87 = arith.constant 0 : index
    %112 = vector.load %arg32[%c0_86, %c0_87] : memref<1x32xf32, #tpu.memory_space<vmem>>, vector<1x32xf32>
    %113 = vector.broadcast %112 : vector<1x32xf32> to vector<8x32xf32>
    %114 = arith.addf %111, %113 : vector<8x32xf32>
    %cst_88 = arith.constant 0.000000e+00 : f32
    %115 = vector.broadcast %cst_88 : f32 to vector<8x32xf32>
    %116 = arith.maximumf %114, %115 : vector<8x32xf32>
    %117 = arith.truncf %52 : vector<8x32xf32> to vector<8x32xbf16>
    %c0_89 = arith.constant 0 : index
    %c0_90 = arith.constant 0 : index
    %118 = vector.load %arg33[%c0_89, %c0_90] : memref<32x128xbf16, #tpu.memory_space<vmem>>, vector<32x128xbf16>
    %cst_91 = arith.constant dense<0.000000e+00> : vector<8x128xf32>
    %119 = tpu.matmul %117, %118, %cst_91 {dimension_numbers = #tpu.dot_dimension_numbers<[1], [0], [0], [1], [0, 0, 1, 1], [], []>} : vector<8x32xbf16>, vector<32x128xbf16>, vector<8x128xf32> -> vector<8x128xf32>
    %120 = arith.truncf %81 : vector<8x32xf32> to vector<8x32xbf16>
    %c0_92 = arith.constant 0 : index
    %c0_93 = arith.constant 0 : index
    %121 = vector.load %arg34[%c0_92, %c0_93] : memref<32x128xbf16, #tpu.memory_space<vmem>>, vector<32x128xbf16>
    %cst_94 = arith.constant dense<0.000000e+00> : vector<8x128xf32>
    %122 = tpu.matmul %120, %121, %cst_94 {dimension_numbers = #tpu.dot_dimension_numbers<[1], [0], [0], [1], [0, 0, 1, 1], [], []>} : vector<8x32xbf16>, vector<32x128xbf16>, vector<8x128xf32> -> vector<8x128xf32>
    %123 = arith.addf %119, %122 : vector<8x128xf32>
    %124 = arith.truncf %108 : vector<8x32xf32> to vector<8x32xbf16>
    %c0_95 = arith.constant 0 : index
    %c0_96 = arith.constant 0 : index
    %125 = vector.load %arg35[%c0_95, %c0_96] : memref<32x128xbf16, #tpu.memory_space<vmem>>, vector<32x128xbf16>
    %cst_97 = arith.constant dense<0.000000e+00> : vector<8x128xf32>
    %126 = tpu.matmul %124, %125, %cst_97 {dimension_numbers = #tpu.dot_dimension_numbers<[1], [0], [0], [1], [0, 0, 1, 1], [], []>} : vector<8x32xbf16>, vector<32x128xbf16>, vector<8x128xf32> -> vector<8x128xf32>
    %127 = arith.addf %123, %126 : vector<8x128xf32>
    %128 = arith.truncf %116 : vector<8x32xf32> to vector<8x32xbf16>
    %c0_98 = arith.constant 0 : index
    %c0_99 = arith.constant 0 : index
    %129 = vector.load %arg36[%c0_98, %c0_99] : memref<32x128xbf16, #tpu.memory_space<vmem>>, vector<32x128xbf16>
    %cst_100 = arith.constant dense<0.000000e+00> : vector<8x128xf32>
    %130 = tpu.matmul %128, %129, %cst_100 {dimension_numbers = #tpu.dot_dimension_numbers<[1], [0], [0], [1], [0, 0, 1, 1], [], []>} : vector<8x32xbf16>, vector<32x128xbf16>, vector<8x128xf32> -> vector<8x128xf32>
    %131 = arith.addf %127, %130 : vector<8x128xf32>
    %c0_101 = arith.constant 0 : index
    %c0_102 = arith.constant 0 : index
    %132 = vector.load %arg37[%c0_101, %c0_102] : memref<1x128xf32, #tpu.memory_space<vmem>>, vector<1x128xf32>
    %133 = vector.broadcast %132 : vector<1x128xf32> to vector<8x128xf32>
    %134 = arith.addf %131, %133 : vector<8x128xf32>
    %135 = tpu.iota {dimensions = array<i32: 1>} : vector<8x128xi32>
    %136 = vector.extract_strided_slice %134 {offsets = [0, 0], sizes = [8, 16], strides = [1, 1]} : vector<8x128xf32> to vector<8x16xf32>
    %c29_i32 = arith.constant 29 : i32
    %137 = vector.broadcast %c29_i32 : i32 to vector<8x128xi32>
    %138 = arith.cmpi eq, %135, %137 : vector<8x128xi32>
    %cst_103 = arith.constant 0.000000e+00 : f32
    %139 = vector.broadcast %cst_103 : f32 to vector<8x128xf32>
    %140 = arith.select %138, %134, %139 : vector<8x128xi1>, vector<8x128xf32>
    %cst_104 = arith.constant dense<0.000000e+00> : vector<8xf32>
    %141 = vector.multi_reduction <add>, %140, %cst_104 [1] : vector<8x128xf32> to vector<8xf32>
    %142 = vector.shape_cast %141 : vector<8xf32> to vector<8x1xf32>
    %cst_105 = arith.constant 0.000000e+00 : f32
    %143 = vector.broadcast %cst_105 : f32 to vector<8x1xf32>
    %144 = arith.subf %143, %142 : vector<8x1xf32>
    %145 = math.exp %144 : vector<8x1xf32>
    %cst_106 = arith.constant 1.000000e+00 : f32
    %146 = vector.broadcast %cst_106 : f32 to vector<8x1xf32>
    %147 = arith.addf %146, %145 : vector<8x1xf32>
    %cst_107 = arith.constant 1.000000e+00 : f32
    %148 = vector.broadcast %cst_107 : f32 to vector<8x1xf32>
    %149 = arith.divf %148, %147 : vector<8x1xf32>
    %cst_108 = arith.constant 1.000000e+00 : f32
    %150 = vector.broadcast %cst_108 : f32 to vector<8x1xf32>
    %151 = arith.subf %150, %149 : vector<8x1xf32>
    %cst_109 = arith.constant 9.99999974E-5 : f32
    %152 = vector.broadcast %cst_109 : f32 to vector<8x1xf32>
    %153 = arith.maximumf %151, %152 : vector<8x1xf32>
    %154 = math.log %153 : vector<8x1xf32>
    %cst_110 = arith.constant 0.000000e+00 : f32
    %155 = vector.broadcast %cst_110 : f32 to vector<8x1xf32>
    %156 = arith.subf %155, %154 : vector<8x1xf32>
    %cst_111 = arith.constant 2.000000e+00 : f32
    %157 = vector.broadcast %cst_111 : f32 to vector<8x1xf32>
    %158 = arith.mulf %156, %157 : vector<8x1xf32>
    %159 = arith.mulf %136, %0 : vector<8x16xf32>
    %cst_112 = arith.constant dense<0.000000e+00> : vector<8xf32>
    %160 = vector.multi_reduction <add>, %159, %cst_112 [1] : vector<8x16xf32> to vector<8xf32>
    %161 = vector.shape_cast %160 : vector<8xf32> to vector<8x1xf32>
    %cst_113 = arith.constant 0.000000e+00 : f32
    %162 = vector.broadcast %cst_113 : f32 to vector<8x1xf32>
    %163 = arith.subf %162, %161 : vector<8x1xf32>
    %cst_114 = arith.constant 0.000000e+00 : f32
    %164 = vector.broadcast %cst_114 : f32 to vector<8x1xf32>
    %165 = arith.subf %164, %163 : vector<8x1xf32>
    %cst_115 = arith.constant 0.000000e+00 : f32
    %166 = vector.broadcast %cst_115 : f32 to vector<8x1xf32>
    %167 = arith.maximumf %165, %166 : vector<8x1xf32>
    %cst_116 = arith.constant 1.000000e+00 : f32
    %168 = vector.broadcast %cst_116 : f32 to vector<8x1xf32>
    %169 = arith.mulf %167, %168 : vector<8x1xf32>
    %c30_i32 = arith.constant 30 : i32
    %170 = vector.broadcast %c30_i32 : i32 to vector<8x128xi32>
    %171 = arith.cmpi eq, %135, %170 : vector<8x128xi32>
    %172 = vector.shape_cast %158 : vector<8x1xf32> to vector<8x1xf32>
    %173 = vector.broadcast %172 : vector<8x1xf32> to vector<8x128xf32>
    %174 = arith.select %171, %173, %134 : vector<8x128xi1>, vector<8x128xf32>
    %c31_i32 = arith.constant 31 : i32
    %175 = vector.broadcast %c31_i32 : i32 to vector<8x128xi32>
    %176 = arith.cmpi eq, %135, %175 : vector<8x128xi32>
    %177 = vector.shape_cast %169 : vector<8x1xf32> to vector<8x1xf32>
    %178 = vector.broadcast %177 : vector<8x1xf32> to vector<8x128xf32>
    %179 = arith.select %176, %178, %174 : vector<8x128xi1>, vector<8x128xf32>
    %c0_117 = arith.constant 0 : index
    %c0_118 = arith.constant 0 : index
    %180 = vector.load %arg38[%c0_117, %c0_118] : memref<8x128xf32, #tpu.memory_space<vmem>>, vector<8x128xf32>
    tpu.vector_store %arg38[%c0_117, %c0_118], %179 {strides = array<i32>} : memref<8x128xf32, #tpu.memory_space<vmem>>, vector<8x128xf32>,
    return
  }
  func.func @transform_0(%arg0: i32) -> (i32, i32) {
    %c0_i32 = arith.constant 0 : i32
    %c0_i32_0 = arith.constant 0 : i32
    return %arg0, %c0_i32 : i32, i32
  }
  func.func @transform_1(%arg0: i32) -> (i32, i32) {
    %c0_i32 = arith.constant 0 : i32
    %c0_i32_0 = arith.constant 0 : i32
    return %arg0, %c0_i32 : i32, i32
  }
  func.func @transform_2(%arg0: i32) -> (i32, i32) {
    %c0_i32 = arith.constant 0 : i32
    %c0_i32_0 = arith.constant 0 : i32
    return %arg0, %c0_i32 : i32, i32
  }
  func.func @transform_3(%arg0: i32) -> (i32, i32) {
    %c0_i32 = arith.constant 0 : i32
    %c0_i32_0 = arith.constant 0 : i32
    return %arg0, %c0_i32 : i32, i32
  }
  func.func @transform_4(%arg0: i32) -> (i32, i32) {
    %c0_i32 = arith.constant 0 : i32
    %c0_i32_0 = arith.constant 0 : i32
    %c0_i32_1 = arith.constant 0 : i32
    return %c0_i32, %c0_i32_0 : i32, i32
  }
  func.func @transform_5(%arg0: i32) -> (i32, i32) {
    %c0_i32 = arith.constant 0 : i32
    %c0_i32_0 = arith.constant 0 : i32
    %c0_i32_1 = arith.constant 0 : i32
    return %c0_i32, %c0_i32_0 : i32, i32
  }
  func.func @transform_6(%arg0: i32) -> (i32, i32) {
    %c0_i32 = arith.constant 0 : i32
    %c0_i32_0 = arith.constant 0 : i32
    %c0_i32_1 = arith.constant 0 : i32
    return %c0_i32, %c0_i32_0 : i32, i32
  }
  func.func @transform_7(%arg0: i32) -> (i32, i32) {
    %c0_i32 = arith.constant 0 : i32
    %c0_i32_0 = arith.constant 0 : i32
    %c0_i32_1 = arith.constant 0 : i32
    return %c0_i32, %c0_i32_0 : i32, i32
  }
  func.func @transform_8(%arg0: i32) -> (i32, i32) {
    %c0_i32 = arith.constant 0 : i32
    %c0_i32_0 = arith.constant 0 : i32
    %c0_i32_1 = arith.constant 0 : i32
    return %c0_i32, %c0_i32_0 : i32, i32
  }
  func.func @transform_9(%arg0: i32) -> (i32, i32) {
    %c0_i32 = arith.constant 0 : i32
    %c0_i32_0 = arith.constant 0 : i32
    %c0_i32_1 = arith.constant 0 : i32
    return %c0_i32, %c0_i32_0 : i32, i32
  }
  func.func @transform_10(%arg0: i32) -> (i32, i32) {
    %c0_i32 = arith.constant 0 : i32
    %c0_i32_0 = arith.constant 0 : i32
    %c0_i32_1 = arith.constant 0 : i32
    return %c0_i32, %c0_i32_0 : i32, i32
  }
  func.func @transform_11(%arg0: i32) -> (i32, i32) {
    %c0_i32 = arith.constant 0 : i32
    %c0_i32_0 = arith.constant 0 : i32
    %c0_i32_1 = arith.constant 0 : i32
    return %c0_i32, %c0_i32_0 : i32, i32
  }
  func.func @transform_12(%arg0: i32) -> (i32, i32) {
    %c0_i32 = arith.constant 0 : i32
    %c0_i32_0 = arith.constant 0 : i32
    %c0_i32_1 = arith.constant 0 : i32
    return %c0_i32, %c0_i32_0 : i32, i32
  }
  func.func @transform_13(%arg0: i32) -> (i32, i32) {
    %c0_i32 = arith.constant 0 : i32
    %c0_i32_0 = arith.constant 0 : i32
    %c0_i32_1 = arith.constant 0 : i32
    return %c0_i32, %c0_i32_0 : i32, i32
  }
  func.func @transform_14(%arg0: i32) -> (i32, i32) {
    %c0_i32 = arith.constant 0 : i32
    %c0_i32_0 = arith.constant 0 : i32
    %c0_i32_1 = arith.constant 0 : i32
    return %c0_i32, %c0_i32_0 : i32, i32
  }
  func.func @transform_15(%arg0: i32) -> (i32, i32) {
    %c0_i32 = arith.constant 0 : i32
    %c0_i32_0 = arith.constant 0 : i32
    %c0_i32_1 = arith.constant 0 : i32
    return %c0_i32, %c0_i32_0 : i32, i32
  }
  func.func @transform_16(%arg0: i32) -> (i32, i32) {
    %c0_i32 = arith.constant 0 : i32
    %c0_i32_0 = arith.constant 0 : i32
    %c0_i32_1 = arith.constant 0 : i32
    return %c0_i32, %c0_i32_0 : i32, i32
  }
  func.func @transform_17(%arg0: i32) -> (i32, i32) {
    %c0_i32 = arith.constant 0 : i32
    %c0_i32_0 = arith.constant 0 : i32
    %c0_i32_1 = arith.constant 0 : i32
    return %c0_i32, %c0_i32_0 : i32, i32
  }
  func.func @transform_18(%arg0: i32) -> (i32, i32) {
    %c0_i32 = arith.constant 0 : i32
    %c0_i32_0 = arith.constant 0 : i32
    %c0_i32_1 = arith.constant 0 : i32
    return %c0_i32, %c0_i32_0 : i32, i32
  }
  func.func @transform_19(%arg0: i32) -> (i32, i32) {
    %c0_i32 = arith.constant 0 : i32
    %c0_i32_0 = arith.constant 0 : i32
    %c0_i32_1 = arith.constant 0 : i32
    return %c0_i32, %c0_i32_0 : i32, i32
  }
  func.func @transform_20(%arg0: i32) -> (i32, i32) {
    %c0_i32 = arith.constant 0 : i32
    %c0_i32_0 = arith.constant 0 : i32
    %c0_i32_1 = arith.constant 0 : i32
    return %c0_i32, %c0_i32_0 : i32, i32
  }
  func.func @transform_21(%arg0: i32) -> (i32, i32) {
    %c0_i32 = arith.constant 0 : i32
    %c0_i32_0 = arith.constant 0 : i32
    %c0_i32_1 = arith.constant 0 : i32
    return %c0_i32, %c0_i32_0 : i32, i32
  }
  func.func @transform_22(%arg0: i32) -> (i32, i32) {
    %c0_i32 = arith.constant 0 : i32
    %c0_i32_0 = arith.constant 0 : i32
    %c0_i32_1 = arith.constant 0 : i32
    return %c0_i32, %c0_i32_0 : i32, i32
  }
  func.func @transform_23(%arg0: i32) -> (i32, i32) {
    %c0_i32 = arith.constant 0 : i32
    %c0_i32_0 = arith.constant 0 : i32
    %c0_i32_1 = arith.constant 0 : i32
    return %c0_i32, %c0_i32_0 : i32, i32
  }
  func.func @transform_24(%arg0: i32) -> (i32, i32) {
    %c0_i32 = arith.constant 0 : i32
    %c0_i32_0 = arith.constant 0 : i32
    %c0_i32_1 = arith.constant 0 : i32
    return %c0_i32, %c0_i32_0 : i32, i32
  }
  func.func @transform_25(%arg0: i32) -> (i32, i32) {
    %c0_i32 = arith.constant 0 : i32
    %c0_i32_0 = arith.constant 0 : i32
    %c0_i32_1 = arith.constant 0 : i32
    return %c0_i32, %c0_i32_0 : i32, i32
  }
  func.func @transform_26(%arg0: i32) -> (i32, i32) {
    %c0_i32 = arith.constant 0 : i32
    %c0_i32_0 = arith.constant 0 : i32
    %c0_i32_1 = arith.constant 0 : i32
    return %c0_i32, %c0_i32_0 : i32, i32
  }
  func.func @transform_27(%arg0: i32) -> (i32, i32) {
    %c0_i32 = arith.constant 0 : i32
    %c0_i32_0 = arith.constant 0 : i32
    %c0_i32_1 = arith.constant 0 : i32
    return %c0_i32, %c0_i32_0 : i32, i32
  }
  func.func @transform_28(%arg0: i32) -> (i32, i32) {
    %c0_i32 = arith.constant 0 : i32
    %c0_i32_0 = arith.constant 0 : i32
    %c0_i32_1 = arith.constant 0 : i32
    return %c0_i32, %c0_i32_0 : i32, i32
  }
  func.func @transform_29(%arg0: i32) -> (i32, i32) {
    %c0_i32 = arith.constant 0 : i32
    %c0_i32_0 = arith.constant 0 : i32
    %c0_i32_1 = arith.constant 0 : i32
    return %c0_i32, %c0_i32_0 : i32, i32
  }
  func.func @transform_30(%arg0: i32) -> (i32, i32) {
    %c0_i32 = arith.constant 0 : i32
    %c0_i32_0 = arith.constant 0 : i32
    %c0_i32_1 = arith.constant 0 : i32
    return %c0_i32, %c0_i32_0 : i32, i32
  }
  func.func @transform_31(%arg0: i32) -> (i32, i32) {
    %c0_i32 = arith.constant 0 : i32
    %c0_i32_0 = arith.constant 0 : i32
    %c0_i32_1 = arith.constant 0 : i32
    return %c0_i32, %c0_i32_0 : i32, i32
  }
  func.func @transform_32(%arg0: i32) -> (i32, i32) {
    %c0_i32 = arith.constant 0 : i32
    %c0_i32_0 = arith.constant 0 : i32
    %c0_i32_1 = arith.constant 0 : i32
    return %c0_i32, %c0_i32_0 : i32, i32
  }
  func.func @transform_33(%arg0: i32) -> (i32, i32) {
    %c0_i32 = arith.constant 0 : i32
    %c0_i32_0 = arith.constant 0 : i32
    %c0_i32_1 = arith.constant 0 : i32
    return %c0_i32, %c0_i32_0 : i32, i32
  }
  func.func @transform_34(%arg0: i32) -> (i32, i32) {
    %c0_i32 = arith.constant 0 : i32
    %c0_i32_0 = arith.constant 0 : i32
    %c0_i32_1 = arith.constant 0 : i32
    return %c0_i32, %c0_i32_0 : i32, i32
  }
  func.func @transform_35(%arg0: i32) -> (i32, i32) {
    %c0_i32 = arith.constant 0 : i32
    %c0_i32_0 = arith.constant 0 : i32
    %c0_i32_1 = arith.constant 0 : i32
    return %c0_i32, %c0_i32_0 : i32, i32
  }
  func.func @transform_36(%arg0: i32) -> (i32, i32) {
    %c0_i32 = arith.constant 0 : i32
    %c0_i32_0 = arith.constant 0 : i32
    %c0_i32_1 = arith.constant 0 : i32
    return %c0_i32, %c0_i32_0 : i32, i32
  }
  func.func @transform_37(%arg0: i32) -> (i32, i32) {
    %c0_i32 = arith.constant 0 : i32
    %c0_i32_0 = arith.constant 0 : i32
    return %arg0, %c0_i32 : i32, i32
  }
}

</mosaic_0001>

<llo_original>
// kernel: ase_forward.1
$region0: #{ase_forward.1}
  #allocation0 [shape = 'u32[]', space=smem, size = 0x4, offset = 0x4, fixed_abs, tag = 'smem constant byte address 0x4 - core index']
  #allocation1 [shape = 'u32[72,128]{1,0:T(1,128)}', space=vmem, size = 0x9000, scoped, tag = 'internal scratch']
  %s0 = inlined_call_operand.smem [shape: u32[38], index: -1, kind: input, shape index: {}]
  %s1 = sld [smem:[%s0]]
  %s2 = scalar_lea.smem %s0, 1
  %s3 = sld [smem:[%s2]]
  %s4 = scalar_lea.smem %s0, 2
  %s5 = sld [smem:[%s4]]
  %s6 = scalar_lea.smem %s0, 3
  %s7 = sld [smem:[%s6]]
  %s8 = scalar_lea.smem %s0, 4
  %s9 = sld [smem:[%s8]]
  %s10 = scalar_lea.smem %s0, 5
  %s11 = sld [smem:[%s10]]
  %s12 = scalar_lea.smem %s0, 6
  %s13 = sld [smem:[%s12]]
  %s14 = scalar_lea.smem %s0, 7
  %s15 = sld [smem:[%s14]]
  %s16 = scalar_lea.smem %s0, 8
  %s17 = sld [smem:[%s16]]
  %s18 = scalar_lea.smem %s0, 9
  %s19 = sld [smem:[%s18]]
  %s20 = scalar_lea.smem %s0, 10
  %s21 = sld [smem:[%s20]]
  %s22 = scalar_lea.smem %s0, 11
  %s23 = sld [smem:[%s22]]
  %s24 = scalar_lea.smem %s0, 12
  %s25 = sld [smem:[%s24]]
  %s26 = scalar_lea.smem %s0, 13
  %s27 = sld [smem:[%s26]]
  %s28 = scalar_lea.smem %s0, 14
  %s29 = sld [smem:[%s28]]
  %s30 = scalar_lea.smem %s0, 15
  %s31 = sld [smem:[%s30]]
  %s32 = scalar_lea.smem %s0, 16
  %s33 = sld [smem:[%s32]]
  %s34 = scalar_lea.smem %s0, 17
  %s35 = sld [smem:[%s34]]
  %s36 = scalar_lea.smem %s0, 18
  %s37 = sld [smem:[%s36]]
  %s38 = scalar_lea.smem %s0, 19
  %s39 = sld [smem:[%s38]]
  %s40 = scalar_lea.smem %s0, 20
  %s41 = sld [smem:[%s40]]
  %s42 = scalar_lea.smem %s0, 21
  %s43 = sld [smem:[%s42]]
  %s44 = scalar_lea.smem %s0, 22
  %s45 = sld [smem:[%s44]]
  %s46 = scalar_lea.smem %s0, 23
  %s47 = sld [smem:[%s46]]
  %s48 = scalar_lea.smem %s0, 24
  %s49 = sld [smem:[%s48]]
  %s50 = scalar_lea.smem %s0, 25
  %s51 = sld [smem:[%s50]]
  %s52 = scalar_lea.smem %s0, 26
  %s53 = sld [smem:[%s52]]
  %s54 = scalar_lea.smem %s0, 27
  %s55 = sld [smem:[%s54]]
  %s56 = scalar_lea.smem %s0, 28
  %s57 = sld [smem:[%s56]]
  %s58 = scalar_lea.smem %s0, 29
  %s59 = sld [smem:[%s58]]
  %s60 = scalar_lea.smem %s0, 30
  %s61 = sld [smem:[%s60]]
  %s62 = scalar_lea.smem %s0, 31
  %s63 = sld [smem:[%s62]]
  %s64 = scalar_lea.smem %s0, 32
  %s65 = sld [smem:[%s64]]
  %s66 = scalar_lea.smem %s0, 33
  %s67 = sld [smem:[%s66]]
  %s68 = scalar_lea.smem %s0, 34
  %s69 = sld [smem:[%s68]]
  %s70 = scalar_lea.smem %s0, 35
  %s71 = sld [smem:[%s70]]
  %s72 = scalar_lea.smem %s0, 36
  %s73 = sld [smem:[%s72]]
  %s74 = scalar_lea.smem %s0, 37
  %s75 = sld [smem:[%s74]]
  %s76 = sld [smem:[#allocation0]]
  $region273: #{ase_forward.1} parent=0
    _
  %s78 = ssub.s32 1, %s76
  %s79 = scalar_select 0, %s78, %s76
  $region1: #{ase_forward.1} parent=0
    #allocation2 [shape = 'u8[8192]{0}', space=vmem, size = 0x2000, scoped, tag = 'input window, operand 6, single buffered']
    #allocation3 [shape = 's32[2]{0}', space=sflag, size = 0x8, scoped, tag = 'scoped memory for ase_forward.1']
    #allocation4 [shape = 'u8[512]{0}', space=vmem, size = 0x400, scoped, tag = 'input window, operand 7, single buffered']
    #allocation5 [shape = 's32[1]{0}', space=sflag, size = 0x4, scoped, tag = 'scoped memory for ase_forward.1']
    #allocation6 [shape = 'u8[512]{0}', space=vmem, size = 0x400, scoped, tag = 'input window, operand 9, single buffered']
    #allocation7 [shape = 'u8[6144]{0}', space=vmem, size = 0x1800, scoped, tag = 'input window, operand 10, single buffered']
    #allocation8 [shape = 's32[1]{0}', space=sflag, size = 0x4, scoped, tag = 'scoped memory for ase_forward.1']
    #allocation9 [shape = 'u8[4096]{0}', space=vmem, size = 0x1000, scoped, tag = 'input window, operand 11, single buffered']
    #allocation10 [shape = 'u8[512]{0}', space=vmem, size = 0x400, scoped, tag = 'input window, operand 12, single buffered']
    #allocation11 [shape = 's32[1]{0}', space=sflag, size = 0x4, scoped, tag = 'scoped memory for ase_forward.1']
    #allocation12 [shape = 'u8[512]{0}', space=vmem, size = 0x400, scoped, tag = 'input window, operand 14, single buffered']
    #allocation13 [shape = 'u8[512]{0}', space=vmem, size = 0x400, scoped, tag = 'input window, operand 16, single buffered']
    #allocation14 [shape = 's32[1]{0}', space=sflag, size = 0x4, scoped, tag = 'scoped memory for ase_forward.1']
    #allocation15 [shape = 'u8[8192]{0}', space=vmem, size = 0x2000, scoped, tag = 'input window, operand 17, single buffered']
    #allocation16 [shape = 'u8[4096]{0}', space=vmem, size = 0x1000, scoped, tag = 'input window, operand 18, single buffered']
    #allocation17 [shape = 's32[1]{0}', space=sflag, size = 0x4, scoped, tag = 'scoped memory for ase_forward.1']
    #allocation18 [shape = 'u8[512]{0}', space=vmem, size = 0x400, scoped, tag = 'input window, operand 19, single buffered']
    #allocation19 [shape = 'u8[512]{0}', space=vmem, size = 0x400, scoped, tag = 'input window, operand 21, single buffered']
    #allocation20 [shape = 's32[1]{0}', space=sflag, size = 0x4, scoped, tag = 'scoped memory for ase_forward.1']
    #allocation21 [shape = 'u8[512]{0}', space=vmem, size = 0x400, scoped, tag = 'input window, operand 23, single buffered']
    #allocation22 [shape = 'u8[8192]{0}', space=vmem, size = 0x2000, scoped, tag = 'input window, operand 24, single buffered']
    #allocation23 [shape = 's32[1]{0}', space=sflag, size = 0x4, scoped, tag = 'scoped memory for ase_forward.1']
    #allocation24 [shape = 'u8[512]{0}', space=vmem, size = 0x400, scoped, tag = 'input window, operand 25, single buffered']
    #allocation25 [shape = 'u8[512]{0}', space=vmem, size = 0x400, scoped, tag = 'input window, operand 27, single buffered']
    #allocation26 [shape = 's32[1]{0}', space=sflag, size = 0x4, scoped, tag = 'scoped memory for ase_forward.1']
    #allocation27 [shape = 'u8[512]{0}', space=vmem, size = 0x400, scoped, tag = 'input window, operand 29, single buffered']
    #allocation28 [shape = 'u8[512]{0}', space=vmem, size = 0x400, scoped, tag = 'input window, operand 31, single buffered']
    #allocation29 [shape = 's32[1]{0}', space=sflag, size = 0x4, scoped, tag = 'scoped memory for ase_forward.1']
    #allocation30 [shape = 'u8[8192]{0}', space=vmem, size = 0x2000, scoped, tag = 'input window, operand 32, single buffered']
    #allocation31 [shape = 'u8[8192]{0}', space=vmem, size = 0x2000, scoped, tag = 'input window, operand 33, single buffered']
    #allocation32 [shape = 's32[1]{0}', space=sflag, size = 0x4, scoped, tag = 'scoped memory for ase_forward.1']
    #allocation33 [shape = 'u8[8192]{0}', space=vmem, size = 0x2000, scoped, tag = 'input window, operand 34, single buffered']
    #allocation34 [shape = 'u8[8192]{0}', space=vmem, size = 0x2000, scoped, tag = 'input window, operand 35, single buffered']
    #allocation35 [shape = 's32[1]{0}', space=sflag, size = 0x4, scoped, tag = 'scoped memory for ase_forward.1']
    #allocation36 [shape = 'u8[512]{0}', space=vmem, size = 0x400, scoped, tag = 'input window, operand 36, single buffered']
    %80 = vsyncpa [#allocation3], 0
    %81 = vsyncpa [#allocation5], 0
    %82 = vsyncpa [#allocation8], 0
    %83 = vsyncpa [#allocation11], 0
    %84 = vsyncpa [#allocation14], 0
    %85 = vsyncpa [#allocation17], 0
    %86 = vsyncpa [#allocation20], 0
    %87 = vsyncpa [#allocation23], 0
    %88 = vsyncpa [#allocation26], 0
    %89 = vsyncpa [#allocation29], 0
    %90 = vsyncpa [#allocation32], 0
    %91 = vsyncpa [#allocation35], 0
    loop: start=0, step=1, limit=4
    $region2: #{ase_forward.1} parent=1 // loop_pre_header
      _
    $region3: #{ase_forward.1} parent=1 // loop_header
      %s93 = sphi 0, %s97
      %p94 = scmp.ge.s32.totalorder %s93, 4
      %s103 = sphi 0, %s105
      %s106 = sphi 0, %s103
      %s107 = sphi 0, %s106
      %s123 = sphi 0, %s107
      %s129 = sphi 0, %s131
      %s132 = sphi 0, %s129
      %s133 = sphi 0, %s132
      %s149 = sphi 0, %s133
      %s155 = sphi 0, %s157
      %s158 = sphi 0, %s155
      %s159 = sphi 0, %s158
      %s175 = sphi 0, %s159
      %s181 = sphi 0, %s183
      %s184 = sphi 0, %s181
      %s185 = sphi 0, %s184
      %s201 = sphi 0, %s185
      %s205 = sphi 0, %s205
      %s207 = sphi 0, %s205
      %s208 = sphi 0, %s207
      %s222 = sphi 0, %s208
      %s226 = sphi 0, %s226
      %s228 = sphi 0, %s226
      %s229 = sphi 0, %s228
      %s243 = sphi 0, %s229
      %s247 = sphi 0, %s247
      %s249 = sphi 0, %s247
      %s250 = sphi 0, %s249
      %s264 = sphi 0, %s250
      %s268 = sphi 0, %s268
      %s270 = sphi 0, %s268
      %s271 = sphi 0, %s270
      %s285 = sphi 0, %s271
      %s289 = sphi 0, %s289
      %s291 = sphi 0, %s289
      %s292 = sphi 0, %s291
      %s306 = sphi 0, %s292
      %s310 = sphi 0, %s310
      %s312 = sphi 0, %s310
      %s313 = sphi 0, %s312
      %s327 = sphi 0, %s313
      %s331 = sphi 0, %s331
      %s333 = sphi 0, %s331
      %s334 = sphi 0, %s333
      %s348 = sphi 0, %s334
      %s352 = sphi 0, %s352
      %s354 = sphi 0, %s352
      %s355 = sphi 0, %s354
      %s369 = sphi 0, %s355
      %s373 = sphi 0, %s373
      %s375 = sphi 0, %s373
      %s376 = sphi 0, %s375
      %s390 = sphi 0, %s376
      %s394 = sphi 0, %s394
      %s396 = sphi 0, %s394
      %s397 = sphi 0, %s396
      %s411 = sphi 0, %s397
      %s415 = sphi 0, %s415
      %s417 = sphi 0, %s415
      %s418 = sphi 0, %s417
      %s432 = sphi 0, %s418
      %s436 = sphi 0, %s436
      %s438 = sphi 0, %s436
      %s439 = sphi 0, %s438
      %s453 = sphi 0, %s439
      %s457 = sphi 0, %s457
      %s459 = sphi 0, %s457
      %s460 = sphi 0, %s459
      %s474 = sphi 0, %s460
      %s478 = sphi 0, %s478
      %s480 = sphi 0, %s478
      %s481 = sphi 0, %s480
      %s495 = sphi 0, %s481
      %s499 = sphi 0, %s499
      %s501 = sphi 0, %s499
      %s502 = sphi 0, %s501
      %s516 = sphi 0, %s502
      %s520 = sphi 0, %s520
      %s522 = sphi 0, %s520
      %s523 = sphi 0, %s522
      %s537 = sphi 0, %s523
      %s541 = sphi 0, %s541
      %s543 = sphi 0, %s541
      %s544 = sphi 0, %s543
      %s558 = sphi 0, %s544
      %s562 = sphi 0, %s562
      %s564 = sphi 0, %s562
      %s565 = sphi 0, %s564
      %s579 = sphi 0, %s565
      %s583 = sphi 0, %s583
      %s585 = sphi 0, %s583
      %s586 = sphi 0, %s585
      %s600 = sphi 0, %s586
      %s604 = sphi 0, %s604
      %s606 = sphi 0, %s604
      %s607 = sphi 0, %s606
      %s621 = sphi 0, %s607
      %s625 = sphi 0, %s625
      %s627 = sphi 0, %s625
      %s628 = sphi 0, %s627
      %s642 = sphi 0, %s628
      %s646 = sphi 0, %s646
      %s648 = sphi 0, %s646
      %s649 = sphi 0, %s648
      %s663 = sphi 0, %s649
      %s667 = sphi 0, %s667
      %s669 = sphi 0, %s667
      %s670 = sphi 0, %s669
      %s684 = sphi 0, %s670
      %s688 = sphi 0, %s688
      %s690 = sphi 0, %s688
      %s691 = sphi 0, %s690
      %s705 = sphi 0, %s691
      %s709 = sphi 0, %s709
      %s711 = sphi 0, %s709
      %s712 = sphi 0, %s711
      %s726 = sphi 0, %s712
      %s730 = sphi 0, %s730
      %s732 = sphi 0, %s730
      %s733 = sphi 0, %s732
      %s747 = sphi 0, %s733
      %s751 = sphi 0, %s751
      %s753 = sphi 0, %s751
      %s754 = sphi 0, %s753
      %s768 = sphi 0, %s754
      %s772 = sphi 0, %s772
      %s774 = sphi 0, %s772
      %s775 = sphi 0, %s774
      %s789 = sphi 0, %s775
      %s793 = sphi 0, %s793
      %s795 = sphi 0, %s793
      %s796 = sphi 0, %s795
      %s810 = sphi 0, %s796
      %s814 = sphi 0, %s814
      %s816 = sphi 0, %s814
      %s817 = sphi 0, %s816
      %s831 = sphi 0, %s817
      %s835 = sphi 0, %s835
      %s837 = sphi 0, %s835
      %s838 = sphi 0, %s837
      %s852 = sphi 0, %s838
      %s856 = sphi 0, %s856
      %s858 = sphi 0, %s856
      %s859 = sphi 0, %s858
      %s873 = sphi 0, %s859
      %s877 = sphi 0, %s877
      %s879 = sphi 0, %s877
      %s880 = sphi 0, %s879
      %s894 = sphi 0, %s880
      %s900 = sphi 0, %s902
      %s903 = sphi 0, %s900
      %s904 = sphi 0, %s903
      %s920 = sphi 0, %s904
    $region4: #{ase_forward.1} parent=1 // loop_header_branch
      %96 = sbr.rel (%p94) target = $region8
    $region5: #{ase_forward.1} parent=1 // loop_body
      %s98 = ssub.s32 %s93, 1
      %s99 = ssub.s32 %s93, 2
      %s100 = sadd.s32 %s93, 1
      %s101 = ssub.s32 %s93, %s100
      %p102 = scmp.eq.s32.totalorder %s101, 0
      %s104 = sadd.s32 %s103, 1
      %s105 = scalar_select %p102, %s103, %s104
      %p108 = pneg %p102
      %p109 = scmp.eq.s32.totalorder %s93, 1
      %p110 = por %p108, %p109
      %p111 = scmp.ne.s32.totalorder %s103, %s106
      %p112 = scmp.eq.s32.totalorder %s93, 0
      %p113 = por %p111, %p112
      %p114 = scmp.ne.s32.totalorder %s103, %s106
      %p115 = scmp.eq.s32.totalorder %s98, 1
      %p116 = por %p114, %p115
      %p117 = scmp.ne.s32.totalorder %s106, %s107
      %p118 = scmp.eq.s32.totalorder %s98, 0
      %p119 = por %p117, %p118
      %p120 = scmp.ne.s32.totalorder %s106, %s107
      %p121 = scmp.eq.s32.totalorder %s99, 1
      %p122 = por %p120, %p121
      %p124 = scmp.ne.s32.totalorder %s107, %s123
      %p125 = scmp.eq.s32.totalorder %s99, 0
      %p126 = por %p124, %p125
      %s127 = ssub.s32 %s93, %s100
      %p128 = scmp.eq.s32.totalorder %s127, 0
      %s130 = sadd.s32 %s129, 1
      %s131 = scalar_select %p128, %s129, %s130
      %p134 = pneg %p128
      %p135 = scmp.eq.s32.totalorder %s93, 1
      %p136 = por %p134, %p135
      %p137 = scmp.ne.s32.totalorder %s129, %s132
      %p138 = scmp.eq.s32.totalorder %s93, 0
      %p139 = por %p137, %p138
      %p140 = scmp.ne.s32.totalorder %s129, %s132
      %p141 = scmp.eq.s32.totalorder %s98, 1
      %p142 = por %p140, %p141
      %p143 = scmp.ne.s32.totalorder %s132, %s133
      %p144 = scmp.eq.s32.totalorder %s98, 0
      %p145 = por %p143, %p144
      %p146 = scmp.ne.s32.totalorder %s132, %s133
      %p147 = scmp.eq.s32.totalorder %s99, 1
      %p148 = por %p146, %p147
      %p150 = scmp.ne.s32.totalorder %s133, %s149
      %p151 = scmp.eq.s32.totalorder %s99, 0
      %p152 = por %p150, %p151
      %s153 = ssub.s32 %s93, %s100
      %p154 = scmp.eq.s32.totalorder %s153, 0
      %s156 = sadd.s32 %s155, 1
      %s157 = scalar_select %p154, %s155, %s156
      %p160 = pneg %p154
      %p161 = scmp.eq.s32.totalorder %s93, 1
      %p162 = por %p160, %p161
      %p163 = scmp.ne.s32.totalorder %s155, %s158
      %p164 = scmp.eq.s32.totalorder %s93, 0
      %p165 = por %p163, %p164
      %p166 = scmp.ne.s32.totalorder %s155, %s158
      %p167 = scmp.eq.s32.totalorder %s98, 1
      %p168 = por %p166, %p167
      %p169 = scmp.ne.s32.totalorder %s158, %s159
      %p170 = scmp.eq.s32.totalorder %s98, 0
      %p171 = por %p169, %p170
      %p172 = scmp.ne.s32.totalorder %s158, %s159
      %p173 = scmp.eq.s32.totalorder %s99, 1
      %p174 = por %p172, %p173
      %p176 = scmp.ne.s32.totalorder %s159, %s175
      %p177 = scmp.eq.s32.totalorder %s99, 0
      %p178 = por %p176, %p177
      %s179 = ssub.s32 %s93, %s100
      %p180 = scmp.eq.s32.totalorder %s179, 0
      %s182 = sadd.s32 %s181, 1
      %s183 = scalar_select %p180, %s181, %s182
      %p186 = pneg %p180
      %p187 = scmp.eq.s32.totalorder %s93, 1
      %p188 = por %p186, %p187
      %p189 = scmp.ne.s32.totalorder %s181, %s184
      %p190 = scmp.eq.s32.totalorder %s93, 0
      %p191 = por %p189, %p190
      %p192 = scmp.ne.s32.totalorder %s181, %s184
      %p193 = scmp.eq.s32.totalorder %s98, 1
      %p194 = por %p192, %p193
      %p195 = scmp.ne.s32.totalorder %s184, %s185
      %p196 = scmp.eq.s32.totalorder %s98, 0
      %p197 = por %p195, %p196
      %p198 = scmp.ne.s32.totalorder %s184, %s185
      %p199 = scmp.eq.s32.totalorder %s99, 1
      %p200 = por %p198, %p199
      %p202 = scmp.ne.s32.totalorder %s185, %s201
      %p203 = scmp.eq.s32.totalorder %s99, 0
      %p204 = por %p202, %p203
      %s206 = sadd.s32 %s205, 1
      %p209 = scmp.eq.s32.totalorder %s93, 1
      %p210 = scmp.ne.s32.totalorder %s205, %s207
      %p211 = scmp.eq.s32.totalorder %s93, 0
      %p212 = por %p210, %p211
      %p213 = scmp.ne.s32.totalorder %s205, %s207
      %p214 = scmp.eq.s32.totalorder %s98, 1
      %p215 = por %p213, %p214
      %p216 = scmp.ne.s32.totalorder %s207, %s208
      %p217 = scmp.eq.s32.totalorder %s98, 0
      %p218 = por %p216, %p217
      %p219 = scmp.ne.s32.totalorder %s207, %s208
      %p220 = scmp.eq.s32.totalorder %s99, 1
      %p221 = por %p219, %p220
      %p223 = scmp.ne.s32.totalorder %s208, %s222
      %p224 = scmp.eq.s32.totalorder %s99, 0
      %p225 = por %p223, %p224
      %s227 = sadd.s32 %s226, 1
      %p230 = scmp.eq.s32.totalorder %s93, 1
      %p231 = scmp.ne.s32.totalorder %s226, %s228
      %p232 = scmp.eq.s32.totalorder %s93, 0
      %p233 = por %p231, %p232
      %p234 = scmp.ne.s32.totalorder %s226, %s228
      %p235 = scmp.eq.s32.totalorder %s98, 1
      %p236 = por %p234, %p235
      %p237 = scmp.ne.s32.totalorder %s228, %s229
      %p238 = scmp.eq.s32.totalorder %s98, 0
      %p239 = por %p237, %p238
      %p240 = scmp.ne.s32.totalorder %s228, %s229
      %p241 = scmp.eq.s32.totalorder %s99, 1
      %p242 = por %p240, %p241
      %p244 = scmp.ne.s32.totalorder %s229, %s243
      %p245 = scmp.eq.s32.totalorder %s99, 0
      %p246 = por %p244, %p245
      %s248 = sadd.s32 %s247, 1
      %p251 = scmp.eq.s32.totalorder %s93, 1
      %p252 = scmp.ne.s32.totalorder %s247, %s249
      %p253 = scmp.eq.s32.totalorder %s93, 0
      %p254 = por %p252, %p253
      %p255 = scmp.ne.s32.totalorder %s247, %s249
      %p256 = scmp.eq.s32.totalorder %s98, 1
      %p257 = por %p255, %p256
      %p258 = scmp.ne.s32.totalorder %s249, %s250
      %p259 = scmp.eq.s32.totalorder %s98, 0
      %p260 = por %p258, %p259
      %p261 = scmp.ne.s32.totalorder %s249, %s250
      %p262 = scmp.eq.s32.totalorder %s99, 1
      %p263 = por %p261, %p262
      %p265 = scmp.ne.s32.totalorder %s250, %s264
      %p266 = scmp.eq.s32.totalorder %s99, 0
      %p267 = por %p265, %p266
      %s269 = sadd.s32 %s268, 1
      %p272 = scmp.eq.s32.totalorder %s93, 1
      %p273 = scmp.ne.s32.totalorder %s268, %s270
      %p274 = scmp.eq.s32.totalorder %s93, 0
      %p275 = por %p273, %p274
      %p276 = scmp.ne.s32.totalorder %s268, %s270
      %p277 = scmp.eq.s32.totalorder %s98, 1
      %p278 = por %p276, %p277
      %p279 = scmp.ne.s32.totalorder %s270, %s271
      %p280 = scmp.eq.s32.totalorder %s98, 0
      %p281 = por %p279, %p280
      %p282 = scmp.ne.s32.totalorder %s270, %s271
      %p283 = scmp.eq.s32.totalorder %s99, 1
      %p284 = por %p282, %p283
      %p286 = scmp.ne.s32.totalorder %s271, %s285
      %p287 = scmp.eq.s32.totalorder %s99, 0
      %p288 = por %p286, %p287
      %s290 = sadd.s32 %s289, 1
      %p293 = scmp.eq.s32.totalorder %s93, 1
      %p294 = scmp.ne.s32.totalorder %s289, %s291
      %p295 = scmp.eq.s32.totalorder %s93, 0
      %p296 = por %p294, %p295
      %p297 = scmp.ne.s32.totalorder %s289, %s291
      %p298 = scmp.eq.s32.totalorder %s98, 1
      %p299 = por %p297, %p298
      %p300 = scmp.ne.s32.totalorder %s291, %s292
      %p301 = scmp.eq.s32.totalorder %s98, 0
      %p302 = por %p300, %p301
      %p303 = scmp.ne.s32.totalorder %s291, %s292
      %p304 = scmp.eq.s32.totalorder %s99, 1
      %p305 = por %p303, %p304
      %p307 = scmp.ne.s32.totalorder %s292, %s306
      %p308 = scmp.eq.s32.totalorder %s99, 0
      %p309 = por %p307, %p308
      %s311 = sadd.s32 %s310, 1
      %p314 = scmp.eq.s32.totalorder %s93, 1
      %p315 = scmp.ne.s32.totalorder %s310, %s312
      %p316 = scmp.eq.s32.totalorder %s93, 0
      %p317 = por %p315, %p316
      %p318 = scmp.ne.s32.totalorder %s310, %s312
      %p319 = scmp.eq.s32.totalorder %s98, 1
      %p320 = por %p318, %p319
      %p321 = scmp.ne.s32.totalorder %s312, %s313
      %p322 = scmp.eq.s32.totalorder %s98, 0
      %p323 = por %p321, %p322
      %p324 = scmp.ne.s32.totalorder %s312, %s313
      %p325 = scmp.eq.s32.totalorder %s99, 1
      %p326 = por %p324, %p325
      %p328 = scmp.ne.s32.totalorder %s313, %s327
      %p329 = scmp.eq.s32.totalorder %s99, 0
      %p330 = por %p328, %p329
      %s332 = sadd.s32 %s331, 1
      %p335 = scmp.eq.s32.totalorder %s93, 1
      %p336 = scmp.ne.s32.totalorder %s331, %s333
      %p337 = scmp.eq.s32.totalorder %s93, 0
      %p338 = por %p336, %p337
      %p339 = scmp.ne.s32.totalorder %s331, %s333
      %p340 = scmp.eq.s32.totalorder %s98, 1
      %p341 = por %p339, %p340
      %p342 = scmp.ne.s32.totalorder %s333, %s334
      %p343 = scmp.eq.s32.totalorder %s98, 0
      %p344 = por %p342, %p343
      %p345 = scmp.ne.s32.totalorder %s333, %s334
      %p346 = scmp.eq.s32.totalorder %s99, 1
      %p347 = por %p345, %p346
      %p349 = scmp.ne.s32.totalorder %s334, %s348
      %p350 = scmp.eq.s32.totalorder %s99, 0
      %p351 = por %p349, %p350
      %s353 = sadd.s32 %s352, 1
      %p356 = scmp.eq.s32.totalorder %s93, 1
      %p357 = scmp.ne.s32.totalorder %s352, %s354
      %p358 = scmp.eq.s32.totalorder %s93, 0
      %p359 = por %p357, %p358
      %p360 = scmp.ne.s32.totalorder %s352, %s354
      %p361 = scmp.eq.s32.totalorder %s98, 1
      %p362 = por %p360, %p361
      %p363 = scmp.ne.s32.totalorder %s354, %s355
      %p364 = scmp.eq.s32.totalorder %s98, 0
      %p365 = por %p363, %p364
      %p366 = scmp.ne.s32.totalorder %s354, %s355
      %p367 = scmp.eq.s32.totalorder %s99, 1
      %p368 = por %p366, %p367
      %p370 = scmp.ne.s32.totalorder %s355, %s369
      %p371 = scmp.eq.s32.totalorder %s99, 0
      %p372 = por %p370, %p371
      %s374 = sadd.s32 %s373, 1
      %p377 = scmp.eq.s32.totalorder %s93, 1
      %p378 = scmp.ne.s32.totalorder %s373, %s375
      %p379 = scmp.eq.s32.totalorder %s93, 0
      %p380 = por %p378, %p379
      %p381 = scmp.ne.s32.totalorder %s373, %s375
      %p382 = scmp.eq.s32.totalorder %s98, 1
      %p383 = por %p381, %p382
      %p384 = scmp.ne.s32.totalorder %s375, %s376
      %p385 = scmp.eq.s32.totalorder %s98, 0
      %p386 = por %p384, %p385
      %p387 = scmp.ne.s32.totalorder %s375, %s376
      %p388 = scmp.eq.s32.totalorder %s99, 1
      %p389 = por %p387, %p388
      %p391 = scmp.ne.s32.totalorder %s376, %s390
      %p392 = scmp.eq.s32.totalorder %s99, 0
      %p393 = por %p391, %p392
      %s395 = sadd.s32 %s394, 1
      %p398 = scmp.eq.s32.totalorder %s93, 1
      %p399 = scmp.ne.s32.totalorder %s394, %s396
      %p400 = scmp.eq.s32.totalorder %s93, 0
      %p401 = por %p399, %p400
      %p402 = scmp.ne.s32.totalorder %s394, %s396
      %p403 = scmp.eq.s32.totalorder %s98, 1
      %p404 = por %p402, %p403
      %p405 = scmp.ne.s32.totalorder %s396, %s397
      %p406 = scmp.eq.s32.totalorder %s98, 0
      %p407 = por %p405, %p406
      %p408 = scmp.ne.s32.totalorder %s396, %s397
      %p409 = scmp.eq.s32.totalorder %s99, 1
      %p410 = por %p408, %p409
      %p412 = scmp.ne.s32.totalorder %s397, %s411
      %p413 = scmp.eq.s32.totalorder %s99, 0
      %p414 = por %p412, %p413
      %s416 = sadd.s32 %s415, 1
      %p419 = scmp.eq.s32.totalorder %s93, 1
      %p420 = scmp.ne.s32.totalorder %s415, %s417
      %p421 = scmp.eq.s32.totalorder %s93, 0
      %p422 = por %p420, %p421
      %p423 = scmp.ne.s32.totalorder %s415, %s417
      %p424 = scmp.eq.s32.totalorder %s98, 1
      %p425 = por %p423, %p424
      %p426 = scmp.ne.s32.totalorder %s417, %s418
      %p427 = scmp.eq.s32.totalorder %s98, 0
      %p428 = por %p426, %p427
      %p429 = scmp.ne.s32.totalorder %s417, %s418
      %p430 = scmp.eq.s32.totalorder %s99, 1
      %p431 = por %p429, %p430
      %p433 = scmp.ne.s32.totalorder %s418, %s432
      %p434 = scmp.eq.s32.totalorder %s99, 0
      %p435 = por %p433, %p434
      %s437 = sadd.s32 %s436, 1
      %p440 = scmp.eq.s32.totalorder %s93, 1
      %p441 = scmp.ne.s32.totalorder %s436, %s438
      %p442 = scmp.eq.s32.totalorder %s93, 0
      %p443 = por %p441, %p442
      %p444 = scmp.ne.s32.totalorder %s436, %s438
      %p445 = scmp.eq.s32.totalorder %s98, 1
      %p446 = por %p444, %p445
      %p447 = scmp.ne.s32.totalorder %s438, %s439
      %p448 = scmp.eq.s32.totalorder %s98, 0
      %p449 = por %p447, %p448
      %p450 = scmp.ne.s32.totalorder %s438, %s439
      %p451 = scmp.eq.s32.totalorder %s99, 1
      %p452 = por %p450, %p451
      %p454 = scmp.ne.s32.totalorder %s439, %s453
      %p455 = scmp.eq.s32.totalorder %s99, 0
      %p456 = por %p454, %p455
      %s458 = sadd.s32 %s457, 1
      %p461 = scmp.eq.s32.totalorder %s93, 1
      %p462 = scmp.ne.s32.totalorder %s457, %s459
      %p463 = scmp.eq.s32.totalorder %s93, 0
      %p464 = por %p462, %p463
      %p465 = scmp.ne.s32.totalorder %s457, %s459
      %p466 = scmp.eq.s32.totalorder %s98, 1
      %p467 = por %p465, %p466
      %p468 = scmp.ne.s32.totalorder %s459, %s460
      %p469 = scmp.eq.s32.totalorder %s98, 0
      %p470 = por %p468, %p469
      %p471 = scmp.ne.s32.totalorder %s459, %s460
      %p472 = scmp.eq.s32.totalorder %s99, 1
      %p473 = por %p471, %p472
      %p475 = scmp.ne.s32.totalorder %s460, %s474
      %p476 = scmp.eq.s32.totalorder %s99, 0
      %p477 = por %p475, %p476
      %s479 = sadd.s32 %s478, 1
      %p482 = scmp.eq.s32.totalorder %s93, 1
      %p483 = scmp.ne.s32.totalorder %s478, %s480
      %p484 = scmp.eq.s32.totalorder %s93, 0
      %p485 = por %p483, %p484
      %p486 = scmp.ne.s32.totalorder %s478, %s480
      %p487 = scmp.eq.s32.totalorder %s98, 1
      %p488 = por %p486, %p487
      %p489 = scmp.ne.s32.totalorder %s480, %s481
      %p490 = scmp.eq.s32.totalorder %s98, 0
      %p491 = por %p489, %p490
      %p492 = scmp.ne.s32.totalorder %s480, %s481
      %p493 = scmp.eq.s32.totalorder %s99, 1
      %p494 = por %p492, %p493
      %p496 = scmp.ne.s32.totalorder %s481, %s495
      %p497 = scmp.eq.s32.totalorder %s99, 0
      %p498 = por %p496, %p497
      %s500 = sadd.s32 %s499, 1
      %p503 = scmp.eq.s32.totalorder %s93, 1
      %p504 = scmp.ne.s32.totalorder %s499, %s501
      %p505 = scmp.eq.s32.totalorder %s93, 0
      %p506 = por %p504, %p505
      %p507 = scmp.ne.s32.totalorder %s499, %s501
      %p508 = scmp.eq.s32.totalorder %s98, 1
      %p509 = por %p507, %p508
      %p510 = scmp.ne.s32.totalorder %s501, %s502
      %p511 = scmp.eq.s32.totalorder %s98, 0
      %p512 = por %p510, %p511
      %p513 = scmp.ne.s32.totalorder %s501, %s502
      %p514 = scmp.eq.s32.totalorder %s99, 1
      %p515 = por %p513, %p514
      %p517 = scmp.ne.s32.totalorder %s502, %s516
      %p518 = scmp.eq.s32.totalorder %s99, 0
      %p519 = por %p517, %p518
      %s521 = sadd.s32 %s520, 1
      %p524 = scmp.eq.s32.totalorder %s93, 1
      %p525 = scmp.ne.s32.totalorder %s520, %s522
      %p526 = scmp.eq.s32.totalorder %s93, 0
      %p527 = por %p525, %p526
      %p528 = scmp.ne.s32.totalorder %s520, %s522
      %p529 = scmp.eq.s32.totalorder %s98, 1
      %p530 = por %p528, %p529
      %p531 = scmp.ne.s32.totalorder %s522, %s523
      %p532 = scmp.eq.s32.totalorder %s98, 0
      %p533 = por %p531, %p532
      %p534 = scmp.ne.s32.totalorder %s522, %s523
      %p535 = scmp.eq.s32.totalorder %s99, 1
      %p536 = por %p534, %p535
      %p538 = scmp.ne.s32.totalorder %s523, %s537
      %p539 = scmp.eq.s32.totalorder %s99, 0
      %p540 = por %p538, %p539
      %s542 = sadd.s32 %s541, 1
      %p545 = scmp.eq.s32.totalorder %s93, 1
      %p546 = scmp.ne.s32.totalorder %s541, %s543
      %p547 = scmp.eq.s32.totalorder %s93, 0
      %p548 = por %p546, %p547
      %p549 = scmp.ne.s32.totalorder %s541, %s543
      %p550 = scmp.eq.s32.totalorder %s98, 1
      %p551 = por %p549, %p550
      %p552 = scmp.ne.s32.totalorder %s543, %s544
      %p553 = scmp.eq.s32.totalorder %s98, 0
      %p554 = por %p552, %p553
      %p555 = scmp.ne.s32.totalorder %s543, %s544
      %p556 = scmp.eq.s32.totalorder %s99, 1
      %p557 = por %p555, %p556
      %p559 = scmp.ne.s32.totalorder %s544, %s558
      %p560 = scmp.eq.s32.totalorder %s99, 0
      %p561 = por %p559, %p560
      %s563 = sadd.s32 %s562, 1
      %p566 = scmp.eq.s32.totalorder %s93, 1
      %p567 = scmp.ne.s32.totalorder %s562, %s564
      %p568 = scmp.eq.s32.totalorder %s93, 0
      %p569 = por %p567, %p568
      %p570 = scmp.ne.s32.totalorder %s562, %s564
      %p571 = scmp.eq.s32.totalorder %s98, 1
      %p572 = por %p570, %p571
      %p573 = scmp.ne.s32.totalorder %s564, %s565
      %p574 = scmp.eq.s32.totalorder %s98, 0
      %p575 = por %p573, %p574
      %p576 = scmp.ne.s32.totalorder %s564, %s565
      %p577 = scmp.eq.s32.totalorder %s99, 1
      %p578 = por %p576, %p577
      %p580 = scmp.ne.s32.totalorder %s565, %s579
      %p581 = scmp.eq.s32.totalorder %s99, 0
      %p582 = por %p580, %p581
      %s584 = sadd.s32 %s583, 1
      %p587 = scmp.eq.s32.totalorder %s93, 1
      %p588 = scmp.ne.s32.totalorder %s583, %s585
      %p589 = scmp.eq.s32.totalorder %s93, 0
      %p590 = por %p588, %p589
      %p591 = scmp.ne.s32.totalorder %s583, %s585
      %p592 = scmp.eq.s32.totalorder %s98, 1
      %p593 = por %p591, %p592
      %p594 = scmp.ne.s32.totalorder %s585, %s586
      %p595 = scmp.eq.s32.totalorder %s98, 0
      %p596 = por %p594, %p595
      %p597 = scmp.ne.s32.totalorder %s585, %s586
      %p598 = scmp.eq.s32.totalorder %s99, 1
      %p599 = por %p597, %p598
      %p601 = scmp.ne.s32.totalorder %s586, %s600
      %p602 = scmp.eq.s32.totalorder %s99, 0
      %p603 = por %p601, %p602
      %s605 = sadd.s32 %s604, 1
      %p608 = scmp.eq.s32.totalorder %s93, 1
      %p609 = scmp.ne.s32.totalorder %s604, %s606
      %p610 = scmp.eq.s32.totalorder %s93, 0
      %p611 = por %p609, %p610
      %p612 = scmp.ne.s32.totalorder %s604, %s606
      %p613 = scmp.eq.s32.totalorder %s98, 1
      %p614 = por %p612, %p613
      %p615 = scmp.ne.s32.totalorder %s606, %s607
      %p616 = scmp.eq.s32.totalorder %s98, 0
      %p617 = por %p615, %p616
      %p618 = scmp.ne.s32.totalorder %s606, %s607
      %p619 = scmp.eq.s32.totalorder %s99, 1
      %p620 = por %p618, %p619
      %p622 = scmp.ne.s32.totalorder %s607, %s621
      %p623 = scmp.eq.s32.totalorder %s99, 0
      %p624 = por %p622, %p623
      %s626 = sadd.s32 %s625, 1
      %p629 = scmp.eq.s32.totalorder %s93, 1
      %p630 = scmp.ne.s32.totalorder %s625, %s627
      %p631 = scmp.eq.s32.totalorder %s93, 0
      %p632 = por %p630, %p631
      %p633 = scmp.ne.s32.totalorder %s625, %s627
      %p634 = scmp.eq.s32.totalorder %s98, 1
      %p635 = por %p633, %p634
      %p636 = scmp.ne.s32.totalorder %s627, %s628
      %p637 = scmp.eq.s32.totalorder %s98, 0
      %p638 = por %p636, %p637
      %p639 = scmp.ne.s32.totalorder %s627, %s628
      %p640 = scmp.eq.s32.totalorder %s99, 1
      %p641 = por %p639, %p640
      %p643 = scmp.ne.s32.totalorder %s628, %s642
      %p644 = scmp.eq.s32.totalorder %s99, 0
      %p645 = por %p643, %p644
      %s647 = sadd.s32 %s646, 1
      %p650 = scmp.eq.s32.totalorder %s93, 1
      %p651 = scmp.ne.s32.totalorder %s646, %s648
      %p652 = scmp.eq.s32.totalorder %s93, 0
      %p653 = por %p651, %p652
      %p654 = scmp.ne.s32.totalorder %s646, %s648
      %p655 = scmp.eq.s32.totalorder %s98, 1
      %p656 = por %p654, %p655
      %p657 = scmp.ne.s32.totalorder %s648, %s649
      %p658 = scmp.eq.s32.totalorder %s98, 0
      %p659 = por %p657, %p658
      %p660 = scmp.ne.s32.totalorder %s648, %s649
      %p661 = scmp.eq.s32.totalorder %s99, 1
      %p662 = por %p660, %p661
      %p664 = scmp.ne.s32.totalorder %s649, %s663
      %p665 = scmp.eq.s32.totalorder %s99, 0
      %p666 = por %p664, %p665
      %s668 = sadd.s32 %s667, 1
      %p671 = scmp.eq.s32.totalorder %s93, 1
      %p672 = scmp.ne.s32.totalorder %s667, %s669
      %p673 = scmp.eq.s32.totalorder %s93, 0
      %p674 = por %p672, %p673
      %p675 = scmp.ne.s32.totalorder %s667, %s669
      %p676 = scmp.eq.s32.totalorder %s98, 1
      %p677 = por %p675, %p676
      %p678 = scmp.ne.s32.totalorder %s669, %s670
      %p679 = scmp.eq.s32.totalorder %s98, 0
      %p680 = por %p678, %p679
      %p681 = scmp.ne.s32.totalorder %s669, %s670
      %p682 = scmp.eq.s32.totalorder %s99, 1
      %p683 = por %p681, %p682
      %p685 = scmp.ne.s32.totalorder %s670, %s684
      %p686 = scmp.eq.s32.totalorder %s99, 0
      %p687 = por %p685, %p686
      %s689 = sadd.s32 %s688, 1
      %p692 = scmp.eq.s32.totalorder %s93, 1
      %p693 = scmp.ne.s32.totalorder %s688, %s690
      %p694 = scmp.eq.s32.totalorder %s93, 0
      %p695 = por %p693, %p694
      %p696 = scmp.ne.s32.totalorder %s688, %s690
      %p697 = scmp.eq.s32.totalorder %s98, 1
      %p698 = por %p696, %p697
      %p699 = scmp.ne.s32.totalorder %s690, %s691
      %p700 = scmp.eq.s32.totalorder %s98, 0
      %p701 = por %p699, %p700
      %p702 = scmp.ne.s32.totalorder %s690, %s691
      %p703 = scmp.eq.s32.totalorder %s99, 1
      %p704 = por %p702, %p703
      %p706 = scmp.ne.s32.totalorder %s691, %s705
      %p707 = scmp.eq.s32.totalorder %s99, 0
      %p708 = por %p706, %p707
      %s710 = sadd.s32 %s709, 1
      %p713 = scmp.eq.s32.totalorder %s93, 1
      %p714 = scmp.ne.s32.totalorder %s709, %s711
      %p715 = scmp.eq.s32.totalorder %s93, 0
      %p716 = por %p714, %p715
      %p717 = scmp.ne.s32.totalorder %s709, %s711
      %p718 = scmp.eq.s32.totalorder %s98, 1
      %p719 = por %p717, %p718
      %p720 = scmp.ne.s32.totalorder %s711, %s712
      %p721 = scmp.eq.s32.totalorder %s98, 0
      %p722 = por %p720, %p721
      %p723 = scmp.ne.s32.totalorder %s711, %s712
      %p724 = scmp.eq.s32.totalorder %s99, 1
      %p725 = por %p723, %p724
      %p727 = scmp.ne.s32.totalorder %s712, %s726
      %p728 = scmp.eq.s32.totalorder %s99, 0
      %p729 = por %p727, %p728
      %s731 = sadd.s32 %s730, 1
      %p734 = scmp.eq.s32.totalorder %s93, 1
      %p735 = scmp.ne.s32.totalorder %s730, %s732
      %p736 = scmp.eq.s32.totalorder %s93, 0
      %p737 = por %p735, %p736
      %p738 = scmp.ne.s32.totalorder %s730, %s732
      %p739 = scmp.eq.s32.totalorder %s98, 1
      %p740 = por %p738, %p739
      %p741 = scmp.ne.s32.totalorder %s732, %s733
      %p742 = scmp.eq.s32.totalorder %s98, 0
      %p743 = por %p741, %p742
      %p744 = scmp.ne.s32.totalorder %s732, %s733
      %p745 = scmp.eq.s32.totalorder %s99, 1
      %p746 = por %p744, %p745
      %p748 = scmp.ne.s32.totalorder %s733, %s747
      %p749 = scmp.eq.s32.totalorder %s99, 0
      %p750 = por %p748, %p749
      %s752 = sadd.s32 %s751, 1
      %p755 = scmp.eq.s32.totalorder %s93, 1
      %p756 = scmp.ne.s32.totalorder %s751, %s753
      %p757 = scmp.eq.s32.totalorder %s93, 0
      %p758 = por %p756, %p757
      %p759 = scmp.ne.s32.totalorder %s751, %s753
      %p760 = scmp.eq.s32.totalorder %s98, 1
      %p761 = por %p759, %p760
      %p762 = scmp.ne.s32.totalorder %s753, %s754
      %p763 = scmp.eq.s32.totalorder %s98, 0
      %p764 = por %p762, %p763
      %p765 = scmp.ne.s32.totalorder %s753, %s754
      %p766 = scmp.eq.s32.totalorder %s99, 1
      %p767 = por %p765, %p766
      %p769 = scmp.ne.s32.totalorder %s754, %s768
      %p770 = scmp.eq.s32.totalorder %s99, 0
      %p771 = por %p769, %p770
      %s773 = sadd.s32 %s772, 1
      %p776 = scmp.eq.s32.totalorder %s93, 1
      %p777 = scmp.ne.s32.totalorder %s772, %s774
      %p778 = scmp.eq.s32.totalorder %s93, 0
      %p779 = por %p777, %p778
      %p780 = scmp.ne.s32.totalorder %s772, %s774
      %p781 = scmp.eq.s32.totalorder %s98, 1
      %p782 = por %p780, %p781
      %p783 = scmp.ne.s32.totalorder %s774, %s775
      %p784 = scmp.eq.s32.totalorder %s98, 0
      %p785 = por %p783, %p784
      %p786 = scmp.ne.s32.totalorder %s774, %s775
      %p787 = scmp.eq.s32.totalorder %s99, 1
      %p788 = por %p786, %p787
      %p790 = scmp.ne.s32.totalorder %s775, %s789
      %p791 = scmp.eq.s32.totalorder %s99, 0
      %p792 = por %p790, %p791
      %s794 = sadd.s32 %s793, 1
      %p797 = scmp.eq.s32.totalorder %s93, 1
      %p798 = scmp.ne.s32.totalorder %s793, %s795
      %p799 = scmp.eq.s32.totalorder %s93, 0
      %p800 = por %p798, %p799
      %p801 = scmp.ne.s32.totalorder %s793, %s795
      %p802 = scmp.eq.s32.totalorder %s98, 1
      %p803 = por %p801, %p802
      %p804 = scmp.ne.s32.totalorder %s795, %s796
      %p805 = scmp.eq.s32.totalorder %s98, 0
      %p806 = por %p804, %p805
      %p807 = scmp.ne.s32.totalorder %s795, %s796
      %p808 = scmp.eq.s32.totalorder %s99, 1
      %p809 = por %p807, %p808
      %p811 = scmp.ne.s32.totalorder %s796, %s810
      %p812 = scmp.eq.s32.totalorder %s99, 0
      %p813 = por %p811, %p812
      %s815 = sadd.s32 %s814, 1
      %p818 = scmp.eq.s32.totalorder %s93, 1
      %p819 = scmp.ne.s32.totalorder %s814, %s816
      %p820 = scmp.eq.s32.totalorder %s93, 0
      %p821 = por %p819, %p820
      %p822 = scmp.ne.s32.totalorder %s814, %s816
      %p823 = scmp.eq.s32.totalorder %s98, 1
      %p824 = por %p822, %p823
      %p825 = scmp.ne.s32.totalorder %s816, %s817
      %p826 = scmp.eq.s32.totalorder %s98, 0
      %p827 = por %p825, %p826
      %p828 = scmp.ne.s32.totalorder %s816, %s817
      %p829 = scmp.eq.s32.totalorder %s99, 1
      %p830 = por %p828, %p829
      %p832 = scmp.ne.s32.totalorder %s817, %s831
      %p833 = scmp.eq.s32.totalorder %s99, 0
      %p834 = por %p832, %p833
      %s836 = sadd.s32 %s835, 1
      %p839 = scmp.eq.s32.totalorder %s93, 1
      %p840 = scmp.ne.s32.totalorder %s835, %s837
      %p841 = scmp.eq.s32.totalorder %s93, 0
      %p842 = por %p840, %p841
      %p843 = scmp.ne.s32.totalorder %s835, %s837
      %p844 = scmp.eq.s32.totalorder %s98, 1
      %p845 = por %p843, %p844
      %p846 = scmp.ne.s32.totalorder %s837, %s838
      %p847 = scmp.eq.s32.totalorder %s98, 0
      %p848 = por %p846, %p847
      %p849 = scmp.ne.s32.totalorder %s837, %s838
      %p850 = scmp.eq.s32.totalorder %s99, 1
      %p851 = por %p849, %p850
      %p853 = scmp.ne.s32.totalorder %s838, %s852
      %p854 = scmp.eq.s32.totalorder %s99, 0
      %p855 = por %p853, %p854
      %s857 = sadd.s32 %s856, 1
      %p860 = scmp.eq.s32.totalorder %s93, 1
      %p861 = scmp.ne.s32.totalorder %s856, %s858
      %p862 = scmp.eq.s32.totalorder %s93, 0
      %p863 = por %p861, %p862
      %p864 = scmp.ne.s32.totalorder %s856, %s858
      %p865 = scmp.eq.s32.totalorder %s98, 1
      %p866 = por %p864, %p865
      %p867 = scmp.ne.s32.totalorder %s858, %s859
      %p868 = scmp.eq.s32.totalorder %s98, 0
      %p869 = por %p867, %p868
      %p870 = scmp.ne.s32.totalorder %s858, %s859
      %p871 = scmp.eq.s32.totalorder %s99, 1
      %p872 = por %p870, %p871
      %p874 = scmp.ne.s32.totalorder %s859, %s873
      %p875 = scmp.eq.s32.totalorder %s99, 0
      %p876 = por %p874, %p875
      %s878 = sadd.s32 %s877, 1
      %p881 = scmp.eq.s32.totalorder %s93, 1
      %p882 = scmp.ne.s32.totalorder %s877, %s879
      %p883 = scmp.eq.s32.totalorder %s93, 0
      %p884 = por %p882, %p883
      %p885 = scmp.ne.s32.totalorder %s877, %s879
      %p886 = scmp.eq.s32.totalorder %s98, 1
      %p887 = por %p885, %p886
      %p888 = scmp.ne.s32.totalorder %s879, %s880
      %p889 = scmp.eq.s32.totalorder %s98, 0
      %p890 = por %p888, %p889
      %p891 = scmp.ne.s32.totalorder %s879, %s880
      %p892 = scmp.eq.s32.totalorder %s99, 1
      %p893 = por %p891, %p892
      %p895 = scmp.ne.s32.totalorder %s880, %s894
      %p896 = scmp.eq.s32.totalorder %s99, 0
      %p897 = por %p895, %p896
      %s898 = ssub.s32 %s93, %s100
      %p899 = scmp.eq.s32.totalorder %s898, 0
      %s901 = sadd.s32 %s900, 1
      %s902 = scalar_select %p899, %s900, %s901
      %p905 = pneg %p899
      %p906 = scmp.eq.s32.totalorder %s93, 1
      %p907 = por %p905, %p906
      %p908 = scmp.ne.s32.totalorder %s900, %s903
      %p909 = scmp.eq.s32.totalorder %s93, 0
      %p910 = por %p908, %p909
      %p911 = scmp.ne.s32.totalorder %s900, %s903
      %p912 = scmp.eq.s32.totalorder %s98, 1
      %p913 = por %p911, %p912
      %p914 = scmp.ne.s32.totalorder %s903, %s904
      %p915 = scmp.eq.s32.totalorder %s98, 0
      %p916 = por %p914, %p915
      %p917 = scmp.ne.s32.totalorder %s903, %s904
      %p918 = scmp.eq.s32.totalorder %s99, 1
      %p919 = por %p917, %p918
      %p921 = scmp.ne.s32.totalorder %s904, %s920
      %p922 = scmp.eq.s32.totalorder %s99, 0
      %p923 = por %p921, %p922
      %p924 = scmp.le.s32.totalorder 1, %s93
      %p925 = scmp.lt.s32.totalorder %s93, 3
      %p926 = pnand %p924, %p925
      %p927 = pneg %p926
      // Predicated region
      $region9: #{ase_forward.1} parent=5 // pred_check
        _
      $region10: #{ase_forward.1} parent=5 // pred_check_branch
        %929 = sbr.rel (%p926) target = $region12
      $region11: #{ase_forward.1} parent=5 // pred_region
        %s930 = ssub.s32 %s93, 1
        // Predicated region
        $region13: #{ase_forward.1} parent=11 // pred_check
          %p931 = pneg %p218
        $region14: #{ase_forward.1} parent=11 // pred_check_branch
          %933 = sbr.rel (%p931) target = $region16
        $region15: #{ase_forward.1} parent=11 // pred_region
          _
        $region16: #{ase_forward.1} parent=11 // pred_fallthru
          _
        // Predicated region
        $region17: #{ase_forward.1} parent=11 // pred_check
          %p934 = pneg %p239
        $region18: #{ase_forward.1} parent=11 // pred_check_branch
          %936 = sbr.rel (%p934) target = $region20
        $region19: #{ase_forward.1} parent=11 // pred_region
          _
        $region20: #{ase_forward.1} parent=11 // pred_fallthru
          _
        // Predicated region
        $region21: #{ase_forward.1} parent=11 // pred_check
          %p937 = pneg %p260
        $region22: #{ase_forward.1} parent=11 // pred_check_branch
          %939 = sbr.rel (%p937) target = $region24
        $region23: #{ase_forward.1} parent=11 // pred_region
          %941 = vsyncadd [#allocation3], 0
          %s942 = sshll.u32 %s13, 4
          %s943 = int_to_ptr.hbm [resolvable:$true] %s942
          %s944 = sshll.u32 [#allocation2], 4
          %s945 = int_to_ptr.vmem [resolvable:$true] %s944
          %950 = dma.hbm_to_vmem [thread:$0]  %s943, 256, %s945, [#allocation3], 64, 64, 4
        $region24: #{ase_forward.1} parent=11 // pred_fallthru
          _
        // Predicated region
        $region25: #{ase_forward.1} parent=11 // pred_check
          %p951 = pneg %p281
        $region26: #{ase_forward.1} parent=11 // pred_check_branch
          %953 = sbr.rel (%p951) target = $region28
        $region27: #{ase_forward.1} parent=11 // pred_region
          %955 = vsyncadd [#allocation5], 0
          %s957 = sshll.u32 %s15, 4
          %s958 = int_to_ptr.hbm [resolvable:$true] %s957
          %s959 = sshll.u32 [#allocation4], 4
          %s960 = int_to_ptr.vmem [resolvable:$true] %s959
          %962 = dma.hbm_to_vmem [thread:$0]  %s958, 16, %s960, [#allocation5]
        $region28: #{ase_forward.1} parent=11 // pred_fallthru
          _
        // Predicated region
        $region29: #{ase_forward.1} parent=11 // pred_check
          %p963 = pneg %p302
        $region30: #{ase_forward.1} parent=11 // pred_check_branch
          %965 = sbr.rel (%p963) target = $region32
        $region31: #{ase_forward.1} parent=11 // pred_region
          _
        $region32: #{ase_forward.1} parent=11 // pred_fallthru
          _
        // Predicated region
        $region33: #{ase_forward.1} parent=11 // pred_check
          %p966 = pneg %p323
        $region34: #{ase_forward.1} parent=11 // pred_check_branch
          %968 = sbr.rel (%p966) target = $region36
        $region35: #{ase_forward.1} parent=11 // pred_region
          %970 = vsyncadd [#allocation5], 0
          %s972 = sshll.u32 %s19, 4
          %s973 = int_to_ptr.hbm [resolvable:$true] %s972
          %s974 = sshll.u32 [#allocation6], 4
          %s975 = int_to_ptr.vmem [resolvable:$true] %s974
          %977 = dma.hbm_to_vmem [thread:$0]  %s973, 16, %s975, [#allocation5]
        $region36: #{ase_forward.1} parent=11 // pred_fallthru
          _
        // Predicated region
        $region37: #{ase_forward.1} parent=11 // pred_check
          %p978 = pneg %p344
        $region38: #{ase_forward.1} parent=11 // pred_check_branch
          %980 = sbr.rel (%p978) target = $region40
        $region39: #{ase_forward.1} parent=11 // pred_region
          %982 = vsyncadd [#allocation8], 0
          %s983 = sshll.u32 %s21, 4
          %s984 = int_to_ptr.hbm [resolvable:$true] %s983
          %s985 = sshll.u32 [#allocation7], 4
          %s986 = int_to_ptr.vmem [resolvable:$true] %s985
          %991 = dma.hbm_to_vmem [thread:$0]  %s984, 192, %s986, [#allocation8], 64, 64, 4
        $region40: #{ase_forward.1} parent=11 // pred_fallthru
          _
        // Predicated region
        $region41: #{ase_forward.1} parent=11 // pred_check
          %p992 = pneg %p365
        $region42: #{ase_forward.1} parent=11 // pred_check_branch
          %994 = sbr.rel (%p992) target = $region44
        $region43: #{ase_forward.1} parent=11 // pred_region
          %996 = vsyncadd [#allocation8], 0
          %s997 = sshll.u32 %s23, 4
          %s998 = int_to_ptr.hbm [resolvable:$true] %s997
          %s999 = sshll.u32 [#allocation9], 4
          %s1000 = int_to_ptr.vmem [resolvable:$true] %s999
          %1005 = dma.hbm_to_vmem [thread:$0]  %s998, 128, %s1000, [#allocation8], 64, 64, 4
        $region44: #{ase_forward.1} parent=11 // pred_fallthru
          _
        // Predicated region
        $region45: #{ase_forward.1} parent=11 // pred_check
          %p1006 = pneg %p386
        $region46: #{ase_forward.1} parent=11 // pred_check_branch
          %1008 = sbr.rel (%p1006) target = $region48
        $region47: #{ase_forward.1} parent=11 // pred_region
          %1010 = vsyncadd [#allocation11], 0
          %s1012 = sshll.u32 %s25, 4
          %s1013 = int_to_ptr.hbm [resolvable:$true] %s1012
          %s1014 = sshll.u32 [#allocation10], 4
          %s1015 = int_to_ptr.vmem [resolvable:$true] %s1014
          %1017 = dma.hbm_to_vmem [thread:$0]  %s1013, 16, %s1015, [#allocation11]
        $region48: #{ase_forward.1} parent=11 // pred_fallthru
          _
        // Predicated region
        $region49: #{ase_forward.1} parent=11 // pred_check
          %p1018 = pneg %p407
        $region50: #{ase_forward.1} parent=11 // pred_check_branch
          %1020 = sbr.rel (%p1018) target = $region52
        $region51: #{ase_forward.1} parent=11 // pred_region
          _
        $region52: #{ase_forward.1} parent=11 // pred_fallthru
          _
        // Predicated region
        $region53: #{ase_forward.1} parent=11 // pred_check
          %p1021 = pneg %p428
        $region54: #{ase_forward.1} parent=11 // pred_check_branch
          %1023 = sbr.rel (%p1021) target = $region56
        $region55: #{ase_forward.1} parent=11 // pred_region
          %1025 = vsyncadd [#allocation11], 0
          %s1027 = sshll.u32 %s29, 4
          %s1028 = int_to_ptr.hbm [resolvable:$true] %s1027
          %s1029 = sshll.u32 [#allocation12], 4
          %s1030 = int_to_ptr.vmem [resolvable:$true] %s1029
          %1032 = dma.hbm_to_vmem [thread:$0]  %s1028, 16, %s1030, [#allocation11]
        $region56: #{ase_forward.1} parent=11 // pred_fallthru
          _
        // Predicated region
        $region57: #{ase_forward.1} parent=11 // pred_check
          %p1033 = pneg %p449
        $region58: #{ase_forward.1} parent=11 // pred_check_branch
          %1035 = sbr.rel (%p1033) target = $region60
        $region59: #{ase_forward.1} parent=11 // pred_region
          _
        $region60: #{ase_forward.1} parent=11 // pred_fallthru
          _
        // Predicated region
        $region61: #{ase_forward.1} parent=11 // pred_check
          %p1036 = pneg %p470
        $region62: #{ase_forward.1} parent=11 // pred_check_branch
          %1038 = sbr.rel (%p1036) target = $region64
        $region63: #{ase_forward.1} parent=11 // pred_region
          %1040 = vsyncadd [#allocation14], 0
          %s1042 = sshll.u32 %s33, 4
          %s1043 = int_to_ptr.hbm [resolvable:$true] %s1042
          %s1044 = sshll.u32 [#allocation13], 4
          %s1045 = int_to_ptr.vmem [resolvable:$true] %s1044
          %1047 = dma.hbm_to_vmem [thread:$0]  %s1043, 16, %s1045, [#allocation14]
        $region64: #{ase_forward.1} parent=11 // pred_fallthru
          _
        // Predicated region
        $region65: #{ase_forward.1} parent=11 // pred_check
          %p1048 = pneg %p491
        $region66: #{ase_forward.1} parent=11 // pred_check_branch
          %1050 = sbr.rel (%p1048) target = $region68
        $region67: #{ase_forward.1} parent=11 // pred_region
          %1052 = vsyncadd [#allocation14], 0
          %s1053 = sshll.u32 %s35, 4
          %s1054 = int_to_ptr.hbm [resolvable:$true] %s1053
          %s1055 = sshll.u32 [#allocation15], 4
          %s1056 = int_to_ptr.vmem [resolvable:$true] %s1055
          %1061 = dma.hbm_to_vmem [thread:$0]  %s1054, 256, %s1056, [#allocation14], 64, 64, 4
        $region68: #{ase_forward.1} parent=11 // pred_fallthru
          _
        // Predicated region
        $region69: #{ase_forward.1} parent=11 // pred_check
          %p1062 = pneg %p512
        $region70: #{ase_forward.1} parent=11 // pred_check_branch
          %1064 = sbr.rel (%p1062) target = $region72
        $region71: #{ase_forward.1} parent=11 // pred_region
          %1066 = vsyncadd [#allocation17], 0
          %s1067 = sshll.u32 %s37, 4
          %s1068 = int_to_ptr.hbm [resolvable:$true] %s1067
          %s1069 = sshll.u32 [#allocation16], 4
          %s1070 = int_to_ptr.vmem [resolvable:$true] %s1069
          %1075 = dma.hbm_to_vmem [thread:$0]  %s1068, 128, %s1070, [#allocation17], 64, 64, 4
        $region72: #{ase_forward.1} parent=11 // pred_fallthru
          _
        // Predicated region
        $region73: #{ase_forward.1} parent=11 // pred_check
          %p1076 = pneg %p533
        $region74: #{ase_forward.1} parent=11 // pred_check_branch
          %1078 = sbr.rel (%p1076) target = $region76
        $region75: #{ase_forward.1} parent=11 // pred_region
          %1080 = vsyncadd [#allocation17], 0
          %s1082 = sshll.u32 %s39, 4
          %s1083 = int_to_ptr.hbm [resolvable:$true] %s1082
          %s1084 = sshll.u32 [#allocation18], 4
          %s1085 = int_to_ptr.vmem [resolvable:$true] %s1084
          %1087 = dma.hbm_to_vmem [thread:$0]  %s1083, 16, %s1085, [#allocation17]
        $region76: #{ase_forward.1} parent=11 // pred_fallthru
          _
        // Predicated region
        $region77: #{ase_forward.1} parent=11 // pred_check
          %p1088 = pneg %p554
        $region78: #{ase_forward.1} parent=11 // pred_check_branch
          %1090 = sbr.rel (%p1088) target = $region80
        $region79: #{ase_forward.1} parent=11 // pred_region
          _
        $region80: #{ase_forward.1} parent=11 // pred_fallthru
          _
        // Predicated region
        $region81: #{ase_forward.1} parent=11 // pred_check
          %p1091 = pneg %p575
        $region82: #{ase_forward.1} parent=11 // pred_check_branch
          %1093 = sbr.rel (%p1091) target = $region84
        $region83: #{ase_forward.1} parent=11 // pred_region
          %1095 = vsyncadd [#allocation20], 0
          %s1097 = sshll.u32 %s43, 4
          %s1098 = int_to_ptr.hbm [resolvable:$true] %s1097
          %s1099 = sshll.u32 [#allocation19], 4
          %s1100 = int_to_ptr.vmem [resolvable:$true] %s1099
          %1102 = dma.hbm_to_vmem [thread:$0]  %s1098, 16, %s1100, [#allocation20]
        $region84: #{ase_forward.1} parent=11 // pred_fallthru
          _
        // Predicated region
        $region85: #{ase_forward.1} parent=11 // pred_check
          %p1103 = pneg %p596
        $region86: #{ase_forward.1} parent=11 // pred_check_branch
          %1105 = sbr.rel (%p1103) target = $region88
        $region87: #{ase_forward.1} parent=11 // pred_region
          _
        $region88: #{ase_forward.1} parent=11 // pred_fallthru
          _
        // Predicated region
        $region89: #{ase_forward.1} parent=11 // pred_check
          %p1106 = pneg %p617
        $region90: #{ase_forward.1} parent=11 // pred_check_branch
          %1108 = sbr.rel (%p1106) target = $region92
        $region91: #{ase_forward.1} parent=11 // pred_region
          %1110 = vsyncadd [#allocation20], 0
          %s1112 = sshll.u32 %s47, 4
          %s1113 = int_to_ptr.hbm [resolvable:$true] %s1112
          %s1114 = sshll.u32 [#allocation21], 4
          %s1115 = int_to_ptr.vmem [resolvable:$true] %s1114
          %1117 = dma.hbm_to_vmem [thread:$0]  %s1113, 16, %s1115, [#allocation20]
        $region92: #{ase_forward.1} parent=11 // pred_fallthru
          _
        // Predicated region
        $region93: #{ase_forward.1} parent=11 // pred_check
          %p1118 = pneg %p638
        $region94: #{ase_forward.1} parent=11 // pred_check_branch
          %1120 = sbr.rel (%p1118) target = $region96
        $region95: #{ase_forward.1} parent=11 // pred_region
          %1122 = vsyncadd [#allocation23], 0
          %s1123 = sshll.u32 %s49, 4
          %s1124 = int_to_ptr.hbm [resolvable:$true] %s1123
          %s1125 = sshll.u32 [#allocation22], 4
          %s1126 = int_to_ptr.vmem [resolvable:$true] %s1125
          %1131 = dma.hbm_to_vmem [thread:$0]  %s1124, 256, %s1126, [#allocation23], 64, 64, 4
        $region96: #{ase_forward.1} parent=11 // pred_fallthru
          _
        // Predicated region
        $region97: #{ase_forward.1} parent=11 // pred_check
          %p1132 = pneg %p659
        $region98: #{ase_forward.1} parent=11 // pred_check_branch
          %1134 = sbr.rel (%p1132) target = $region100
        $region99: #{ase_forward.1} parent=11 // pred_region
          %1136 = vsyncadd [#allocation23], 0
          %s1138 = sshll.u32 %s51, 4
          %s1139 = int_to_ptr.hbm [resolvable:$true] %s1138
          %s1140 = sshll.u32 [#allocation24], 4
          %s1141 = int_to_ptr.vmem [resolvable:$true] %s1140
          %1143 = dma.hbm_to_vmem [thread:$0]  %s1139, 16, %s1141, [#allocation23]
        $region100: #{ase_forward.1} parent=11 // pred_fallthru
          _
        // Predicated region
        $region101: #{ase_forward.1} parent=11 // pred_check
          %p1144 = pneg %p680
        $region102: #{ase_forward.1} parent=11 // pred_check_branch
          %1146 = sbr.rel (%p1144) target = $region104
        $region103: #{ase_forward.1} parent=11 // pred_region
          _
        $region104: #{ase_forward.1} parent=11 // pred_fallthru
          _
        // Predicated region
        $region105: #{ase_forward.1} parent=11 // pred_check
          %p1147 = pneg %p701
        $region106: #{ase_forward.1} parent=11 // pred_check_branch
          %1149 = sbr.rel (%p1147) target = $region108
        $region107: #{ase_forward.1} parent=11 // pred_region
          %1151 = vsyncadd [#allocation26], 0
          %s1153 = sshll.u32 %s55, 4
          %s1154 = int_to_ptr.hbm [resolvable:$true] %s1153
          %s1155 = sshll.u32 [#allocation25], 4
          %s1156 = int_to_ptr.vmem [resolvable:$true] %s1155
          %1158 = dma.hbm_to_vmem [thread:$0]  %s1154, 16, %s1156, [#allocation26]
        $region108: #{ase_forward.1} parent=11 // pred_fallthru
          _
        // Predicated region
        $region109: #{ase_forward.1} parent=11 // pred_check
          %p1159 = pneg %p722
        $region110: #{ase_forward.1} parent=11 // pred_check_branch
          %1161 = sbr.rel (%p1159) target = $region112
        $region111: #{ase_forward.1} parent=11 // pred_region
          _
        $region112: #{ase_forward.1} parent=11 // pred_fallthru
          _
        // Predicated region
        $region113: #{ase_forward.1} parent=11 // pred_check
          %p1162 = pneg %p743
        $region114: #{ase_forward.1} parent=11 // pred_check_branch
          %1164 = sbr.rel (%p1162) target = $region116
        $region115: #{ase_forward.1} parent=11 // pred_region
          %1166 = vsyncadd [#allocation26], 0
          %s1168 = sshll.u32 %s59, 4
          %s1169 = int_to_ptr.hbm [resolvable:$true] %s1168
          %s1170 = sshll.u32 [#allocation27], 4
          %s1171 = int_to_ptr.vmem [resolvable:$true] %s1170
          %1173 = dma.hbm_to_vmem [thread:$0]  %s1169, 16, %s1171, [#allocation26]
        $region116: #{ase_forward.1} parent=11 // pred_fallthru
          _
        // Predicated region
        $region117: #{ase_forward.1} parent=11 // pred_check
          %p1174 = pneg %p764
        $region118: #{ase_forward.1} parent=11 // pred_check_branch
          %1176 = sbr.rel (%p1174) target = $region120
        $region119: #{ase_forward.1} parent=11 // pred_region
          _
        $region120: #{ase_forward.1} parent=11 // pred_fallthru
          _
        // Predicated region
        $region121: #{ase_forward.1} parent=11 // pred_check
          %p1177 = pneg %p785
        $region122: #{ase_forward.1} parent=11 // pred_check_branch
          %1179 = sbr.rel (%p1177) target = $region124
        $region123: #{ase_forward.1} parent=11 // pred_region
          %1181 = vsyncadd [#allocation29], 0
          %s1183 = sshll.u32 %s63, 4
          %s1184 = int_to_ptr.hbm [resolvable:$true] %s1183
          %s1185 = sshll.u32 [#allocation28], 4
          %s1186 = int_to_ptr.vmem [resolvable:$true] %s1185
          %1188 = dma.hbm_to_vmem [thread:$0]  %s1184, 16, %s1186, [#allocation29]
        $region124: #{ase_forward.1} parent=11 // pred_fallthru
          _
        // Predicated region
        $region125: #{ase_forward.1} parent=11 // pred_check
          %p1189 = pneg %p806
        $region126: #{ase_forward.1} parent=11 // pred_check_branch
          %1191 = sbr.rel (%p1189) target = $region128
        $region127: #{ase_forward.1} parent=11 // pred_region
          %1193 = vsyncadd [#allocation29], 0
          %s1194 = sshll.u32 %s65, 4
          %s1195 = int_to_ptr.hbm [resolvable:$true] %s1194
          %s1196 = sshll.u32 [#allocation30], 4
          %s1197 = int_to_ptr.vmem [resolvable:$true] %s1196
          %1202 = dma.hbm_to_vmem [thread:$0]  %s1195, 256, %s1197, [#allocation29], 64, 64, 4
        $region128: #{ase_forward.1} parent=11 // pred_fallthru
          _
        // Predicated region
        $region129: #{ase_forward.1} parent=11 // pred_check
          %p1203 = pneg %p827
        $region130: #{ase_forward.1} parent=11 // pred_check_branch
          %1205 = sbr.rel (%p1203) target = $region132
        $region131: #{ase_forward.1} parent=11 // pred_region
          %1207 = vsyncadd [#allocation32], 0
          %s1208 = sshll.u32 %s67, 4
          %s1209 = int_to_ptr.hbm [resolvable:$true] %s1208
          %s1210 = sshll.u32 [#allocation31], 4
          %s1211 = int_to_ptr.vmem [resolvable:$true] %s1210
          %1216 = dma.hbm_to_vmem [thread:$0]  %s1209, 256, %s1211, [#allocation32], 64, 64, 4
        $region132: #{ase_forward.1} parent=11 // pred_fallthru
          _
        // Predicated region
        $region133: #{ase_forward.1} parent=11 // pred_check
          %p1217 = pneg %p848
        $region134: #{ase_forward.1} parent=11 // pred_check_branch
          %1219 = sbr.rel (%p1217) target = $region136
        $region135: #{ase_forward.1} parent=11 // pred_region
          %1221 = vsyncadd [#allocation32], 0
          %s1222 = sshll.u32 %s69, 4
          %s1223 = int_to_ptr.hbm [resolvable:$true] %s1222
          %s1224 = sshll.u32 [#allocation33], 4
          %s1225 = int_to_ptr.vmem [resolvable:$true] %s1224
          %1230 = dma.hbm_to_vmem [thread:$0]  %s1223, 256, %s1225, [#allocation32], 64, 64, 4
        $region136: #{ase_forward.1} parent=11 // pred_fallthru
          _
        // Predicated region
        $region137: #{ase_forward.1} parent=11 // pred_check
          %p1231 = pneg %p869
        $region138: #{ase_forward.1} parent=11 // pred_check_branch
          %1233 = sbr.rel (%p1231) target = $region140
        $region139: #{ase_forward.1} parent=11 // pred_region
          %1235 = vsyncadd [#allocation35], 0
          %s1236 = sshll.u32 %s71, 4
          %s1237 = int_to_ptr.hbm [resolvable:$true] %s1236
          %s1238 = sshll.u32 [#allocation34], 4
          %s1239 = int_to_ptr.vmem [resolvable:$true] %s1238
          %1244 = dma.hbm_to_vmem [thread:$0]  %s1237, 256, %s1239, [#allocation35], 64, 64, 4
        $region140: #{ase_forward.1} parent=11 // pred_fallthru
          _
        // Predicated region
        $region141: #{ase_forward.1} parent=11 // pred_check
          %p1245 = pneg %p890
        $region142: #{ase_forward.1} parent=11 // pred_check_branch
          %1247 = sbr.rel (%p1245) target = $region144
        $region143: #{ase_forward.1} parent=11 // pred_region
          %1249 = vsyncadd [#allocation35], 0
          %s1251 = sshll.u32 %s73, 4
          %s1252 = int_to_ptr.hbm [resolvable:$true] %s1251
          %s1253 = sshll.u32 [#allocation36], 4
          %s1254 = int_to_ptr.vmem [resolvable:$true] %s1253
          %1256 = dma.hbm_to_vmem [thread:$0]  %s1252, 16, %s1254, [#allocation35]
        $region144: #{ase_forward.1} parent=11 // pred_fallthru
          _
      $region12: #{ase_forward.1} parent=5 // pred_fallthru
        _
      %p1257 = scmp.lt.s32.totalorder %s93, 2
      // Predicated region
      $region145: #{ase_forward.1} parent=5 // pred_check
        %p1258 = pneg %p1257
      $region146: #{ase_forward.1} parent=5 // pred_check_branch
        %1260 = sbr.rel (%p1258) target = $region148
      $region147: #{ase_forward.1} parent=5 // pred_region
        // Predicated region
        $region149: #{ase_forward.1} parent=147 // pred_check
          %p1261 = pneg %p113
        $region150: #{ase_forward.1} parent=147 // pred_check_branch
          %1263 = sbr.rel (%p1261) target = $region152
        $region151: #{ase_forward.1} parent=147 // pred_region
          %p1264 = scmp.lt.s32.totalorder %s93, 1
          %s1265 = scalar_select %p1264, %s93, 1
          %s1266 = smul.addr %s1265, 8
          %s1267 = scalar_lea.vmem %s1, %s1266
        $region152: #{ase_forward.1} parent=147 // pred_fallthru
          _
        // Predicated region
        $region153: #{ase_forward.1} parent=147 // pred_check
          %p1268 = pneg %p139
        $region154: #{ase_forward.1} parent=147 // pred_check_branch
          %1270 = sbr.rel (%p1268) target = $region156
        $region155: #{ase_forward.1} parent=147 // pred_region
          %p1271 = scmp.lt.s32.totalorder %s93, 1
          %s1272 = scalar_select %p1271, %s93, 1
          %s1273 = smul.addr %s1272, 8
          %s1274 = scalar_lea.vmem %s3, %s1273
        $region156: #{ase_forward.1} parent=147 // pred_fallthru
          _
        // Predicated region
        $region157: #{ase_forward.1} parent=147 // pred_check
          %p1275 = pneg %p165
        $region158: #{ase_forward.1} parent=147 // pred_check_branch
          %1277 = sbr.rel (%p1275) target = $region160
        $region159: #{ase_forward.1} parent=147 // pred_region
          %p1278 = scmp.lt.s32.totalorder %s93, 1
          %s1279 = scalar_select %p1278, %s93, 1
          %s1280 = smul.addr %s1279, 8
          %s1281 = scalar_lea.vmem %s5, %s1280
        $region160: #{ase_forward.1} parent=147 // pred_fallthru
          _
        // Predicated region
        $region161: #{ase_forward.1} parent=147 // pred_check
          %p1282 = pneg %p191
        $region162: #{ase_forward.1} parent=147 // pred_check_branch
          %1284 = sbr.rel (%p1282) target = $region164
        $region163: #{ase_forward.1} parent=147 // pred_region
          %p1285 = scmp.lt.s32.totalorder %s93, 1
          %s1286 = scalar_select %p1285, %s93, 1
          %s1287 = smul.addr %s1286, 8
          %s1288 = scalar_lea.vmem %s7, %s1287
        $region164: #{ase_forward.1} parent=147 // pred_fallthru
          _
      $region148: #{ase_forward.1} parent=5 // pred_fallthru
        _
      %p1289 = scmp.le.s32.totalorder 1, %s93
      %p1290 = scmp.lt.s32.totalorder %s93, 3
      %p1291 = pnand %p1289, %p1290
      %p1292 = pneg %p1291
      // Predicated region
      $region165: #{ase_forward.1} parent=5 // pred_check
        _
      $region166: #{ase_forward.1} parent=5 // pred_check_branch
        %1294 = sbr.rel (%p1291) target = $region168
      $region167: #{ase_forward.1} parent=5 // pred_region
        %s1295 = ssub.s32 %s93, 1
        // Predicated region
        $region169: #{ase_forward.1} parent=167 // pred_check
          %p1296 = pneg %p260
        $region170: #{ase_forward.1} parent=167 // pred_check_branch
          %1298 = sbr.rel (%p1296) target = $region172
        $region171: #{ase_forward.1} parent=167 // pred_region
          %1300 = dma.done [#allocation3], 256
        $region172: #{ase_forward.1} parent=167 // pred_fallthru
          _
        // Predicated region
        $region173: #{ase_forward.1} parent=167 // pred_check
          %p1301 = pneg %p281
        $region174: #{ase_forward.1} parent=167 // pred_check_branch
          %1303 = sbr.rel (%p1301) target = $region176
        $region175: #{ase_forward.1} parent=167 // pred_region
          %1305 = dma.done [#allocation5], 16
        $region176: #{ase_forward.1} parent=167 // pred_fallthru
          _
        // Predicated region
        $region177: #{ase_forward.1} parent=167 // pred_check
          %p1306 = pneg %p323
        $region178: #{ase_forward.1} parent=167 // pred_check_branch
          %1308 = sbr.rel (%p1306) target = $region180
        $region179: #{ase_forward.1} parent=167 // pred_region
          %1310 = dma.done [#allocation5], 16
        $region180: #{ase_forward.1} parent=167 // pred_fallthru
          _
        // Predicated region
        $region181: #{ase_forward.1} parent=167 // pred_check
          %p1311 = pneg %p344
        $region182: #{ase_forward.1} parent=167 // pred_check_branch
          %1313 = sbr.rel (%p1311) target = $region184
        $region183: #{ase_forward.1} parent=167 // pred_region
          %1315 = dma.done [#allocation8], 192
        $region184: #{ase_forward.1} parent=167 // pred_fallthru
          _
        // Predicated region
        $region185: #{ase_forward.1} parent=167 // pred_check
          %p1316 = pneg %p365
        $region186: #{ase_forward.1} parent=167 // pred_check_branch
          %1318 = sbr.rel (%p1316) target = $region188
        $region187: #{ase_forward.1} parent=167 // pred_region
          %1320 = dma.done [#allocation8], 128
        $region188: #{ase_forward.1} parent=167 // pred_fallthru
          _
        // Predicated region
        $region189: #{ase_forward.1} parent=167 // pred_check
          %p1321 = pneg %p386
        $region190: #{ase_forward.1} parent=167 // pred_check_branch
          %1323 = sbr.rel (%p1321) target = $region192
        $region191: #{ase_forward.1} parent=167 // pred_region
          %1325 = dma.done [#allocation11], 16
        $region192: #{ase_forward.1} parent=167 // pred_fallthru
          _
        // Predicated region
        $region193: #{ase_forward.1} parent=167 // pred_check
          %p1326 = pneg %p428
        $region194: #{ase_forward.1} parent=167 // pred_check_branch
          %1328 = sbr.rel (%p1326) target = $region196
        $region195: #{ase_forward.1} parent=167 // pred_region
          %1330 = dma.done [#allocation11], 16
        $region196: #{ase_forward.1} parent=167 // pred_fallthru
          _
        // Predicated region
        $region197: #{ase_forward.1} parent=167 // pred_check
          %p1331 = pneg %p470
        $region198: #{ase_forward.1} parent=167 // pred_check_branch
          %1333 = sbr.rel (%p1331) target = $region200
        $region199: #{ase_forward.1} parent=167 // pred_region
          %1335 = dma.done [#allocation14], 16
        $region200: #{ase_forward.1} parent=167 // pred_fallthru
          _
        // Predicated region
        $region201: #{ase_forward.1} parent=167 // pred_check
          %p1336 = pneg %p491
        $region202: #{ase_forward.1} parent=167 // pred_check_branch
          %1338 = sbr.rel (%p1336) target = $region204
        $region203: #{ase_forward.1} parent=167 // pred_region
          %1340 = dma.done [#allocation14], 256
        $region204: #{ase_forward.1} parent=167 // pred_fallthru
          _
        // Predicated region
        $region205: #{ase_forward.1} parent=167 // pred_check
          %p1341 = pneg %p512
        $region206: #{ase_forward.1} parent=167 // pred_check_branch
          %1343 = sbr.rel (%p1341) target = $region208
        $region207: #{ase_forward.1} parent=167 // pred_region
          %1345 = dma.done [#allocation17], 128
        $region208: #{ase_forward.1} parent=167 // pred_fallthru
          _
        // Predicated region
        $region209: #{ase_forward.1} parent=167 // pred_check
          %p1346 = pneg %p533
        $region210: #{ase_forward.1} parent=167 // pred_check_branch
          %1348 = sbr.rel (%p1346) target = $region212
        $region211: #{ase_forward.1} parent=167 // pred_region
          %1350 = dma.done [#allocation17], 16
        $region212: #{ase_forward.1} parent=167 // pred_fallthru
          _
        // Predicated region
        $region213: #{ase_forward.1} parent=167 // pred_check
          %p1351 = pneg %p575
        $region214: #{ase_forward.1} parent=167 // pred_check_branch
          %1353 = sbr.rel (%p1351) target = $region216
        $region215: #{ase_forward.1} parent=167 // pred_region
          %1355 = dma.done [#allocation20], 16
        $region216: #{ase_forward.1} parent=167 // pred_fallthru
          _
        // Predicated region
        $region217: #{ase_forward.1} parent=167 // pred_check
          %p1356 = pneg %p617
        $region218: #{ase_forward.1} parent=167 // pred_check_branch
          %1358 = sbr.rel (%p1356) target = $region220
        $region219: #{ase_forward.1} parent=167 // pred_region
          %1360 = dma.done [#allocation20], 16
        $region220: #{ase_forward.1} parent=167 // pred_fallthru
          _
        // Predicated region
        $region221: #{ase_forward.1} parent=167 // pred_check
          %p1361 = pneg %p638
        $region222: #{ase_forward.1} parent=167 // pred_check_branch
          %1363 = sbr.rel (%p1361) target = $region224
        $region223: #{ase_forward.1} parent=167 // pred_region
          %1365 = dma.done [#allocation23], 256
        $region224: #{ase_forward.1} parent=167 // pred_fallthru
          _
        // Predicated region
        $region225: #{ase_forward.1} parent=167 // pred_check
          %p1366 = pneg %p659
        $region226: #{ase_forward.1} parent=167 // pred_check_branch
          %1368 = sbr.rel (%p1366) target = $region228
        $region227: #{ase_forward.1} parent=167 // pred_region
          %1370 = dma.done [#allocation23], 16
        $region228: #{ase_forward.1} parent=167 // pred_fallthru
          _
        // Predicated region
        $region229: #{ase_forward.1} parent=167 // pred_check
          %p1371 = pneg %p701
        $region230: #{ase_forward.1} parent=167 // pred_check_branch
          %1373 = sbr.rel (%p1371) target = $region232
        $region231: #{ase_forward.1} parent=167 // pred_region
          %1375 = dma.done [#allocation26], 16
        $region232: #{ase_forward.1} parent=167 // pred_fallthru
          _
        // Predicated region
        $region233: #{ase_forward.1} parent=167 // pred_check
          %p1376 = pneg %p743
        $region234: #{ase_forward.1} parent=167 // pred_check_branch
          %1378 = sbr.rel (%p1376) target = $region236
        $region235: #{ase_forward.1} parent=167 // pred_region
          %1380 = dma.done [#allocation26], 16
        $region236: #{ase_forward.1} parent=167 // pred_fallthru
          _
        // Predicated region
        $region237: #{ase_forward.1} parent=167 // pred_check
          %p1381 = pneg %p785
        $region238: #{ase_forward.1} parent=167 // pred_check_branch
          %1383 = sbr.rel (%p1381) target = $region240
        $region239: #{ase_forward.1} parent=167 // pred_region
          %1385 = dma.done [#allocation29], 16
        $region240: #{ase_forward.1} parent=167 // pred_fallthru
          _
        // Predicated region
        $region241: #{ase_forward.1} parent=167 // pred_check
          %p1386 = pneg %p806
        $region242: #{ase_forward.1} parent=167 // pred_check_branch
          %1388 = sbr.rel (%p1386) target = $region244
        $region243: #{ase_forward.1} parent=167 // pred_region
          %1390 = dma.done [#allocation29], 256
        $region244: #{ase_forward.1} parent=167 // pred_fallthru
          _
        // Predicated region
        $region245: #{ase_forward.1} parent=167 // pred_check
          %p1391 = pneg %p827
        $region246: #{ase_forward.1} parent=167 // pred_check_branch
          %1393 = sbr.rel (%p1391) target = $region248
        $region247: #{ase_forward.1} parent=167 // pred_region
          %1395 = dma.done [#allocation32], 256
        $region248: #{ase_forward.1} parent=167 // pred_fallthru
          _
        // Predicated region
        $region249: #{ase_forward.1} parent=167 // pred_check
          %p1396 = pneg %p848
        $region250: #{ase_forward.1} parent=167 // pred_check_branch
          %1398 = sbr.rel (%p1396) target = $region252
        $region251: #{ase_forward.1} parent=167 // pred_region
          %1400 = dma.done [#allocation32], 256
        $region252: #{ase_forward.1} parent=167 // pred_fallthru
          _
        // Predicated region
        $region253: #{ase_forward.1} parent=167 // pred_check
          %p1401 = pneg %p869
        $region254: #{ase_forward.1} parent=167 // pred_check_branch
          %1403 = sbr.rel (%p1401) target = $region256
        $region255: #{ase_forward.1} parent=167 // pred_region
          %1405 = dma.done [#allocation35], 256
        $region256: #{ase_forward.1} parent=167 // pred_fallthru
          _
        // Predicated region
        $region257: #{ase_forward.1} parent=167 // pred_check
          %p1406 = pneg %p890
        $region258: #{ase_forward.1} parent=167 // pred_check_branch
          %1408 = sbr.rel (%p1406) target = $region260
        $region259: #{ase_forward.1} parent=167 // pred_region
          %1410 = dma.done [#allocation35], 16
        $region260: #{ase_forward.1} parent=167 // pred_fallthru
          _
        %p1411 = scmp.lt.s32.totalorder %s98, 1
        %s1412 = scalar_select %p1411, %s98, 1
        %s1413 = smul.addr %s1412, 8
        %s1414 = scalar_lea.vmem %s1, %s1413
        %p1415 = pneg %p119
        %p1416 = pneg %p116
        %p1417 = scmp.lt.s32.totalorder %s98, 1
        %s1418 = scalar_select %p1417, %s98, 1
        %s1419 = smul.addr %s1418, 8
        %s1420 = scalar_lea.vmem %s3, %s1419
        %p1421 = pneg %p145
        %p1422 = pneg %p142
        %p1423 = scmp.lt.s32.totalorder %s98, 1
        %s1424 = scalar_select %p1423, %s98, 1
        %s1425 = smul.addr %s1424, 8
        %s1426 = scalar_lea.vmem %s5, %s1425
        %p1427 = pneg %p171
        %p1428 = pneg %p168
        %p1429 = scmp.lt.s32.totalorder %s98, 1
        %s1430 = scalar_select %p1429, %s98, 1
        %s1431 = smul.addr %s1430, 8
        %s1432 = scalar_lea.vmem %s7, %s1431
        %p1433 = pneg %p197
        %p1434 = pneg %p194
        %p1435 = pneg %p218
        %p1436 = pneg %p215
        %p1437 = pneg %p239
        %p1438 = pneg %p236
        %p1439 = pneg %p260
        %p1440 = pneg %p257
        %p1441 = pneg %p281
        %p1442 = pneg %p278
        %p1443 = pneg %p302
        %p1444 = pneg %p299
        %p1445 = pneg %p323
        %p1446 = pneg %p320
        %p1447 = pneg %p344
        %p1448 = pneg %p341
        %p1449 = pneg %p365
        %p1450 = pneg %p362
        %p1451 = pneg %p386
        %p1452 = pneg %p383
        %p1453 = pneg %p407
        %p1454 = pneg %p404
        %p1455 = pneg %p428
        %p1456 = pneg %p425
        %p1457 = pneg %p449
        %p1458 = pneg %p446
        %p1459 = pneg %p470
        %p1460 = pneg %p467
        %p1461 = pneg %p491
        %p1462 = pneg %p488
        %p1463 = pneg %p512
        %p1464 = pneg %p509
        %p1465 = pneg %p533
        %p1466 = pneg %p530
        %p1467 = pneg %p554
        %p1468 = pneg %p551
        %p1469 = pneg %p575
        %p1470 = pneg %p572
        %p1471 = pneg %p596
        %p1472 = pneg %p593
        %p1473 = pneg %p617
        %p1474 = pneg %p614
        %p1475 = pneg %p638
        %p1476 = pneg %p635
        %p1477 = pneg %p659
        %p1478 = pneg %p656
        %p1479 = pneg %p680
        %p1480 = pneg %p677
        %p1481 = pneg %p701
        %p1482 = pneg %p698
        %p1483 = pneg %p722
        %p1484 = pneg %p719
        %p1485 = pneg %p743
        %p1486 = pneg %p740
        %p1487 = pneg %p764
        %p1488 = pneg %p761
        %p1489 = pneg %p785
        %p1490 = pneg %p782
        %p1491 = pneg %p806
        %p1492 = pneg %p803
        %p1493 = pneg %p827
        %p1494 = pneg %p824
        %p1495 = pneg %p848
        %p1496 = pneg %p845
        %p1497 = pneg %p869
        %p1498 = pneg %p866
        %p1499 = pneg %p890
        %p1500 = pneg %p887
        %p1501 = pneg %p916
        %p1502 = pneg %p913
        %p1503 = scmp.lt.s32.totalorder %s98, 1
        %s1504 = scalar_select %p1503, %s98, 1
        %s1505 = smul.addr %s1504, 8
        %s1506 = scalar_lea.vmem %s75, %s1505
        %p1507 = scmp.lt.s32.totalorder %s98, 1
        %s1508 = scalar_select %p1507, %s98, 1
        %s1509 = smul.addr %s1508, 8
        %s1510 = scalar_lea.vmem %s1, %s1509
        %p1511 = scmp.lt.s32.totalorder %s98, 1
        %s1512 = scalar_select %p1511, %s98, 1
        %s1513 = smul.addr %s1512, 8
        %s1514 = scalar_lea.vmem %s3, %s1513
        %p1515 = scmp.lt.s32.totalorder %s98, 1
        %s1516 = scalar_select %p1515, %s98, 1
        %s1517 = smul.addr %s1516, 8
        %s1518 = scalar_lea.vmem %s5, %s1517
        %p1519 = scmp.lt.s32.totalorder %s98, 1
        %s1520 = scalar_select %p1519, %s98, 1
        %s1521 = smul.addr %s1520, 8
        %s1522 = scalar_lea.vmem %s7, %s1521
        %p1523 = scmp.lt.s32.totalorder %s98, 1
        %s1524 = scalar_select %p1523, %s98, 1
        %s1525 = smul.addr %s1524, 8
        %s1526 = scalar_lea.vmem %s75, %s1525
        %v1528 = vld [vmem:[%s1522] sm:$0xff]
        %v1529 = vpack.c.bf16 %v1528, %v1528
        %v1530 = vld [vmem:[%s9] sm:$0xf]
        %v1531 = vld [vmem:[%s9 + $0x4] sm:$0xf]
        %v1532 = vld [vmem:[%s11] sm:$0x1]
        %v1534 = vperm.slane %v1532, 0
        %v1538 = vunpack.c.l.b16 %v1530
        %v1539 = vunpack.c.l.b16 %v1531
        %v1540 = vpack.c.b16 %v1539, %v1538
        %vm1542 = vcmask 130048
        %v1544 = vsel %vm1542, %v1529, 0
        %1546 = vmatpush.bf16.msra.mxu0 0
        %1547 = vmatpush.bf16.msra.mxu0 0
        %1548 = vmatpush.bf16.msra.mxu0 0
        %1549 = vmatpush.bf16.msra.mxu0 0
        %1550 = vmatpush.bf16.msra.mxu0 0
        %1551 = vmatpush.bf16.msra.mxu0 0
        %1552 = vmatpush.bf16.msra.mxu0 0
        %1553 = vmatpush.bf16.msra.mxu0 %v1540
        %1554 = vmatmul.bf16.gmra.mxu0 %v1544
        %v1555 = vpop.f32.mrf.mxu0
        %v1556 = vadd.f32 %v1534, %v1555
        %v1557 = vpop.f32.mrf.mxu0
        %1558 = vdwg.mxu0
        %v1559 = vmax.f32 %v1556, 0.0
        %v1560 = vpack.c.bf16 %v1559, %v1559
        %v1561 = vld [vmem:[#allocation2] sm:$0xf]
        %v1562 = vld [vmem:[#allocation2 + $0x4] sm:$0xf]
        %v1563 = vld [vmem:[#allocation2 + $0x8] sm:$0xf]
        %v1564 = vld [vmem:[#allocation2 + $0xc] sm:$0xf]
        %v1565 = vld [vmem:[#allocation4] sm:$0x1]
        %v1567 = vperm.slane %v1565, 0
        %v1573 = vunpack.c.l.b16 %v1561
        %v1574 = vunpack.c.l.b16 %v1562
        %v1575 = vunpack.c.l.b16 %v1563
        %v1576 = vunpack.c.l.b16 %v1564
        %v1577 = vpack.c.b16 %v1574, %v1573
        %v1578 = vpack.c.b16 %v1576, %v1575
        %vm1581 = vcmask 261120
        %v1583 = vsel %vm1581, %v1560, 0
        %1585 = vmatpush.bf16.msra.mxu0 0
        %1586 = vmatpush.bf16.msra.mxu0 0
        %1587 = vmatpush.bf16.msra.mxu0 0
        %1588 = vmatpush.bf16.msra.mxu0 0
        %1589 = vmatpush.bf16.msra.mxu0 0
        %1590 = vmatpush.bf16.msra.mxu0 0
        %1591 = vmatpush.bf16.msra.mxu0 %v1578
        %1592 = vmatpush.bf16.msra.mxu0 %v1577
        %1593 = vmatmul.bf16.gmra.mxu0 %v1583
        %v1594 = vpop.f32.mrf.mxu0
        %v1595 = vadd.f32 %v1567, %v1594
        %v1596 = vpop.f32.mrf.mxu0
        %1597 = vdwg.mxu0
        %v1598 = vmax.f32 %v1595, 0.0
        %v1599 = vpack.c.bf16 %v1598, %v1598
        %v1600 = vld [vmem:[%s17] sm:$0xf]
        %v1601 = vld [vmem:[%s17 + $0x4] sm:$0xf]
        %v1602 = vld [vmem:[%s17 + $0x8] sm:$0xf]
        %v1603 = vld [vmem:[%s17 + $0xc] sm:$0xf]
        %v1604 = vld [vmem:[#allocation6] sm:$0x1]
        %v1606 = vperm.slane %v1604, 0
        %v1612 = vunpack.c.l.b16 %v1600
        %v1613 = vunpack.c.l.b16 %v1601
        %v1614 = vunpack.c.l.b16 %v1602
        %v1615 = vunpack.c.l.b16 %v1603
        %v1616 = vpack.c.b16 %v1613, %v1612
        %v1617 = vpack.c.b16 %v1615, %v1614
        %v1621 = vsel %vm1581, %v1599, 0
        %1623 = vmatpush.bf16.msra.mxu0 0
        %1624 = vmatpush.bf16.msra.mxu0 0
        %1625 = vmatpush.bf16.msra.mxu0 0
        %1626 = vmatpush.bf16.msra.mxu0 0
        %1627 = vmatpush.bf16.msra.mxu0 0
        %1628 = vmatpush.bf16.msra.mxu0 0
        %1629 = vmatpush.bf16.msra.mxu0 %v1617
        %1630 = vmatpush.bf16.msra.mxu0 %v1616
        %1631 = vmatmul.bf16.gmra.mxu0 %v1621
        %v1632 = vpop.f32.mrf.mxu0
        %v1633 = vadd.f32 %v1606, %v1632
        %v1634 = vpop.f32.mrf.mxu0
        %1635 = vdwg.mxu0
        %v1636 = vtanh.pop %v1633
        %v1637 = vld [vmem:[%s1510] sm:$0xff]
        %v1638 = vpack.c.bf16 %v1637, %v1637
        %v1639 = vld [vmem:[#allocation7] sm:$0xf]
        %v1640 = vld [vmem:[#allocation7 + $0x4] sm:$0xf]
        %v1641 = vld [vmem:[#allocation7 + $0x8] sm:$0xf]
        %v1642 = vpack.c.bf16 %v1636, %v1636
        %v1643 = vld [vmem:[#allocation9] sm:$0xf]
        %v1644 = vld [vmem:[#allocation9 + $0x4] sm:$0xf]
        %v1647 = vunpack.c.l.b16 %v1643
        %v1648 = vunpack.c.l.b16 %v1644
        %v1649 = vpack.c.b16 %v1648, %v1647
        %v1652 = vsel %vm1542, %v1642, 0
        %1654 = vmatpush.bf16.msra.mxu0 0
        %1655 = vmatpush.bf16.msra.mxu0 0
        %1656 = vmatpush.bf16.msra.mxu0 0
        %1657 = vmatpush.bf16.msra.mxu0 0
        %1658 = vmatpush.bf16.msra.mxu0 0
        %1659 = vmatpush.bf16.msra.mxu0 0
        %1660 = vmatpush.bf16.msra.mxu0 0
        %1661 = vmatpush.bf16.msra.mxu0 %v1649
        %1662 = vmatmul.bf16.gmra.mxu0 %v1652
        %v1663 = vpop.f32.mrf.mxu0
        %v1664 = vadd.f32 0.0, %v1663
        %v1665 = vpop.f32.mrf.mxu0
        %1666 = vdwg.mxu0
        %v1670 = vunpack.c.l.b16 %v1639
        %v1671 = vunpack.c.l.b16 %v1640
        %v1672 = vunpack.c.l.b16 %v1641
        %v1673 = vpack.c.b16 %v1671, %v1670
        %v1674 = vpack.c.b16 %v1672, %v1672
        %vm1676 = vcmask 195584
        %v1678 = vsel %vm1676, %v1638, 0
        %vm1680 = vcmask 1043456
        %v1682 = vsel %vm1680, %v1674, 0
        %1684 = vmatpush.bf16.msra.mxu0 0
        %1685 = vmatpush.bf16.msra.mxu0 0
        %1686 = vmatpush.bf16.msra.mxu0 0
        %1687 = vmatpush.bf16.msra.mxu0 0
        %1688 = vmatpush.bf16.msra.mxu0 0
        %1689 = vmatpush.bf16.msra.mxu0 0
        %1690 = vmatpush.bf16.msra.mxu0 %v1682
        %1691 = vmatpush.bf16.msra.mxu0 %v1673
        %1692 = vmatmul.bf16.gmra.mxu0 %v1678
        %v1693 = vpop.f32.mrf.mxu0
        %v1694 = vadd.f32 %v1664, %v1693
        %v1695 = vpop.f32.mrf.mxu0
        %1696 = vdwg.mxu0
        %v1697 = vld [vmem:[#allocation10] sm:$0x1]
        %v1699 = vperm.slane %v1697, 0
        %v1701 = vadd.f32 %v1694, %v1699
        %v1702 = vmax.f32 %v1701, 0.0
        %v1703 = vpack.c.bf16 %v1702, %v1702
        %v1704 = vld [vmem:[%s27] sm:$0xf]
        %v1705 = vld [vmem:[%s27 + $0x4] sm:$0xf]
        %v1706 = vld [vmem:[%s27 + $0x8] sm:$0xf]
        %v1707 = vld [vmem:[%s27 + $0xc] sm:$0xf]
        %v1708 = vld [vmem:[%s27 + $0x10] sm:$0xf]
        %v1709 = vld [vmem:[%s27 + $0x14] sm:$0xf]
        %v1710 = vld [vmem:[%s27 + $0x18] sm:$0xf]
        %v1711 = vld [vmem:[%s27 + $0x1c] sm:$0xf]
        %v1712 = vld [vmem:[#allocation12] sm:$0x1]
        %v1714 = vperm.slane %v1712, 0
        %v1724 = vunpack.c.l.b16 %v1704
        %v1725 = vunpack.c.l.b16 %v1705
        %v1726 = vunpack.c.l.b16 %v1706
        %v1727 = vunpack.c.l.b16 %v1707
        %v1728 = vunpack.c.l.b16 %v1708
        %v1729 = vunpack.c.l.b16 %v1709
        %v1730 = vunpack.c.l.b16 %v1710
        %v1731 = vunpack.c.l.b16 %v1711
        %v1732 = vpack.c.b16 %v1725, %v1724
        %v1733 = vpack.c.b16 %v1727, %v1726
        %v1734 = vpack.c.b16 %v1729, %v1728
        %v1735 = vpack.c.b16 %v1731, %v1730
        %vm1740 = vcmask 523264
        %v1742 = vsel %vm1740, %v1703, 0
        %1744 = vmatpush.bf16.msra.mxu0 0
        %1745 = vmatpush.bf16.msra.mxu0 0
        %1746 = vmatpush.bf16.msra.mxu0 0
        %1747 = vmatpush.bf16.msra.mxu0 0
        %1748 = vmatpush.bf16.msra.mxu0 %v1735
        %1749 = vmatpush.bf16.msra.mxu0 %v1734
        %1750 = vmatpush.bf16.msra.mxu0 %v1733
        %1751 = vmatpush.bf16.msra.mxu0 %v1732
        %1752 = vmatmul.bf16.gmra.mxu0 %v1742
        %v1753 = vpop.f32.mrf.mxu0
        %v1754 = vadd.f32 %v1714, %v1753
        %v1755 = vpop.f32.mrf.mxu0
        %1756 = vdwg.mxu0
        %v1757 = vmax.f32 %v1754, 0.0
        %v1758 = vpack.c.bf16 %v1757, %v1757
        %v1759 = vld [vmem:[%s31] sm:$0xf]
        %v1760 = vld [vmem:[%s31 + $0x4] sm:$0xf]
        %v1761 = vld [vmem:[%s31 + $0x8] sm:$0xf]
        %v1762 = vld [vmem:[%s31 + $0xc] sm:$0xf]
        %v1763 = vld [vmem:[%s31 + $0x10] sm:$0xf]
        %v1764 = vld [vmem:[%s31 + $0x14] sm:$0xf]
        %v1765 = vld [vmem:[%s31 + $0x18] sm:$0xf]
        %v1766 = vld [vmem:[%s31 + $0x1c] sm:$0xf]
        %v1767 = vld [vmem:[#allocation13] sm:$0x1]
        %v1769 = vperm.slane %v1767, 0
        %v1779 = vunpack.c.l.b16 %v1759
        %v1780 = vunpack.c.l.b16 %v1760
        %v1781 = vunpack.c.l.b16 %v1761
        %v1782 = vunpack.c.l.b16 %v1762
        %v1783 = vunpack.c.l.b16 %v1763
        %v1784 = vunpack.c.l.b16 %v1764
        %v1785 = vunpack.c.l.b16 %v1765
        %v1786 = vunpack.c.l.b16 %v1766
        %v1787 = vpack.c.b16 %v1780, %v1779
        %v1788 = vpack.c.b16 %v1782, %v1781
        %v1789 = vpack.c.b16 %v1784, %v1783
        %v1790 = vpack.c.b16 %v1786, %v1785
        %v1796 = vsel %vm1740, %v1758, 0
        %1798 = vmatpush.bf16.msra.mxu0 0
        %1799 = vmatpush.bf16.msra.mxu0 0
        %1800 = vmatpush.bf16.msra.mxu0 0
        %1801 = vmatpush.bf16.msra.mxu0 0
        %1802 = vmatpush.bf16.msra.mxu0 %v1790
        %1803 = vmatpush.bf16.msra.mxu0 %v1789
        %1804 = vmatpush.bf16.msra.mxu0 %v1788
        %1805 = vmatpush.bf16.msra.mxu0 %v1787
        %1806 = vmatmul.bf16.gmra.mxu0 %v1796
        %v1807 = vpop.f32.mrf.mxu0
        %v1808 = vadd.f32 %v1769, %v1807
        %v1809 = vpop.f32.mrf.mxu0
        %1810 = vdwg.mxu0
        %v1811 = vmax.f32 %v1808, 0.0
        %v1812 = vld [vmem:[%s1514] sm:$0xff]
        %v1813 = vpack.c.bf16 %v1812, %v1812
        %v1814 = vld [vmem:[#allocation15] sm:$0xf]
        %v1815 = vld [vmem:[#allocation15 + $0x4] sm:$0xf]
        %v1816 = vld [vmem:[#allocation15 + $0x8] sm:$0xf]
        %v1817 = vld [vmem:[#allocation15 + $0xc] sm:$0x3]
        %v1818 = vld [vmem:[#allocation16] sm:$0xf]
        %v1819 = vld [vmem:[#allocation16 + $0x4] sm:$0xf]
        %v1822 = vunpack.c.l.b16 %v1818
        %v1823 = vunpack.c.l.b16 %v1819
        %v1824 = vpack.c.b16 %v1823, %v1822
        %1826 = vmatpush.bf16.msra.mxu0 0
        %1827 = vmatpush.bf16.msra.mxu0 0
        %1828 = vmatpush.bf16.msra.mxu0 0
        %1829 = vmatpush.bf16.msra.mxu0 0
        %1830 = vmatpush.bf16.msra.mxu0 0
        %1831 = vmatpush.bf16.msra.mxu0 0
        %1832 = vmatpush.bf16.msra.mxu0 0
        %1833 = vmatpush.bf16.msra.mxu0 %v1824
        %1834 = vmatmul.bf16.gmra.mxu0 %v1544
        %v1835 = vpop.f32.mrf.mxu0
        %v1836 = vadd.f32 0.0, %v1835
        %v1837 = vpop.f32.mrf.mxu0
        %1838 = vdwg.mxu0
        %v1843 = vunpack.c.l.b16 %v1814
        %v1844 = vunpack.c.l.b16 %v1815
        %v1845 = vunpack.c.l.b16 %v1816
        %v1846 = vunpack.c.l.b16 %v1817
        %v1847 = vpack.c.b16 %v1844, %v1843
        %v1848 = vpack.c.b16 %v1846, %v1845
        %vm1850 = vcmask 228352
        %v1852 = vsel %vm1850, %v1813, 0
        %vm1854 = vcmask 1045504
        %v1856 = vsel %vm1854, %v1848, 0
        %1858 = vmatpush.bf16.msra.mxu0 0
        %1859 = vmatpush.bf16.msra.mxu0 0
        %1860 = vmatpush.bf16.msra.mxu0 0
        %1861 = vmatpush.bf16.msra.mxu0 0
        %1862 = vmatpush.bf16.msra.mxu0 0
        %1863 = vmatpush.bf16.msra.mxu0 0
        %1864 = vmatpush.bf16.msra.mxu0 %v1856
        %1865 = vmatpush.bf16.msra.mxu0 %v1847
        %1866 = vmatmul.bf16.gmra.mxu0 %v1852
        %v1867 = vpop.f32.mrf.mxu0
        %v1868 = vadd.f32 %v1836, %v1867
        %v1869 = vpop.f32.mrf.mxu0
        %1870 = vdwg.mxu0
        %v1871 = vld [vmem:[#allocation18] sm:$0x1]
        %v1873 = vperm.slane %v1871, 0
        %v1875 = vadd.f32 %v1868, %v1873
        %v1876 = vmax.f32 %v1875, 0.0
        %v1877 = vpack.c.bf16 %v1876, %v1876
        %v1878 = vld [vmem:[%s41] sm:$0xf]
        %v1879 = vld [vmem:[%s41 + $0x4] sm:$0xf]
        %v1880 = vld [vmem:[%s41 + $0x8] sm:$0xf]
        %v1881 = vld [vmem:[%s41 + $0xc] sm:$0xf]
        %v1882 = vld [vmem:[%s41 + $0x10] sm:$0xf]
        %v1883 = vld [vmem:[%s41 + $0x14] sm:$0xf]
        %v1884 = vld [vmem:[%s41 + $0x18] sm:$0xf]
        %v1885 = vld [vmem:[%s41 + $0x1c] sm:$0xf]
        %v1886 = vld [vmem:[#allocation19] sm:$0x1]
        %v1888 = vperm.slane %v1886, 0
        %v1898 = vunpack.c.l.b16 %v1878
        %v1899 = vunpack.c.l.b16 %v1879
        %v1900 = vunpack.c.l.b16 %v1880
        %v1901 = vunpack.c.l.b16 %v1881
        %v1902 = vunpack.c.l.b16 %v1882
        %v1903 = vunpack.c.l.b16 %v1883
        %v1904 = vunpack.c.l.b16 %v1884
        %v1905 = vunpack.c.l.b16 %v1885
        %v1906 = vpack.c.b16 %v1899, %v1898
        %v1907 = vpack.c.b16 %v1901, %v1900
        %v1908 = vpack.c.b16 %v1903, %v1902
        %v1909 = vpack.c.b16 %v1905, %v1904
        %v1915 = vsel %vm1740, %v1877, 0
        %1917 = vmatpush.bf16.msra.mxu0 0
        %1918 = vmatpush.bf16.msra.mxu0 0
        %1919 = vmatpush.bf16.msra.mxu0 0
        %1920 = vmatpush.bf16.msra.mxu0 0
        %1921 = vmatpush.bf16.msra.mxu0 %v1909
        %1922 = vmatpush.bf16.msra.mxu0 %v1908
        %1923 = vmatpush.bf16.msra.mxu0 %v1907
        %1924 = vmatpush.bf16.msra.mxu0 %v1906
        %1925 = vmatmul.bf16.gmra.mxu0 %v1915
        %v1926 = vpop.f32.mrf.mxu0
        %v1927 = vadd.f32 %v1888, %v1926
        %v1928 = vpop.f32.mrf.mxu0
        %1929 = vdwg.mxu0
        %v1930 = vmax.f32 %v1927, 0.0
        %v1931 = vpack.c.bf16 %v1930, %v1930
        %v1932 = vld [vmem:[%s45] sm:$0xf]
        %v1933 = vld [vmem:[%s45 + $0x4] sm:$0xf]
        %v1934 = vld [vmem:[%s45 + $0x8] sm:$0xf]
        %v1935 = vld [vmem:[%s45 + $0xc] sm:$0xf]
        %v1936 = vld [vmem:[%s45 + $0x10] sm:$0xf]
        %v1937 = vld [vmem:[%s45 + $0x14] sm:$0xf]
        %v1938 = vld [vmem:[%s45 + $0x18] sm:$0xf]
        %v1939 = vld [vmem:[%s45 + $0x1c] sm:$0xf]
        %v1940 = vld [vmem:[#allocation21] sm:$0x1]
        %v1942 = vperm.slane %v1940, 0
        %v1952 = vunpack.c.l.b16 %v1932
        %v1953 = vunpack.c.l.b16 %v1933
        %v1954 = vunpack.c.l.b16 %v1934
        %v1955 = vunpack.c.l.b16 %v1935
        %v1956 = vunpack.c.l.b16 %v1936
        %v1957 = vunpack.c.l.b16 %v1937
        %v1958 = vunpack.c.l.b16 %v1938
        %v1959 = vunpack.c.l.b16 %v1939
        %v1960 = vpack.c.b16 %v1953, %v1952
        %v1961 = vpack.c.b16 %v1955, %v1954
        %v1962 = vpack.c.b16 %v1957, %v1956
        %v1963 = vpack.c.b16 %v1959, %v1958
        %v1969 = vsel %vm1740, %v1931, 0
        %1971 = vmatpush.bf16.msra.mxu0 0
        %1972 = vmatpush.bf16.msra.mxu0 0
        %1973 = vmatpush.bf16.msra.mxu0 0
        %1974 = vmatpush.bf16.msra.mxu0 0
        %1975 = vmatpush.bf16.msra.mxu0 %v1963
        %1976 = vmatpush.bf16.msra.mxu0 %v1962
        %1977 = vmatpush.bf16.msra.mxu0 %v1961
        %1978 = vmatpush.bf16.msra.mxu0 %v1960
        %1979 = vmatmul.bf16.gmra.mxu0 %v1969
        %v1980 = vpop.f32.mrf.mxu0
        %v1981 = vadd.f32 %v1942, %v1980
        %v1982 = vpop.f32.mrf.mxu0
        %1983 = vdwg.mxu0
        %v1984 = vmax.f32 %v1981, 0.0
        %v1985 = vld [vmem:[%s1518] sm:$0xff]
        %v1986 = vpack.c.bf16 %v1985, %v1985
        %v1987 = vld [vmem:[#allocation22] sm:$0xf]
        %v1988 = vld [vmem:[#allocation22 + $0x4] sm:$0xf]
        %v1989 = vld [vmem:[#allocation22 + $0x8] sm:$0xf]
        %v1990 = vld [vmem:[#allocation22 + $0xc] sm:$0x7]
        %v1991 = vld [vmem:[#allocation24] sm:$0x1]
        %v1993 = vperm.slane %v1991, 0
        %v1999 = vunpack.c.l.b16 %v1987
        %v2000 = vunpack.c.l.b16 %v1988
        %v2001 = vunpack.c.l.b16 %v1989
        %v2002 = vunpack.c.l.b16 %v1990
        %v2003 = vpack.c.b16 %v2000, %v1999
        %v2004 = vpack.c.b16 %v2002, %v2001
        %vm2006 = vcmask 244736
        %v2008 = vsel %vm2006, %v1986, 0
        %vm2010 = vcmask 1046528
        %v2012 = vsel %vm2010, %v2004, 0
        %2014 = vmatpush.bf16.msra.mxu0 0
        %2015 = vmatpush.bf16.msra.mxu0 0
        %2016 = vmatpush.bf16.msra.mxu0 0
        %2017 = vmatpush.bf16.msra.mxu0 0
        %2018 = vmatpush.bf16.msra.mxu0 0
        %2019 = vmatpush.bf16.msra.mxu0 0
        %2020 = vmatpush.bf16.msra.mxu0 %v2012
        %2021 = vmatpush.bf16.msra.mxu0 %v2003
        %2022 = vmatmul.bf16.gmra.mxu0 %v2008
        %v2023 = vpop.f32.mrf.mxu0
        %v2024 = vadd.f32 %v1993, %v2023
        %v2025 = vpop.f32.mrf.mxu0
        %2026 = vdwg.mxu0
        %v2027 = vmax.f32 %v2024, 0.0
        %v2028 = vpack.c.bf16 %v2027, %v2027
        %v2029 = vld [vmem:[%s53] sm:$0xf]
        %v2030 = vld [vmem:[%s53 + $0x4] sm:$0xf]
        %v2031 = vld [vmem:[%s53 + $0x8] sm:$0xf]
        %v2032 = vld [vmem:[%s53 + $0xc] sm:$0xf]
        %v2033 = vld [vmem:[%s53 + $0x10] sm:$0xf]
        %v2034 = vld [vmem:[%s53 + $0x14] sm:$0xf]
        %v2035 = vld [vmem:[%s53 + $0x18] sm:$0xf]
        %v2036 = vld [vmem:[%s53 + $0x1c] sm:$0xf]
        %v2037 = vld [vmem:[#allocation25] sm:$0x1]
        %v2039 = vperm.slane %v2037, 0
        %v2049 = vunpack.c.l.b16 %v2029
        %v2050 = vunpack.c.l.b16 %v2030
        %v2051 = vunpack.c.l.b16 %v2031
        %v2052 = vunpack.c.l.b16 %v2032
        %v2053 = vunpack.c.l.b16 %v2033
        %v2054 = vunpack.c.l.b16 %v2034
        %v2055 = vunpack.c.l.b16 %v2035
        %v2056 = vunpack.c.l.b16 %v2036
        %v2057 = vpack.c.b16 %v2050, %v2049
        %v2058 = vpack.c.b16 %v2052, %v2051
        %v2059 = vpack.c.b16 %v2054, %v2053
        %v2060 = vpack.c.b16 %v2056, %v2055
        %v2066 = vsel %vm1740, %v2028, 0
        %2068 = vmatpush.bf16.msra.mxu0 0
        %2069 = vmatpush.bf16.msra.mxu0 0
        %2070 = vmatpush.bf16.msra.mxu0 0
        %2071 = vmatpush.bf16.msra.mxu0 0
        %2072 = vmatpush.bf16.msra.mxu0 %v2060
        %2073 = vmatpush.bf16.msra.mxu0 %v2059
        %2074 = vmatpush.bf16.msra.mxu0 %v2058
        %2075 = vmatpush.bf16.msra.mxu0 %v2057
        %2076 = vmatmul.bf16.gmra.mxu0 %v2066
        %v2077 = vpop.f32.mrf.mxu0
        %v2078 = vadd.f32 %v2039, %v2077
        %v2079 = vpop.f32.mrf.mxu0
        %2080 = vdwg.mxu0
        %v2081 = vmax.f32 %v2078, 0.0
        %v2082 = vpack.c.bf16 %v2081, %v2081
        %v2083 = vld [vmem:[%s57] sm:$0xf]
        %v2084 = vld [vmem:[%s57 + $0x4] sm:$0xf]
        %v2085 = vld [vmem:[%s57 + $0x8] sm:$0xf]
        %v2086 = vld [vmem:[%s57 + $0xc] sm:$0xf]
        %v2087 = vld [vmem:[%s57 + $0x10] sm:$0xf]
        %v2088 = vld [vmem:[%s57 + $0x14] sm:$0xf]
        %v2089 = vld [vmem:[%s57 + $0x18] sm:$0xf]
        %v2090 = vld [vmem:[%s57 + $0x1c] sm:$0xf]
        %v2091 = vld [vmem:[#allocation27] sm:$0x1]
        %v2093 = vperm.slane %v2091, 0
        %v2103 = vunpack.c.l.b16 %v2083
        %v2104 = vunpack.c.l.b16 %v2084
        %v2105 = vunpack.c.l.b16 %v2085
        %v2106 = vunpack.c.l.b16 %v2086
        %v2107 = vunpack.c.l.b16 %v2087
        %v2108 = vunpack.c.l.b16 %v2088
        %v2109 = vunpack.c.l.b16 %v2089
        %v2110 = vunpack.c.l.b16 %v2090
        %v2111 = vpack.c.b16 %v2104, %v2103
        %v2112 = vpack.c.b16 %v2106, %v2105
        %v2113 = vpack.c.b16 %v2108, %v2107
        %v2114 = vpack.c.b16 %v2110, %v2109
        %v2120 = vsel %vm1740, %v2082, 0
        %2122 = vmatpush.bf16.msra.mxu0 0
        %2123 = vmatpush.bf16.msra.mxu0 0
        %2124 = vmatpush.bf16.msra.mxu0 0
        %2125 = vmatpush.bf16.msra.mxu0 0
        %2126 = vmatpush.bf16.msra.mxu0 %v2114
        %2127 = vmatpush.bf16.msra.mxu0 %v2113
        %2128 = vmatpush.bf16.msra.mxu0 %v2112
        %2129 = vmatpush.bf16.msra.mxu0 %v2111
        %2130 = vmatmul.bf16.gmra.mxu0 %v2120
        %v2131 = vpop.f32.mrf.mxu0
        %v2132 = vadd.f32 %v2093, %v2131
        %v2133 = vpop.f32.mrf.mxu0
        %2134 = vdwg.mxu0
        %v2135 = vmax.f32 %v2132, 0.0
        %v2136 = vld [vmem:[%s61] sm:$0xf]
        %v2137 = vld [vmem:[%s61 + $0x4] sm:$0xf]
        %v2138 = vld [vmem:[%s61 + $0x8] sm:$0xf]
        %v2139 = vld [vmem:[%s61 + $0xc] sm:$0xf]
        %v2140 = vld [vmem:[%s61 + $0x10] sm:$0xf]
        %v2141 = vld [vmem:[%s61 + $0x14] sm:$0xf]
        %v2142 = vld [vmem:[%s61 + $0x18] sm:$0xf]
        %v2143 = vld [vmem:[%s61 + $0x1c] sm:$0xf]
        %v2144 = vld [vmem:[#allocation28] sm:$0x1]
        %v2146 = vperm.slane %v2144, 0
        %2149 = vrot.lane.b32.xlu0 %v2028, 64
        %v2150 = vpop.permute.xlu0 %2149
        %v2159 = vunpack.c.l.b16 %v2136
        %v2160 = vunpack.c.l.b16 %v2137
        %v2161 = vunpack.c.l.b16 %v2138
        %v2162 = vunpack.c.l.b16 %v2139
        %v2163 = vunpack.c.l.b16 %v2140
        %v2164 = vunpack.c.l.b16 %v2141
        %v2165 = vunpack.c.l.b16 %v2142
        %v2166 = vunpack.c.l.b16 %v2143
        %v2167 = vpack.c.b16 %v2160, %v2159
        %v2168 = vpack.c.b16 %v2162, %v2161
        %v2169 = vpack.c.b16 %v2164, %v2163
        %v2170 = vpack.c.b16 %v2166, %v2165
        %v2176 = vsel %vm1740, %v2150, 0
        %2178 = vmatpush.bf16.msra.mxu0 0
        %2179 = vmatpush.bf16.msra.mxu0 0
        %2180 = vmatpush.bf16.msra.mxu0 0
        %2181 = vmatpush.bf16.msra.mxu0 0
        %2182 = vmatpush.bf16.msra.mxu0 %v2170
        %2183 = vmatpush.bf16.msra.mxu0 %v2169
        %2184 = vmatpush.bf16.msra.mxu0 %v2168
        %2185 = vmatpush.bf16.msra.mxu0 %v2167
        %2186 = vmatmul.bf16.gmra.mxu0 %v2176
        %v2187 = vpop.f32.mrf.mxu0
        %v2188 = vadd.f32 %v2146, %v2187
        %v2189 = vpop.f32.mrf.mxu0
        %2190 = vdwg.mxu0
        %v2191 = vmax.f32 %v2188, 0.0
        %v2192 = vpack.c.bf16 %v1811, %v1811
        %v2193 = vld [vmem:[#allocation30] sm:$0xf]
        %v2194 = vld [vmem:[#allocation30 + $0x4] sm:$0xf]
        %v2195 = vld [vmem:[#allocation30 + $0x8] sm:$0xf]
        %v2196 = vld [vmem:[#allocation30 + $0xc] sm:$0xf]
        %v2197 = vpack.c.bf16 %v1984, %v1984
        %v2198 = vld [vmem:[#allocation31] sm:$0xf]
        %v2199 = vld [vmem:[#allocation31 + $0x4] sm:$0xf]
        %v2200 = vld [vmem:[#allocation31 + $0x8] sm:$0xf]
        %v2201 = vld [vmem:[#allocation31 + $0xc] sm:$0xf]
        %v2206 = vunpack.c.l.b16 %v2198
        %v2207 = vunpack.c.l.b16 %v2199
        %v2208 = vunpack.c.l.b16 %v2200
        %v2209 = vunpack.c.l.b16 %v2201
        %v2210 = vpack.c.b16 %v2207, %v2206
        %v2211 = vpack.c.b16 %v2209, %v2208
        %v2215 = vsel %vm1581, %v2197, 0
        %2217 = vmatpush.bf16.msra.mxu0 0
        %2218 = vmatpush.bf16.msra.mxu0 0
        %2219 = vmatpush.bf16.msra.mxu0 0
        %2220 = vmatpush.bf16.msra.mxu0 0
        %2221 = vmatpush.bf16.msra.mxu0 0
        %2222 = vmatpush.bf16.msra.mxu0 0
        %2223 = vmatpush.bf16.msra.mxu0 %v2211
        %2224 = vmatpush.bf16.msra.mxu0 %v2210
        %2225 = vmatmul.bf16.gmra.mxu0 %v2215
        %v2226 = vpop.f32.mrf.mxu0
        %v2227 = vadd.f32 0.0, %v2226
        %v2228 = vpop.f32.mrf.mxu0
        %2229 = vdwg.mxu0
        %v2234 = vunpack.c.l.b16 %v2193
        %v2235 = vunpack.c.l.b16 %v2194
        %v2236 = vunpack.c.l.b16 %v2195
        %v2237 = vunpack.c.l.b16 %v2196
        %v2238 = vpack.c.b16 %v2235, %v2234
        %v2239 = vpack.c.b16 %v2237, %v2236
        %v2243 = vsel %vm1581, %v2192, 0
        %2245 = vmatpush.bf16.msra.mxu0 0
        %2246 = vmatpush.bf16.msra.mxu0 0
        %2247 = vmatpush.bf16.msra.mxu0 0
        %2248 = vmatpush.bf16.msra.mxu0 0
        %2249 = vmatpush.bf16.msra.mxu0 0
        %2250 = vmatpush.bf16.msra.mxu0 0
        %2251 = vmatpush.bf16.msra.mxu0 %v2239
        %2252 = vmatpush.bf16.msra.mxu0 %v2238
        %2253 = vmatmul.bf16.gmra.mxu0 %v2243
        %v2254 = vpop.f32.mrf.mxu0
        %v2255 = vadd.f32 %v2227, %v2254
        %v2256 = vpop.f32.mrf.mxu0
        %2257 = vdwg.mxu0
        %v2258 = vpack.c.bf16 %v2135, %v2135
        %v2259 = vld [vmem:[#allocation33] sm:$0xf]
        %v2260 = vld [vmem:[#allocation33 + $0x4] sm:$0xf]
        %v2261 = vld [vmem:[#allocation33 + $0x8] sm:$0xf]
        %v2262 = vld [vmem:[#allocation33 + $0xc] sm:$0xf]
        %v2267 = vunpack.c.l.b16 %v2259
        %v2268 = vunpack.c.l.b16 %v2260
        %v2269 = vunpack.c.l.b16 %v2261
        %v2270 = vunpack.c.l.b16 %v2262
        %v2271 = vpack.c.b16 %v2268, %v2267
        %v2272 = vpack.c.b16 %v2270, %v2269
        %v2276 = vsel %vm1581, %v2258, 0
        %2278 = vmatpush.bf16.msra.mxu0 0
        %2279 = vmatpush.bf16.msra.mxu0 0
        %2280 = vmatpush.bf16.msra.mxu0 0
        %2281 = vmatpush.bf16.msra.mxu0 0
        %2282 = vmatpush.bf16.msra.mxu0 0
        %2283 = vmatpush.bf16.msra.mxu0 0
        %2284 = vmatpush.bf16.msra.mxu0 %v2272
        %2285 = vmatpush.bf16.msra.mxu0 %v2271
        %2286 = vmatmul.bf16.gmra.mxu0 %v2276
        %v2287 = vpop.f32.mrf.mxu0
        %v2288 = vadd.f32 0.0, %v2287
        %v2289 = vpop.f32.mrf.mxu0
        %2290 = vdwg.mxu0
        %v2291 = vadd.f32 %v2255, %v2288
        %v2292 = vpack.c.bf16 %v2191, %v2191
        %v2293 = vld [vmem:[#allocation34] sm:$0xf]
        %v2294 = vld [vmem:[#allocation34 + $0x4] sm:$0xf]
        %v2295 = vld [vmem:[#allocation34 + $0x8] sm:$0xf]
        %v2296 = vld [vmem:[#allocation34 + $0xc] sm:$0xf]
        %v2301 = vunpack.c.l.b16 %v2293
        %v2302 = vunpack.c.l.b16 %v2294
        %v2303 = vunpack.c.l.b16 %v2295
        %v2304 = vunpack.c.l.b16 %v2296
        %v2305 = vpack.c.b16 %v2302, %v2301
        %v2306 = vpack.c.b16 %v2304, %v2303
        %v2310 = vsel %vm1581, %v2292, 0
        %2312 = vmatpush.bf16.msra.mxu0 0
        %2313 = vmatpush.bf16.msra.mxu0 0
        %2314 = vmatpush.bf16.msra.mxu0 0
        %2315 = vmatpush.bf16.msra.mxu0 0
        %2316 = vmatpush.bf16.msra.mxu0 0
        %2317 = vmatpush.bf16.msra.mxu0 0
        %2318 = vmatpush.bf16.msra.mxu0 %v2306
        %2319 = vmatpush.bf16.msra.mxu0 %v2305
        %2320 = vmatmul.bf16.gmra.mxu0 %v2310
        %v2321 = vpop.f32.mrf.mxu0
        %v2322 = vadd.f32 0.0, %v2321
        %v2323 = vpop.f32.mrf.mxu0
        %2324 = vdwg.mxu0
        %v2325 = vadd.f32 %v2291, %v2322
        %v2326 = vld [vmem:[#allocation36] sm:$0x1]
        %v2328 = vperm.slane %v2326, 0
        %v2330 = vadd.f32 %v2325, %v2328
        %v2331 = vlaneseq
        %v2332 = vand.u32 %v2331, 127
        %vm2333 = vcmp.eq.s32.totalorder %v2332, 29
        %v2334 = vsel %vm2333, %v2330, 0.0
        %2335 = vadd.xlane.f32.xlu0 %v2334
        %v2336 = vpop.xlane.xlu0 %2335
        %v2337 = vsub.f32 0.0, %v2336
        %v2338 = vmul.f32 %v2337, 1.442695
        %v2339 = vpow.pop %v2338
        %v2340 = vadd.f32 %v2339, 1.0
        %v2341 = vrcp.pop %v2340
        %v2342 = vmul.f32 %v2340, %v2341
        %v2343 = vsub.f32 1.0, %v2342
        %v2344 = vmul.f32 %v2341, %v2343
        %v2345 = vadd.f32 %v2341, %v2344
        %vm2346 = vweird.f32 %v2340
        %vm2347 = vweird.f32 %v2341
        %vm2348 = vmor %vm2346, %vm2347
        %v2349 = vsel %vm2348, %v2341, %v2345
        %v2350 = vand.u32 2147483647, %v2340
        %vm2351 = vcmp.eq.f32.partialorder %v2350, 8.507059e+37
        %v2352 = vand.u32 %v2340, 2147483648
        %v2353 = vor.u32 1.1754944e-38, %v2352
        %v2354 = vsel %vm2351, %v2353, %v2349
        %v2355 = vmul.f32 1.0, %v2354
        %v2356 = vsub.f32 1.0, %v2355
        %v2357 = vmax.f32 %v2356, 0.0001
        %v2358 = vlog2.pop %v2357
        %v2359 = vmul.f32 %v2358, 0.6931472
        %v2360 = vsub.f32 0.0, %v2359
        %v2361 = vmul.f32 %v2360, 2.0
        %v2362 = vmul.f32 %v2330, %v1528
        %v2363 = vsel %vm1542, %v2362, 0.0
        %2364 = vadd.xlane.f32.xlu0 %v2363
        %v2365 = vpop.xlane.xlu0 %2364
        %v2366 = vsub.f32 0.0, %v2365
        %v2367 = vsub.f32 0.0, %v2366
        %v2368 = vmax.f32 %v2367, 0.0
        %vm2369 = vcmp.eq.s32.totalorder %v2332, 30
        %v2370 = vsel %vm2369, %v2361, %v2330
        %vm2371 = vcmp.eq.s32.totalorder %v2332, 31
        %v2372 = vsel %vm2371, %v2368, %v2370
        %2373 = vst [vmem:[%s1526] sm:$0xff] %v2372
        %p2374 = scmp.lt.s32.totalorder %s98, 1
        %s2375 = scalar_select %p2374, %s98, 1
        %s2376 = smul.addr %s2375, 8
        %s2377 = scalar_lea.vmem %s75, %s2376
        // Predicated region
        $region261: #{ase_forward.1} parent=167 // pred_check
          %p2378 = pneg %p913
        $region262: #{ase_forward.1} parent=167 // pred_check_branch
          %2380 = sbr.rel (%p2378) target = $region264
        $region263: #{ase_forward.1} parent=167 // pred_region
          _
        $region264: #{ase_forward.1} parent=167 // pred_fallthru
          _
      $region168: #{ase_forward.1} parent=5 // pred_fallthru
        _
      %p2381 = scmp.le.s32.totalorder 2, %s93
      // Predicated region
      $region265: #{ase_forward.1} parent=5 // pred_check
        %p2382 = pneg %p2381
      $region266: #{ase_forward.1} parent=5 // pred_check_branch
        %2384 = sbr.rel (%p2382) target = $region268
      $region267: #{ase_forward.1} parent=5 // pred_region
        %s2385 = ssub.s32 %s93, 2
        // Predicated region
        $region269: #{ase_forward.1} parent=267 // pred_check
          %p2386 = pneg %p919
        $region270: #{ase_forward.1} parent=267 // pred_check_branch
          %2388 = sbr.rel (%p2386) target = $region272
        $region271: #{ase_forward.1} parent=267 // pred_region
          %p2389 = scmp.lt.s32.totalorder %s99, 1
          %s2390 = scalar_select %p2389, %s99, 1
          %s2391 = smul.addr %s2390, 8
          %s2392 = scalar_lea.vmem %s75, %s2391
        $region272: #{ase_forward.1} parent=267 // pred_fallthru
          _
      $region268: #{ase_forward.1} parent=5 // pred_fallthru
        _
    $region6: #{ase_forward.1} parent=1 // loop_footer
      %s97 = sadd.s32 1, %s93
    $region7: #{ase_forward.1} parent=1 // loop_footer_branch
      %92 = sbr.rel target = $region3
    $region8: #{ase_forward.1} parent=1 // loop_exit
      _
    %2393 = vsyncpa [#allocation3], 1
    %s2394 = scalar_lea.sflag [#allocation3], 1
    %2395 = vsyncpa %s2394, 1
    %2396 = vsyncpa [#allocation5], 1
    %2397 = vsyncpa [#allocation8], 1
    %2398 = vsyncpa [#allocation11], 1
    %2399 = vsyncpa [#allocation14], 1
    %2400 = vsyncpa [#allocation17], 1
    %2401 = vsyncpa [#allocation20], 1
    %2402 = vsyncpa [#allocation23], 1
    %2403 = vsyncpa [#allocation26], 1
    %2404 = vsyncpa [#allocation29], 1
    %2405 = vsyncpa [#allocation32], 1
    %2406 = vsyncpa [#allocation35], 1

</llo_original>
